<compile_context>
chip_gen: v6e
topology: v6e:2x2x1
jax: 0.10.0
libtpu: 0.0.40
codegen_flags: <defaults>
</compile_context>

<pallas_src>
import jax
import jax.numpy as jnp
from jax.experimental import pallas as pl
from jax.experimental.pallas import tpu as pltpu


SEQ_LENS = (5, 10, 15)          # sequence_length of alstm_1 / alstm_2 / alstm_3


def _round_up(v, m):
    return (v + m - 1) // m * m


def _sigmoid(z):
    # explicit form (exp + div only) -> guaranteed Mosaic lowering
    return 1.0 / (1.0 + jnp.exp(-z))


def _make_kernel(TN, D, H, G, num_layers, lmax, t0s):
    """Fused kernel.  Ref order (inputs):
         x (lmax, TN, D), mask0 (lmax, 1, 4G),
         [wih_fused, whh_fused, bias_table] * num_layers,
         attn_w (nb,1,H), attn_b (nb,1,1), fc_w (nb,1,H), fc_b (nb,1,1),
         mix (1, nb)
       output: (TN, 1); scratch: xg (lmax*TN, 4G), hs (lmax*TN, G)."""
    nb = len(t0s)
    G3, G4 = 3 * G, 4 * G

    def kernel(*refs):
        it = iter(refs)
        x_ref = next(it)                                    # (lmax, TN, D)
        mask_ref = next(it)                                 # (lmax, 1, 4G)
        layer_refs = [(next(it), next(it), next(it)) for _ in range(num_layers)]
        attn_w_ref = next(it)                               # (nb, 1, H)
        attn_b_ref = next(it)                               # (nb, 1, 1)
        fc_w_ref = next(it)                                 # (nb, 1, H)
        fc_b_ref = next(it)                                 # (nb, 1, 1)
        mix_ref = next(it)                                  # (1, nb)
        o_ref = next(it)                                    # (TN, 1)
        xg_ref = next(it)                                   # scratch (lmax*TN, 4G)
        hs_ref = next(it)                                   # scratch (lmax*TN, G)

        x2d = x_ref[...].reshape(lmax * TN, D)              # time-major rows

        # ---------------- fused (3-branch) stacked LSTM ----------------
        for l in range(num_layers):
            wih_ref, whh_ref, btbl_ref = layer_refs[l]
            # all-timestep input->gate projection in ONE matmul, into scratch
            if l == 0:
                xg_ref[...] = jnp.dot(x2d, wih_ref[...],
                                      preferred_element_type=jnp.float32)
            else:
                xg_ref[...] = jnp.dot(hs_ref[...], wih_ref[...],
                                      preferred_element_type=jnp.float32)

            whh = whh_ref[...]                              # (G, 4G) block-diag
            h = jnp.zeros((TN, G), jnp.float32)
            c = jnp.zeros((TN, G), jnp.float32)
            for t in range(lmax):                           # static unroll (time outer)
                pre = xg_ref[t * TN:(t + 1) * TN, :]        # (TN, 4G)
                if l == 0:
                    pre = pre * mask_ref[t]                 # gate inactive branches
                pre = pre + btbl_ref[t]                     # per-t gated bias
                g = pre + jnp.dot(h, whh,
                                  preferred_element_type=jnp.float32)
                sig = _sigmoid(g[:, 0:G3])                  # i | f | o groups
                i_g = sig[:, 0:G]
                f_g = sig[:, G:2 * G]
                o_g = sig[:, 2 * G:G3]
                g_g = jnp.tanh(g[:, G3:G4])                 # g (cell-candidate) group
                c = f_g * c + i_g * g_g
                h = o_g * jnp.tanh(c)
                hs_ref[t * TN:(t + 1) * TN, :] = h          # keep full h-sequence

        # ---------------- attention + fc head per branch ----------------
        branch_cols = []
        for b in range(nb):                                 # static unroll over branches
            bs, be = b * H, (b + 1) * H
            aw = attn_w_ref[b]                              # (1, H)
            ab = attn_b_ref[b]                              # (1, 1)
            ts = list(range(t0s[b], lmax))                  # branch's active window
            hseq = [hs_ref[t * TN:(t + 1) * TN, bs:be] for t in ts]   # (TN, H) each
            cols = [jnp.sum(ht * aw, axis=1, keepdims=True) for ht in hseq]
            logits = jnp.concatenate(cols, axis=1) + ab     # (TN, L) lane-dense
            m = jnp.max(logits, axis=1, keepdims=True)
            e = jnp.exp(logits - m)
            s = jnp.sum(e, axis=1, keepdims=True)
            w = e * pl.reciprocal(s, approx=True)           # softmax over time
            ctx = w[:, 0:1] * hseq[0]
            for j in range(1, len(ts)):
                ctx = ctx + w[:, j:j + 1] * hseq[j]         # (TN, H)
            fw = fc_w_ref[b]                                # (1, H)
            fb = fc_b_ref[b]                                # (1, 1)
            branch_cols.append(jnp.sum(ctx * fw, axis=1, keepdims=True) + fb)

        # ---------------- softmax-weighted ensemble ----------------
        outs = jnp.concatenate(branch_cols, axis=1)         # (TN, nb)
        mix = mix_ref[...]                                  # (1, nb)
        mmax = jnp.max(mix, axis=1, keepdims=True)
        me = jnp.exp(mix - mmax)
        msum = jnp.sum(me, axis=1, keepdims=True)
        wmix = me * pl.reciprocal(msum, approx=True)
        o_ref[...] = jnp.sum(outs * wmix, axis=1, keepdims=True)   # (TN, 1)

    return kernel


def _pack_params(params, lmax):
    """Host-side packing of per-branch LSTM weights into the fused layouts.

    Combined-state layout: lanes [0:H) branch 0, [H:2H) branch 1, [2H:3H)
    branch 2, [3H:G) zero padding (G = round_up(3H, 128)).
    Gate-column layout: 4 groups of G lanes each, gate order [i, f, o, g]
    (so sigmoid covers the first 3G lanes contiguously); raw storage is
    PyTorch's [i, f, g, o] order along the 4H axis."""
    H = params["hidden_dim"]
    nl = params["num_layers"]
    seq_lens = params["seq_lens"]
    nb = len(seq_lens)
    G = _round_up(nb * H, 128)
    t0s = tuple(lmax - L for L in seq_lens)
    src_of_group = (0, 1, 3, 2)          # dest [i,f,o,g] <- raw [i,f,g,o]

    def col(gd, b):
        lo = gd * G + b * H
        return lo, lo + H

    wih_f, whh_f, btbl = [], [], []
    for l in range(nl):
        w_in = params["wih"][l]          # (nb, Din, 4H)
        w_hh = params["whh"][l]          # (nb, H, 4H)
        b_l = params["b"][l]             # (nb, 4H)
        din = w_in.shape[1]
        wi = jnp.zeros((din if l == 0 else G, 4 * G), jnp.float32)
        wh = jnp.zeros((G, 4 * G), jnp.float32)
        for gd, gs in enumerate(src_of_group):
            for b in range(nb):
                lo, hi = col(gd, b)
                blk_in = w_in[b, :, gs * H:(gs + 1) * H]
                if l == 0:
                    wi = wi.at[:, lo:hi].set(blk_in)               # shared x rows
                else:
                    wi = wi.at[b * H:(b + 1) * H, lo:hi].set(blk_in)  # block-diag
                wh = wh.at[b * H:(b + 1) * H, lo:hi].set(
                    w_hh[b, :, gs * H:(gs + 1) * H])
        # per-timestep bias, zero until branch b becomes active
        rows = []
        for t in range(lmax):
            r = jnp.zeros((4 * G,), jnp.float32)
            for gd, gs in enumerate(src_of_group):
                for b in range(nb):
                    if t >= t0s[b]:
                        lo, hi = col(gd, b)
                        r = r.at[lo:hi].set(b_l[b, gs * H:(gs + 1) * H])
            rows.append(r)
        wih_f.append(wi)
        whh_f.append(wh)
        btbl.append(jnp.stack(rows).reshape(lmax, 1, 4 * G))

    # layer-0 activity mask: 1 in branch b's gate lanes once it is active
    mrows = []
    for t in range(lmax):
        r = jnp.zeros((4 * G,), jnp.float32)
        for gd in range(4):
            for b in range(nb):
                if t >= t0s[b]:
                    lo, hi = col(gd, b)
                    r = r.at[lo:hi].set(1.0)
        mrows.append(r)
    mask0 = jnp.stack(mrows).reshape(lmax, 1, 4 * G)

    return dict(G=G, t0s=t0s, wih=wih_f, whh=whh_f, btbl=btbl, mask0=mask0)


def m_alstm_s_forward(x, params, tile_n=128):
    """x: (batch, num_stocks, T, input_dim) float32.  Returns (batch, num_stocks)."""
    B, S, T, D = x.shape
    H = params["hidden_dim"]
    nl = params["num_layers"]
    seq_lens = params["seq_lens"]
    lmax = max(seq_lens)
    if T < lmax:
        raise ValueError("out of sequence length")
    N = B * S

    packed = _pack_params(params, lmax)
    G, t0s = packed["G"], packed["t0s"]

    # last lmax steps, flatten (B,S)->N, time-major so each timestep's rows are
    # one contiguous aligned sublane block inside the kernel.
    # TODO(synk): for very large N produce x time-major upstream to avoid this
    # standalone transpose's extra HBM round trip.
    xw = jnp.transpose(x[:, :, T - lmax:, :].reshape(N, lmax, D), (1, 0, 2))

    TN = min(_round_up(tile_n, 8), _round_up(N, 8))     # row tile (multiple of 8)
    N_pad = _round_up(N, TN)
    if N_pad != N:
        xw = jnp.pad(xw, ((0, 0), (0, N_pad - N), (0, 0)))

    args = [xw, packed["mask0"]]
    for l in range(nl):
        args += [packed["wih"][l], packed["whh"][l], packed["btbl"][l]]
    args += [params["attn_w"], params["attn_b"],
             params["fc_w"], params["fc_b"], params["mix"]]

    in_specs = [pl.BlockSpec((lmax, TN, D), lambda i: (0, i, 0))]
    for a in args[1:]:
        in_specs.append(pl.BlockSpec(a.shape, lambda i, _nd=a.ndim: (0,) * _nd))

    kernel = _make_kernel(TN, D, H, G, nl, lmax, t0s)
    out = pl.pallas_call(
        kernel,
        out_shape=jax.ShapeDtypeStruct((N_pad, 1), jnp.float32),
        grid_spec=pltpu.PrefetchScalarGridSpec(
            num_scalar_prefetch=0,
            grid=(N_pad // TN,),
            in_specs=in_specs,
            out_specs=pl.BlockSpec((TN, 1), lambda i: (i, 0)),
            scratch_shapes=[pltpu.VMEM((lmax * TN, 4 * G), jnp.float32),
                            pltpu.VMEM((lmax * TN, G), jnp.float32)]),
        compiler_params=pltpu.CompilerParams(
            dimension_semantics=("parallel",)),
    )(*args)
    return out[:N, 0].reshape(B, S)


def init_params(key, input_dim, hidden_dim, num_layers, seq_lens=SEQ_LENS):
    """Deterministic init.  Raw (un-fused) per-branch storage:
       wih[l] (nb, Din, 4H) [already transposed for x @ W, gate order i,f,g,o],
       whh[l] (nb, H, 4H), b[l] (nb, 4H) (= b_ih + b_hh combined),
       attn/fc heads as row vectors, mix (1, nb)."""
    D, H = input_dim, hidden_dim
    nb = len(seq_lens)

    def glorot(k, shape, fan_in):
        return jax.random.normal(k, shape, jnp.float32) / jnp.sqrt(jnp.float32(fan_in))

    wih, whh, bias = [], [], []
    for l in range(num_layers):
        din = D if l == 0 else H
        key, k1, k2 = jax.random.split(key, 3)
        wih.append(glorot(k1, (nb, din, 4 * H), din))
        whh.append(glorot(k2, (nb, H, 4 * H), H))
        bias.append(jnp.zeros((nb, 4 * H), jnp.float32))
    key, ka, kf = jax.random.split(key, 3)
    attn_w = glorot(ka, (nb, 1, H), H)
    attn_b = jnp.zeros((nb, 1, 1), jnp.float32)
    fc_w = glorot(kf, (nb, 1, H), H)
    fc_b = jnp.zeros((nb, 1, 1), jnp.float32)
    mix = jnp.ones((1, nb), jnp.float32)      # nn.Parameter(torch.ones(3, 1))
    return dict(hidden_dim=H, num_layers=num_layers, seq_lens=tuple(seq_lens),
                wih=wih, whh=whh, b=bias,
                attn_w=attn_w, attn_b=attn_b, fc_w=fc_w, fc_b=fc_b, mix=mix)


if __name__ == "__main__":
    key = jax.random.PRNGKey(0)

    batch, num_stocks, T, input_dim, hidden_dim, num_layers = 2, 4, 16, 8, 32, 1

    key, kx = jax.random.split(key)
    x = jax.random.normal(kx, (batch, num_stocks, T, input_dim), jnp.float32)

    params = init_params(key, input_dim, hidden_dim, num_layers)

    out = m_alstm_s_forward(x, params)
    out = jax.block_until_ready(out)
    assert out.shape == (batch, num_stocks)
    assert bool(jnp.all(jnp.isfinite(out)))
    print("KERNEL_OK")
</pallas_src>

<mosaic_0001>
module attributes {stable_mosaic.version = 11 : i64} {
  func.func @kernel(%arg0: i32, %arg1: memref<15x8x8xf32, #tpu.memory_space<vmem>>, %arg2: memref<15x1x512xf32, #tpu.memory_space<vmem>>, %arg3: memref<8x512xf32, #tpu.memory_space<vmem>>, %arg4: memref<128x512xf32, #tpu.memory_space<vmem>>, %arg5: memref<15x1x512xf32, #tpu.memory_space<vmem>>, %arg6: memref<3x1x32xf32, #tpu.memory_space<vmem>>, %arg7: memref<3x1x1xf32, #tpu.memory_space<vmem>>, %arg8: memref<3x1x32xf32, #tpu.memory_space<vmem>>, %arg9: memref<3x1x1xf32, #tpu.memory_space<vmem>>, %arg10: memref<1x3xf32, #tpu.memory_space<vmem>>, %arg11: memref<8x1xf32, #tpu.memory_space<vmem>>, %arg12: memref<120x512xf32, #tpu.memory_space<vmem>>, %arg13: memref<120x128xf32, #tpu.memory_space<vmem>>) attributes {dimension_semantics = [#tpu.dimension_semantics<parallel>], iteration_bounds = array<i64: 1>, scalar_prefetch = 0 : i64, scratch_operands = 2 : i64, tpu.core_type = #tpu.core_type<tc>, window_params = [{transform_indices = @transform_0, window_bounds = array<i64: 15, 8, 8>}, {pipeline_mode = #tpu.pipeline_mode<synchronous>, transform_indices = @transform_1, window_bounds = array<i64: 15, 1, 512>}, {pipeline_mode = #tpu.pipeline_mode<synchronous>, transform_indices = @transform_2, window_bounds = array<i64: 8, 512>}, {pipeline_mode = #tpu.pipeline_mode<synchronous>, transform_indices = @transform_3, window_bounds = array<i64: 128, 512>}, {pipeline_mode = #tpu.pipeline_mode<synchronous>, transform_indices = @transform_4, window_bounds = array<i64: 15, 1, 512>}, {pipeline_mode = #tpu.pipeline_mode<synchronous>, transform_indices = @transform_5, window_bounds = array<i64: 3, 1, 32>}, {pipeline_mode = #tpu.pipeline_mode<synchronous>, transform_indices = @transform_6, window_bounds = array<i64: 3, 1, 1>}, {pipeline_mode = #tpu.pipeline_mode<synchronous>, transform_indices = @transform_7, window_bounds = array<i64: 3, 1, 32>}, {pipeline_mode = #tpu.pipeline_mode<synchronous>, transform_indices = @transform_8, window_bounds = array<i64: 3, 1, 1>}, {pipeline_mode = #tpu.pipeline_mode<synchronous>, transform_indices = @transform_9, window_bounds = array<i64: 1, 3>}, {transform_indices = @transform_10, window_bounds = array<i64: 8, 1>}]} {
    %c0 = arith.constant 0 : index
    %c0_0 = arith.constant 0 : index
    %c0_1 = arith.constant 0 : index
    %0 = vector.load %arg1[%c0, %c0_0, %c0_1] : memref<15x8x8xf32, #tpu.memory_space<vmem>>, vector<15x8x8xf32>
    %1 = vector.shape_cast %0 : vector<15x8x8xf32> to vector<120x8xf32>
    %c0_2 = arith.constant 0 : index
    %c0_3 = arith.constant 0 : index
    %2 = vector.load %arg3[%c0_2, %c0_3] : memref<8x512xf32, #tpu.memory_space<vmem>>, vector<8x512xf32>
    %cst = arith.constant dense<0.000000e+00> : vector<120x512xf32>
    %3 = tpu.matmul %1, %2, %cst {dimension_numbers = #tpu.dot_dimension_numbers<[1], [0], [0], [1], [0, 0, 1, 1], [], []>} : vector<120x8xf32>, vector<8x512xf32>, vector<120x512xf32> -> vector<120x512xf32>
    %c0_4 = arith.constant 0 : index
    %c0_5 = arith.constant 0 : index
    %4 = vector.load %arg12[%c0_4, %c0_5] : memref<120x512xf32, #tpu.memory_space<vmem>>, vector<120x512xf32>
    tpu.vector_store %arg12[%c0_4, %c0_5], %3 {strides = array<i32>} : memref<120x512xf32, #tpu.memory_space<vmem>>, vector<120x512xf32>,
    %c0_6 = arith.constant 0 : index
    %c0_7 = arith.constant 0 : index
    %5 = vector.load %arg4[%c0_6, %c0_7] : memref<128x512xf32, #tpu.memory_space<vmem>>, vector<128x512xf32>
    %cst_8 = arith.constant 0.000000e+00 : f32
    %6 = vector.broadcast %cst_8 : f32 to vector<8x128xf32>
    %cst_9 = arith.constant 0.000000e+00 : f32
    %7 = vector.broadcast %cst_9 : f32 to vector<8x128xf32>
    %c0_10 = arith.constant 0 : index
    %c0_11 = arith.constant 0 : index
    %8 = vector.load %arg12[%c0_10, %c0_11] : memref<120x512xf32, #tpu.memory_space<vmem>>, vector<8x512xf32>
    %c0_12 = arith.constant 0 : index
    %c0_13 = arith.constant 0 : index
    %c0_14 = arith.constant 0 : index
    %9 = vector.load %arg2[%c0_12, %c0_13, %c0_14] : memref<15x1x512xf32, #tpu.memory_space<vmem>>, vector<1x1x512xf32>
    %10 = vector.shape_cast %9 : vector<1x1x512xf32> to vector<1x512xf32>
    %11 = vector.broadcast %10 : vector<1x512xf32> to vector<8x512xf32>
    %12 = arith.mulf %8, %11 : vector<8x512xf32>
    %c0_15 = arith.constant 0 : index
    %c0_16 = arith.constant 0 : index
    %c0_17 = arith.constant 0 : index
    %13 = vector.load %arg5[%c0_15, %c0_16, %c0_17] : memref<15x1x512xf32, #tpu.memory_space<vmem>>, vector<1x1x512xf32>
    %14 = vector.shape_cast %13 : vector<1x1x512xf32> to vector<1x512xf32>
    %15 = vector.broadcast %14 : vector<1x512xf32> to vector<8x512xf32>
    %16 = arith.addf %12, %15 : vector<8x512xf32>
    %cst_18 = arith.constant dense<0.000000e+00> : vector<8x512xf32>
    %17 = tpu.matmul %6, %5, %cst_18 {dimension_numbers = #tpu.dot_dimension_numbers<[1], [0], [0], [1], [0, 0, 1, 1], [], []>} : vector<8x128xf32>, vector<128x512xf32>, vector<8x512xf32> -> vector<8x512xf32>
    %18 = arith.addf %16, %17 : vector<8x512xf32>
    %19 = vector.extract_strided_slice %18 {offsets = [0, 0], sizes = [8, 384], strides = [1, 1]} : vector<8x512xf32> to vector<8x384xf32>
    %cst_19 = arith.constant 0.000000e+00 : f32
    %20 = vector.broadcast %cst_19 : f32 to vector<8x384xf32>
    %21 = arith.subf %20, %19 : vector<8x384xf32>
    %22 = math.exp %21 : vector<8x384xf32>
    %cst_20 = arith.constant 1.000000e+00 : f32
    %23 = vector.broadcast %cst_20 : f32 to vector<8x384xf32>
    %24 = arith.addf %23, %22 : vector<8x384xf32>
    %cst_21 = arith.constant 1.000000e+00 : f32
    %25 = vector.broadcast %cst_21 : f32 to vector<8x384xf32>
    %26 = arith.divf %25, %24 : vector<8x384xf32>
    %27 = vector.extract_strided_slice %26 {offsets = [0, 0], sizes = [8, 128], strides = [1, 1]} : vector<8x384xf32> to vector<8x128xf32>
    %28 = vector.extract_strided_slice %26 {offsets = [0, 128], sizes = [8, 128], strides = [1, 1]} : vector<8x384xf32> to vector<8x128xf32>
    %29 = vector.extract_strided_slice %26 {offsets = [0, 256], sizes = [8, 128], strides = [1, 1]} : vector<8x384xf32> to vector<8x128xf32>
    %30 = vector.extract_strided_slice %18 {offsets = [0, 384], sizes = [8, 128], strides = [1, 1]} : vector<8x512xf32> to vector<8x128xf32>
    %31 = math.tanh %30 : vector<8x128xf32>
    %32 = arith.mulf %28, %7 : vector<8x128xf32>
    %33 = arith.mulf %27, %31 : vector<8x128xf32>
    %34 = arith.addf %32, %33 : vector<8x128xf32>
    %35 = math.tanh %34 : vector<8x128xf32>
    %36 = arith.mulf %29, %35 : vector<8x128xf32>
    %c0_22 = arith.constant 0 : index
    %c0_23 = arith.constant 0 : index
    %37 = vector.load %arg13[%c0_22, %c0_23] : memref<120x128xf32, #tpu.memory_space<vmem>>, vector<8x128xf32>
    tpu.vector_store %arg13[%c0_22, %c0_23], %36 {strides = array<i32>} : memref<120x128xf32, #tpu.memory_space<vmem>>, vector<8x128xf32>,
    %c8 = arith.constant 8 : index
    %c0_24 = arith.constant 0 : index
    %38 = vector.load %arg12[%c8, %c0_24] : memref<120x512xf32, #tpu.memory_space<vmem>>, vector<8x512xf32>
    %c1 = arith.constant 1 : index
    %c0_25 = arith.constant 0 : index
    %c0_26 = arith.constant 0 : index
    %39 = vector.load %arg2[%c1, %c0_25, %c0_26] : memref<15x1x512xf32, #tpu.memory_space<vmem>>, vector<1x1x512xf32>
    %40 = vector.shape_cast %39 : vector<1x1x512xf32> to vector<1x512xf32>
    %41 = vector.broadcast %40 : vector<1x512xf32> to vector<8x512xf32>
    %42 = arith.mulf %38, %41 : vector<8x512xf32>
    %c1_27 = arith.constant 1 : index
    %c0_28 = arith.constant 0 : index
    %c0_29 = arith.constant 0 : index
    %43 = vector.load %arg5[%c1_27, %c0_28, %c0_29] : memref<15x1x512xf32, #tpu.memory_space<vmem>>, vector<1x1x512xf32>
    %44 = vector.shape_cast %43 : vector<1x1x512xf32> to vector<1x512xf32>
    %45 = vector.broadcast %44 : vector<1x512xf32> to vector<8x512xf32>
    %46 = arith.addf %42, %45 : vector<8x512xf32>
    %cst_30 = arith.constant dense<0.000000e+00> : vector<8x512xf32>
    %47 = tpu.matmul %36, %5, %cst_30 {dimension_numbers = #tpu.dot_dimension_numbers<[1], [0], [0], [1], [0, 0, 1, 1], [], []>} : vector<8x128xf32>, vector<128x512xf32>, vector<8x512xf32> -> vector<8x512xf32>
    %48 = arith.addf %46, %47 : vector<8x512xf32>
    %49 = vector.extract_strided_slice %48 {offsets = [0, 0], sizes = [8, 384], strides = [1, 1]} : vector<8x512xf32> to vector<8x384xf32>
    %cst_31 = arith.constant 0.000000e+00 : f32
    %50 = vector.broadcast %cst_31 : f32 to vector<8x384xf32>
    %51 = arith.subf %50, %49 : vector<8x384xf32>
    %52 = math.exp %51 : vector<8x384xf32>
    %cst_32 = arith.constant 1.000000e+00 : f32
    %53 = vector.broadcast %cst_32 : f32 to vector<8x384xf32>
    %54 = arith.addf %53, %52 : vector<8x384xf32>
    %cst_33 = arith.constant 1.000000e+00 : f32
    %55 = vector.broadcast %cst_33 : f32 to vector<8x384xf32>
    %56 = arith.divf %55, %54 : vector<8x384xf32>
    %57 = vector.extract_strided_slice %56 {offsets = [0, 0], sizes = [8, 128], strides = [1, 1]} : vector<8x384xf32> to vector<8x128xf32>
    %58 = vector.extract_strided_slice %56 {offsets = [0, 128], sizes = [8, 128], strides = [1, 1]} : vector<8x384xf32> to vector<8x128xf32>
    %59 = vector.extract_strided_slice %56 {offsets = [0, 256], sizes = [8, 128], strides = [1, 1]} : vector<8x384xf32> to vector<8x128xf32>
    %60 = vector.extract_strided_slice %48 {offsets = [0, 384], sizes = [8, 128], strides = [1, 1]} : vector<8x512xf32> to vector<8x128xf32>
    %61 = math.tanh %60 : vector<8x128xf32>
    %62 = arith.mulf %58, %34 : vector<8x128xf32>
    %63 = arith.mulf %57, %61 : vector<8x128xf32>
    %64 = arith.addf %62, %63 : vector<8x128xf32>
    %65 = math.tanh %64 : vector<8x128xf32>
    %66 = arith.mulf %59, %65 : vector<8x128xf32>
    %c8_34 = arith.constant 8 : index
    %c0_35 = arith.constant 0 : index
    %67 = vector.load %arg13[%c8_34, %c0_35] : memref<120x128xf32, #tpu.memory_space<vmem>>, vector<8x128xf32>
    tpu.vector_store %arg13[%c8_34, %c0_35], %66 {strides = array<i32>} : memref<120x128xf32, #tpu.memory_space<vmem>>, vector<8x128xf32>,
    %c16 = arith.constant 16 : index
    %c0_36 = arith.constant 0 : index
    %68 = vector.load %arg12[%c16, %c0_36] : memref<120x512xf32, #tpu.memory_space<vmem>>, vector<8x512xf32>
    %c2 = arith.constant 2 : index
    %c0_37 = arith.constant 0 : index
    %c0_38 = arith.constant 0 : index
    %69 = vector.load %arg2[%c2, %c0_37, %c0_38] : memref<15x1x512xf32, #tpu.memory_space<vmem>>, vector<1x1x512xf32>
    %70 = vector.shape_cast %69 : vector<1x1x512xf32> to vector<1x512xf32>
    %71 = vector.broadcast %70 : vector<1x512xf32> to vector<8x512xf32>
    %72 = arith.mulf %68, %71 : vector<8x512xf32>
    %c2_39 = arith.constant 2 : index
    %c0_40 = arith.constant 0 : index
    %c0_41 = arith.constant 0 : index
    %73 = vector.load %arg5[%c2_39, %c0_40, %c0_41] : memref<15x1x512xf32, #tpu.memory_space<vmem>>, vector<1x1x512xf32>
    %74 = vector.shape_cast %73 : vector<1x1x512xf32> to vector<1x512xf32>
    %75 = vector.broadcast %74 : vector<1x512xf32> to vector<8x512xf32>
    %76 = arith.addf %72, %75 : vector<8x512xf32>
    %cst_42 = arith.constant dense<0.000000e+00> : vector<8x512xf32>
    %77 = tpu.matmul %66, %5, %cst_42 {dimension_numbers = #tpu.dot_dimension_numbers<[1], [0], [0], [1], [0, 0, 1, 1], [], []>} : vector<8x128xf32>, vector<128x512xf32>, vector<8x512xf32> -> vector<8x512xf32>
    %78 = arith.addf %76, %77 : vector<8x512xf32>
    %79 = vector.extract_strided_slice %78 {offsets = [0, 0], sizes = [8, 384], strides = [1, 1]} : vector<8x512xf32> to vector<8x384xf32>
    %cst_43 = arith.constant 0.000000e+00 : f32
    %80 = vector.broadcast %cst_43 : f32 to vector<8x384xf32>
    %81 = arith.subf %80, %79 : vector<8x384xf32>
    %82 = math.exp %81 : vector<8x384xf32>
    %cst_44 = arith.constant 1.000000e+00 : f32
    %83 = vector.broadcast %cst_44 : f32 to vector<8x384xf32>
    %84 = arith.addf %83, %82 : vector<8x384xf32>
    %cst_45 = arith.constant 1.000000e+00 : f32
    %85 = vector.broadcast %cst_45 : f32 to vector<8x384xf32>
    %86 = arith.divf %85, %84 : vector<8x384xf32>
    %87 = vector.extract_strided_slice %86 {offsets = [0, 0], sizes = [8, 128], strides = [1, 1]} : vector<8x384xf32> to vector<8x128xf32>
    %88 = vector.extract_strided_slice %86 {offsets = [0, 128], sizes = [8, 128], strides = [1, 1]} : vector<8x384xf32> to vector<8x128xf32>
    %89 = vector.extract_strided_slice %86 {offsets = [0, 256], sizes = [8, 128], strides = [1, 1]} : vector<8x384xf32> to vector<8x128xf32>
    %90 = vector.extract_strided_slice %78 {offsets = [0, 384], sizes = [8, 128], strides = [1, 1]} : vector<8x512xf32> to vector<8x128xf32>
    %91 = math.tanh %90 : vector<8x128xf32>
    %92 = arith.mulf %88, %64 : vector<8x128xf32>
    %93 = arith.mulf %87, %91 : vector<8x128xf32>
    %94 = arith.addf %92, %93 : vector<8x128xf32>
    %95 = math.tanh %94 : vector<8x128xf32>
    %96 = arith.mulf %89, %95 : vector<8x128xf32>
    %c16_46 = arith.constant 16 : index
    %c0_47 = arith.constant 0 : index
    %97 = vector.load %arg13[%c16_46, %c0_47] : memref<120x128xf32, #tpu.memory_space<vmem>>, vector<8x128xf32>
    tpu.vector_store %arg13[%c16_46, %c0_47], %96 {strides = array<i32>} : memref<120x128xf32, #tpu.memory_space<vmem>>, vector<8x128xf32>,
    %c24 = arith.constant 24 : index
    %c0_48 = arith.constant 0 : index
    %98 = vector.load %arg12[%c24, %c0_48] : memref<120x512xf32, #tpu.memory_space<vmem>>, vector<8x512xf32>
    %c3 = arith.constant 3 : index
    %c0_49 = arith.constant 0 : index
    %c0_50 = arith.constant 0 : index
    %99 = vector.load %arg2[%c3, %c0_49, %c0_50] : memref<15x1x512xf32, #tpu.memory_space<vmem>>, vector<1x1x512xf32>
    %100 = vector.shape_cast %99 : vector<1x1x512xf32> to vector<1x512xf32>
    %101 = vector.broadcast %100 : vector<1x512xf32> to vector<8x512xf32>
    %102 = arith.mulf %98, %101 : vector<8x512xf32>
    %c3_51 = arith.constant 3 : index
    %c0_52 = arith.constant 0 : index
    %c0_53 = arith.constant 0 : index
    %103 = vector.load %arg5[%c3_51, %c0_52, %c0_53] : memref<15x1x512xf32, #tpu.memory_space<vmem>>, vector<1x1x512xf32>
    %104 = vector.shape_cast %103 : vector<1x1x512xf32> to vector<1x512xf32>
    %105 = vector.broadcast %104 : vector<1x512xf32> to vector<8x512xf32>
    %106 = arith.addf %102, %105 : vector<8x512xf32>
    %cst_54 = arith.constant dense<0.000000e+00> : vector<8x512xf32>
    %107 = tpu.matmul %96, %5, %cst_54 {dimension_numbers = #tpu.dot_dimension_numbers<[1], [0], [0], [1], [0, 0, 1, 1], [], []>} : vector<8x128xf32>, vector<128x512xf32>, vector<8x512xf32> -> vector<8x512xf32>
    %108 = arith.addf %106, %107 : vector<8x512xf32>
    %109 = vector.extract_strided_slice %108 {offsets = [0, 0], sizes = [8, 384], strides = [1, 1]} : vector<8x512xf32> to vector<8x384xf32>
    %cst_55 = arith.constant 0.000000e+00 : f32
    %110 = vector.broadcast %cst_55 : f32 to vector<8x384xf32>
    %111 = arith.subf %110, %109 : vector<8x384xf32>
    %112 = math.exp %111 : vector<8x384xf32>
    %cst_56 = arith.constant 1.000000e+00 : f32
    %113 = vector.broadcast %cst_56 : f32 to vector<8x384xf32>
    %114 = arith.addf %113, %112 : vector<8x384xf32>
    %cst_57 = arith.constant 1.000000e+00 : f32
    %115 = vector.broadcast %cst_57 : f32 to vector<8x384xf32>
    %116 = arith.divf %115, %114 : vector<8x384xf32>
    %117 = vector.extract_strided_slice %116 {offsets = [0, 0], sizes = [8, 128], strides = [1, 1]} : vector<8x384xf32> to vector<8x128xf32>
    %118 = vector.extract_strided_slice %116 {offsets = [0, 128], sizes = [8, 128], strides = [1, 1]} : vector<8x384xf32> to vector<8x128xf32>
    %119 = vector.extract_strided_slice %116 {offsets = [0, 256], sizes = [8, 128], strides = [1, 1]} : vector<8x384xf32> to vector<8x128xf32>
    %120 = vector.extract_strided_slice %108 {offsets = [0, 384], sizes = [8, 128], strides = [1, 1]} : vector<8x512xf32> to vector<8x128xf32>
    %121 = math.tanh %120 : vector<8x128xf32>
    %122 = arith.mulf %118, %94 : vector<8x128xf32>
    %123 = arith.mulf %117, %121 : vector<8x128xf32>
    %124 = arith.addf %122, %123 : vector<8x128xf32>
    %125 = math.tanh %124 : vector<8x128xf32>
    %126 = arith.mulf %119, %125 : vector<8x128xf32>
    %c24_58 = arith.constant 24 : index
    %c0_59 = arith.constant 0 : index
    %127 = vector.load %arg13[%c24_58, %c0_59] : memref<120x128xf32, #tpu.memory_space<vmem>>, vector<8x128xf32>
    tpu.vector_store %arg13[%c24_58, %c0_59], %126 {strides = array<i32>} : memref<120x128xf32, #tpu.memory_space<vmem>>, vector<8x128xf32>,
    %c32 = arith.constant 32 : index
    %c0_60 = arith.constant 0 : index
    %128 = vector.load %arg12[%c32, %c0_60] : memref<120x512xf32, #tpu.memory_space<vmem>>, vector<8x512xf32>
    %c4 = arith.constant 4 : index
    %c0_61 = arith.constant 0 : index
    %c0_62 = arith.constant 0 : index
    %129 = vector.load %arg2[%c4, %c0_61, %c0_62] : memref<15x1x512xf32, #tpu.memory_space<vmem>>, vector<1x1x512xf32>
    %130 = vector.shape_cast %129 : vector<1x1x512xf32> to vector<1x512xf32>
    %131 = vector.broadcast %130 : vector<1x512xf32> to vector<8x512xf32>
    %132 = arith.mulf %128, %131 : vector<8x512xf32>
    %c4_63 = arith.constant 4 : index
    %c0_64 = arith.constant 0 : index
    %c0_65 = arith.constant 0 : index
    %133 = vector.load %arg5[%c4_63, %c0_64, %c0_65] : memref<15x1x512xf32, #tpu.memory_space<vmem>>, vector<1x1x512xf32>
    %134 = vector.shape_cast %133 : vector<1x1x512xf32> to vector<1x512xf32>
    %135 = vector.broadcast %134 : vector<1x512xf32> to vector<8x512xf32>
    %136 = arith.addf %132, %135 : vector<8x512xf32>
    %cst_66 = arith.constant dense<0.000000e+00> : vector<8x512xf32>
    %137 = tpu.matmul %126, %5, %cst_66 {dimension_numbers = #tpu.dot_dimension_numbers<[1], [0], [0], [1], [0, 0, 1, 1], [], []>} : vector<8x128xf32>, vector<128x512xf32>, vector<8x512xf32> -> vector<8x512xf32>
    %138 = arith.addf %136, %137 : vector<8x512xf32>
    %139 = vector.extract_strided_slice %138 {offsets = [0, 0], sizes = [8, 384], strides = [1, 1]} : vector<8x512xf32> to vector<8x384xf32>
    %cst_67 = arith.constant 0.000000e+00 : f32
    %140 = vector.broadcast %cst_67 : f32 to vector<8x384xf32>
    %141 = arith.subf %140, %139 : vector<8x384xf32>
    %142 = math.exp %141 : vector<8x384xf32>
    %cst_68 = arith.constant 1.000000e+00 : f32
    %143 = vector.broadcast %cst_68 : f32 to vector<8x384xf32>
    %144 = arith.addf %143, %142 : vector<8x384xf32>
    %cst_69 = arith.constant 1.000000e+00 : f32
    %145 = vector.broadcast %cst_69 : f32 to vector<8x384xf32>
    %146 = arith.divf %145, %144 : vector<8x384xf32>
    %147 = vector.extract_strided_slice %146 {offsets = [0, 0], sizes = [8, 128], strides = [1, 1]} : vector<8x384xf32> to vector<8x128xf32>
    %148 = vector.extract_strided_slice %146 {offsets = [0, 128], sizes = [8, 128], strides = [1, 1]} : vector<8x384xf32> to vector<8x128xf32>
    %149 = vector.extract_strided_slice %146 {offsets = [0, 256], sizes = [8, 128], strides = [1, 1]} : vector<8x384xf32> to vector<8x128xf32>
    %150 = vector.extract_strided_slice %138 {offsets = [0, 384], sizes = [8, 128], strides = [1, 1]} : vector<8x512xf32> to vector<8x128xf32>
    %151 = math.tanh %150 : vector<8x128xf32>
    %152 = arith.mulf %148, %124 : vector<8x128xf32>
    %153 = arith.mulf %147, %151 : vector<8x128xf32>
    %154 = arith.addf %152, %153 : vector<8x128xf32>
    %155 = math.tanh %154 : vector<8x128xf32>
    %156 = arith.mulf %149, %155 : vector<8x128xf32>
    %c32_70 = arith.constant 32 : index
    %c0_71 = arith.constant 0 : index
    %157 = vector.load %arg13[%c32_70, %c0_71] : memref<120x128xf32, #tpu.memory_space<vmem>>, vector<8x128xf32>
    tpu.vector_store %arg13[%c32_70, %c0_71], %156 {strides = array<i32>} : memref<120x128xf32, #tpu.memory_space<vmem>>, vector<8x128xf32>,
    %c40 = arith.constant 40 : index
    %c0_72 = arith.constant 0 : index
    %158 = vector.load %arg12[%c40, %c0_72] : memref<120x512xf32, #tpu.memory_space<vmem>>, vector<8x512xf32>
    %c5 = arith.constant 5 : index
    %c0_73 = arith.constant 0 : index
    %c0_74 = arith.constant 0 : index
    %159 = vector.load %arg2[%c5, %c0_73, %c0_74] : memref<15x1x512xf32, #tpu.memory_space<vmem>>, vector<1x1x512xf32>
    %160 = vector.shape_cast %159 : vector<1x1x512xf32> to vector<1x512xf32>
    %161 = vector.broadcast %160 : vector<1x512xf32> to vector<8x512xf32>
    %162 = arith.mulf %158, %161 : vector<8x512xf32>
    %c5_75 = arith.constant 5 : index
    %c0_76 = arith.constant 0 : index
    %c0_77 = arith.constant 0 : index
    %163 = vector.load %arg5[%c5_75, %c0_76, %c0_77] : memref<15x1x512xf32, #tpu.memory_space<vmem>>, vector<1x1x512xf32>
    %164 = vector.shape_cast %163 : vector<1x1x512xf32> to vector<1x512xf32>
    %165 = vector.broadcast %164 : vector<1x512xf32> to vector<8x512xf32>
    %166 = arith.addf %162, %165 : vector<8x512xf32>
    %cst_78 = arith.constant dense<0.000000e+00> : vector<8x512xf32>
    %167 = tpu.matmul %156, %5, %cst_78 {dimension_numbers = #tpu.dot_dimension_numbers<[1], [0], [0], [1], [0, 0, 1, 1], [], []>} : vector<8x128xf32>, vector<128x512xf32>, vector<8x512xf32> -> vector<8x512xf32>
    %168 = arith.addf %166, %167 : vector<8x512xf32>
    %169 = vector.extract_strided_slice %168 {offsets = [0, 0], sizes = [8, 384], strides = [1, 1]} : vector<8x512xf32> to vector<8x384xf32>
    %cst_79 = arith.constant 0.000000e+00 : f32
    %170 = vector.broadcast %cst_79 : f32 to vector<8x384xf32>
    %171 = arith.subf %170, %169 : vector<8x384xf32>
    %172 = math.exp %171 : vector<8x384xf32>
    %cst_80 = arith.constant 1.000000e+00 : f32
    %173 = vector.broadcast %cst_80 : f32 to vector<8x384xf32>
    %174 = arith.addf %173, %172 : vector<8x384xf32>
    %cst_81 = arith.constant 1.000000e+00 : f32
    %175 = vector.broadcast %cst_81 : f32 to vector<8x384xf32>
    %176 = arith.divf %175, %174 : vector<8x384xf32>
    %177 = vector.extract_strided_slice %176 {offsets = [0, 0], sizes = [8, 128], strides = [1, 1]} : vector<8x384xf32> to vector<8x128xf32>
    %178 = vector.extract_strided_slice %176 {offsets = [0, 128], sizes = [8, 128], strides = [1, 1]} : vector<8x384xf32> to vector<8x128xf32>
    %179 = vector.extract_strided_slice %176 {offsets = [0, 256], sizes = [8, 128], strides = [1, 1]} : vector<8x384xf32> to vector<8x128xf32>
    %180 = vector.extract_strided_slice %168 {offsets = [0, 384], sizes = [8, 128], strides = [1, 1]} : vector<8x512xf32> to vector<8x128xf32>
    %181 = math.tanh %180 : vector<8x128xf32>
    %182 = arith.mulf %178, %154 : vector<8x128xf32>
    %183 = arith.mulf %177, %181 : vector<8x128xf32>
    %184 = arith.addf %182, %183 : vector<8x128xf32>
    %185 = math.tanh %184 : vector<8x128xf32>
    %186 = arith.mulf %179, %185 : vector<8x128xf32>
    %c40_82 = arith.constant 40 : index
    %c0_83 = arith.constant 0 : index
    %187 = vector.load %arg13[%c40_82, %c0_83] : memref<120x128xf32, #tpu.memory_space<vmem>>, vector<8x128xf32>
    tpu.vector_store %arg13[%c40_82, %c0_83], %186 {strides = array<i32>} : memref<120x128xf32, #tpu.memory_space<vmem>>, vector<8x128xf32>,
    %c48 = arith.constant 48 : index
    %c0_84 = arith.constant 0 : index
    %188 = vector.load %arg12[%c48, %c0_84] : memref<120x512xf32, #tpu.memory_space<vmem>>, vector<8x512xf32>
    %c6 = arith.constant 6 : index
    %c0_85 = arith.constant 0 : index
    %c0_86 = arith.constant 0 : index
    %189 = vector.load %arg2[%c6, %c0_85, %c0_86] : memref<15x1x512xf32, #tpu.memory_space<vmem>>, vector<1x1x512xf32>
    %190 = vector.shape_cast %189 : vector<1x1x512xf32> to vector<1x512xf32>
    %191 = vector.broadcast %190 : vector<1x512xf32> to vector<8x512xf32>
    %192 = arith.mulf %188, %191 : vector<8x512xf32>
    %c6_87 = arith.constant 6 : index
    %c0_88 = arith.constant 0 : index
    %c0_89 = arith.constant 0 : index
    %193 = vector.load %arg5[%c6_87, %c0_88, %c0_89] : memref<15x1x512xf32, #tpu.memory_space<vmem>>, vector<1x1x512xf32>
    %194 = vector.shape_cast %193 : vector<1x1x512xf32> to vector<1x512xf32>
    %195 = vector.broadcast %194 : vector<1x512xf32> to vector<8x512xf32>
    %196 = arith.addf %192, %195 : vector<8x512xf32>
    %cst_90 = arith.constant dense<0.000000e+00> : vector<8x512xf32>
    %197 = tpu.matmul %186, %5, %cst_90 {dimension_numbers = #tpu.dot_dimension_numbers<[1], [0], [0], [1], [0, 0, 1, 1], [], []>} : vector<8x128xf32>, vector<128x512xf32>, vector<8x512xf32> -> vector<8x512xf32>
    %198 = arith.addf %196, %197 : vector<8x512xf32>
    %199 = vector.extract_strided_slice %198 {offsets = [0, 0], sizes = [8, 384], strides = [1, 1]} : vector<8x512xf32> to vector<8x384xf32>
    %cst_91 = arith.constant 0.000000e+00 : f32
    %200 = vector.broadcast %cst_91 : f32 to vector<8x384xf32>
    %201 = arith.subf %200, %199 : vector<8x384xf32>
    %202 = math.exp %201 : vector<8x384xf32>
    %cst_92 = arith.constant 1.000000e+00 : f32
    %203 = vector.broadcast %cst_92 : f32 to vector<8x384xf32>
    %204 = arith.addf %203, %202 : vector<8x384xf32>
    %cst_93 = arith.constant 1.000000e+00 : f32
    %205 = vector.broadcast %cst_93 : f32 to vector<8x384xf32>
    %206 = arith.divf %205, %204 : vector<8x384xf32>
    %207 = vector.extract_strided_slice %206 {offsets = [0, 0], sizes = [8, 128], strides = [1, 1]} : vector<8x384xf32> to vector<8x128xf32>
    %208 = vector.extract_strided_slice %206 {offsets = [0, 128], sizes = [8, 128], strides = [1, 1]} : vector<8x384xf32> to vector<8x128xf32>
    %209 = vector.extract_strided_slice %206 {offsets = [0, 256], sizes = [8, 128], strides = [1, 1]} : vector<8x384xf32> to vector<8x128xf32>
    %210 = vector.extract_strided_slice %198 {offsets = [0, 384], sizes = [8, 128], strides = [1, 1]} : vector<8x512xf32> to vector<8x128xf32>
    %211 = math.tanh %210 : vector<8x128xf32>
    %212 = arith.mulf %208, %184 : vector<8x128xf32>
    %213 = arith.mulf %207, %211 : vector<8x128xf32>
    %214 = arith.addf %212, %213 : vector<8x128xf32>
    %215 = math.tanh %214 : vector<8x128xf32>
    %216 = arith.mulf %209, %215 : vector<8x128xf32>
    %c48_94 = arith.constant 48 : index
    %c0_95 = arith.constant 0 : index
    %217 = vector.load %arg13[%c48_94, %c0_95] : memref<120x128xf32, #tpu.memory_space<vmem>>, vector<8x128xf32>
    tpu.vector_store %arg13[%c48_94, %c0_95], %216 {strides = array<i32>} : memref<120x128xf32, #tpu.memory_space<vmem>>, vector<8x128xf32>,
    %c56 = arith.constant 56 : index
    %c0_96 = arith.constant 0 : index
    %218 = vector.load %arg12[%c56, %c0_96] : memref<120x512xf32, #tpu.memory_space<vmem>>, vector<8x512xf32>
    %c7 = arith.constant 7 : index
    %c0_97 = arith.constant 0 : index
    %c0_98 = arith.constant 0 : index
    %219 = vector.load %arg2[%c7, %c0_97, %c0_98] : memref<15x1x512xf32, #tpu.memory_space<vmem>>, vector<1x1x512xf32>
    %220 = vector.shape_cast %219 : vector<1x1x512xf32> to vector<1x512xf32>
    %221 = vector.broadcast %220 : vector<1x512xf32> to vector<8x512xf32>
    %222 = arith.mulf %218, %221 : vector<8x512xf32>
    %c7_99 = arith.constant 7 : index
    %c0_100 = arith.constant 0 : index
    %c0_101 = arith.constant 0 : index
    %223 = vector.load %arg5[%c7_99, %c0_100, %c0_101] : memref<15x1x512xf32, #tpu.memory_space<vmem>>, vector<1x1x512xf32>
    %224 = vector.shape_cast %223 : vector<1x1x512xf32> to vector<1x512xf32>
    %225 = vector.broadcast %224 : vector<1x512xf32> to vector<8x512xf32>
    %226 = arith.addf %222, %225 : vector<8x512xf32>
    %cst_102 = arith.constant dense<0.000000e+00> : vector<8x512xf32>
    %227 = tpu.matmul %216, %5, %cst_102 {dimension_numbers = #tpu.dot_dimension_numbers<[1], [0], [0], [1], [0, 0, 1, 1], [], []>} : vector<8x128xf32>, vector<128x512xf32>, vector<8x512xf32> -> vector<8x512xf32>
    %228 = arith.addf %226, %227 : vector<8x512xf32>
    %229 = vector.extract_strided_slice %228 {offsets = [0, 0], sizes = [8, 384], strides = [1, 1]} : vector<8x512xf32> to vector<8x384xf32>
    %cst_103 = arith.constant 0.000000e+00 : f32
    %230 = vector.broadcast %cst_103 : f32 to vector<8x384xf32>
    %231 = arith.subf %230, %229 : vector<8x384xf32>
    %232 = math.exp %231 : vector<8x384xf32>
    %cst_104 = arith.constant 1.000000e+00 : f32
    %233 = vector.broadcast %cst_104 : f32 to vector<8x384xf32>
    %234 = arith.addf %233, %232 : vector<8x384xf32>
    %cst_105 = arith.constant 1.000000e+00 : f32
    %235 = vector.broadcast %cst_105 : f32 to vector<8x384xf32>
    %236 = arith.divf %235, %234 : vector<8x384xf32>
    %237 = vector.extract_strided_slice %236 {offsets = [0, 0], sizes = [8, 128], strides = [1, 1]} : vector<8x384xf32> to vector<8x128xf32>
    %238 = vector.extract_strided_slice %236 {offsets = [0, 128], sizes = [8, 128], strides = [1, 1]} : vector<8x384xf32> to vector<8x128xf32>
    %239 = vector.extract_strided_slice %236 {offsets = [0, 256], sizes = [8, 128], strides = [1, 1]} : vector<8x384xf32> to vector<8x128xf32>
    %240 = vector.extract_strided_slice %228 {offsets = [0, 384], sizes = [8, 128], strides = [1, 1]} : vector<8x512xf32> to vector<8x128xf32>
    %241 = math.tanh %240 : vector<8x128xf32>
    %242 = arith.mulf %238, %214 : vector<8x128xf32>
    %243 = arith.mulf %237, %241 : vector<8x128xf32>
    %244 = arith.addf %242, %243 : vector<8x128xf32>
    %245 = math.tanh %244 : vector<8x128xf32>
    %246 = arith.mulf %239, %245 : vector<8x128xf32>
    %c56_106 = arith.constant 56 : index
    %c0_107 = arith.constant 0 : index
    %247 = vector.load %arg13[%c56_106, %c0_107] : memref<120x128xf32, #tpu.memory_space<vmem>>, vector<8x128xf32>
    tpu.vector_store %arg13[%c56_106, %c0_107], %246 {strides = array<i32>} : memref<120x128xf32, #tpu.memory_space<vmem>>, vector<8x128xf32>,
    %c64 = arith.constant 64 : index
    %c0_108 = arith.constant 0 : index
    %248 = vector.load %arg12[%c64, %c0_108] : memref<120x512xf32, #tpu.memory_space<vmem>>, vector<8x512xf32>
    %c8_109 = arith.constant 8 : index
    %c0_110 = arith.constant 0 : index
    %c0_111 = arith.constant 0 : index
    %249 = vector.load %arg2[%c8_109, %c0_110, %c0_111] : memref<15x1x512xf32, #tpu.memory_space<vmem>>, vector<1x1x512xf32>
    %250 = vector.shape_cast %249 : vector<1x1x512xf32> to vector<1x512xf32>
    %251 = vector.broadcast %250 : vector<1x512xf32> to vector<8x512xf32>
    %252 = arith.mulf %248, %251 : vector<8x512xf32>
    %c8_112 = arith.constant 8 : index
    %c0_113 = arith.constant 0 : index
    %c0_114 = arith.constant 0 : index
    %253 = vector.load %arg5[%c8_112, %c0_113, %c0_114] : memref<15x1x512xf32, #tpu.memory_space<vmem>>, vector<1x1x512xf32>
    %254 = vector.shape_cast %253 : vector<1x1x512xf32> to vector<1x512xf32>
    %255 = vector.broadcast %254 : vector<1x512xf32> to vector<8x512xf32>
    %256 = arith.addf %252, %255 : vector<8x512xf32>
    %cst_115 = arith.constant dense<0.000000e+00> : vector<8x512xf32>
    %257 = tpu.matmul %246, %5, %cst_115 {dimension_numbers = #tpu.dot_dimension_numbers<[1], [0], [0], [1], [0, 0, 1, 1], [], []>} : vector<8x128xf32>, vector<128x512xf32>, vector<8x512xf32> -> vector<8x512xf32>
    %258 = arith.addf %256, %257 : vector<8x512xf32>
    %259 = vector.extract_strided_slice %258 {offsets = [0, 0], sizes = [8, 384], strides = [1, 1]} : vector<8x512xf32> to vector<8x384xf32>
    %cst_116 = arith.constant 0.000000e+00 : f32
    %260 = vector.broadcast %cst_116 : f32 to vector<8x384xf32>
    %261 = arith.subf %260, %259 : vector<8x384xf32>
    %262 = math.exp %261 : vector<8x384xf32>
    %cst_117 = arith.constant 1.000000e+00 : f32
    %263 = vector.broadcast %cst_117 : f32 to vector<8x384xf32>
    %264 = arith.addf %263, %262 : vector<8x384xf32>
    %cst_118 = arith.constant 1.000000e+00 : f32
    %265 = vector.broadcast %cst_118 : f32 to vector<8x384xf32>
    %266 = arith.divf %265, %264 : vector<8x384xf32>
    %267 = vector.extract_strided_slice %266 {offsets = [0, 0], sizes = [8, 128], strides = [1, 1]} : vector<8x384xf32> to vector<8x128xf32>
    %268 = vector.extract_strided_slice %266 {offsets = [0, 128], sizes = [8, 128], strides = [1, 1]} : vector<8x384xf32> to vector<8x128xf32>
    %269 = vector.extract_strided_slice %266 {offsets = [0, 256], sizes = [8, 128], strides = [1, 1]} : vector<8x384xf32> to vector<8x128xf32>
    %270 = vector.extract_strided_slice %258 {offsets = [0, 384], sizes = [8, 128], strides = [1, 1]} : vector<8x512xf32> to vector<8x128xf32>
    %271 = math.tanh %270 : vector<8x128xf32>
    %272 = arith.mulf %268, %244 : vector<8x128xf32>
    %273 = arith.mulf %267, %271 : vector<8x128xf32>
    %274 = arith.addf %272, %273 : vector<8x128xf32>
    %275 = math.tanh %274 : vector<8x128xf32>
    %276 = arith.mulf %269, %275 : vector<8x128xf32>
    %c64_119 = arith.constant 64 : index
    %c0_120 = arith.constant 0 : index
    %277 = vector.load %arg13[%c64_119, %c0_120] : memref<120x128xf32, #tpu.memory_space<vmem>>, vector<8x128xf32>
    tpu.vector_store %arg13[%c64_119, %c0_120], %276 {strides = array<i32>} : memref<120x128xf32, #tpu.memory_space<vmem>>, vector<8x128xf32>,
    %c72 = arith.constant 72 : index
    %c0_121 = arith.constant 0 : index
    %278 = vector.load %arg12[%c72, %c0_121] : memref<120x512xf32, #tpu.memory_space<vmem>>, vector<8x512xf32>
    %c9 = arith.constant 9 : index
    %c0_122 = arith.constant 0 : index
    %c0_123 = arith.constant 0 : index
    %279 = vector.load %arg2[%c9, %c0_122, %c0_123] : memref<15x1x512xf32, #tpu.memory_space<vmem>>, vector<1x1x512xf32>
    %280 = vector.shape_cast %279 : vector<1x1x512xf32> to vector<1x512xf32>
    %281 = vector.broadcast %280 : vector<1x512xf32> to vector<8x512xf32>
    %282 = arith.mulf %278, %281 : vector<8x512xf32>
    %c9_124 = arith.constant 9 : index
    %c0_125 = arith.constant 0 : index
    %c0_126 = arith.constant 0 : index
    %283 = vector.load %arg5[%c9_124, %c0_125, %c0_126] : memref<15x1x512xf32, #tpu.memory_space<vmem>>, vector<1x1x512xf32>
    %284 = vector.shape_cast %283 : vector<1x1x512xf32> to vector<1x512xf32>
    %285 = vector.broadcast %284 : vector<1x512xf32> to vector<8x512xf32>
    %286 = arith.addf %282, %285 : vector<8x512xf32>
    %cst_127 = arith.constant dense<0.000000e+00> : vector<8x512xf32>
    %287 = tpu.matmul %276, %5, %cst_127 {dimension_numbers = #tpu.dot_dimension_numbers<[1], [0], [0], [1], [0, 0, 1, 1], [], []>} : vector<8x128xf32>, vector<128x512xf32>, vector<8x512xf32> -> vector<8x512xf32>
    %288 = arith.addf %286, %287 : vector<8x512xf32>
    %289 = vector.extract_strided_slice %288 {offsets = [0, 0], sizes = [8, 384], strides = [1, 1]} : vector<8x512xf32> to vector<8x384xf32>
    %cst_128 = arith.constant 0.000000e+00 : f32
    %290 = vector.broadcast %cst_128 : f32 to vector<8x384xf32>
    %291 = arith.subf %290, %289 : vector<8x384xf32>
    %292 = math.exp %291 : vector<8x384xf32>
    %cst_129 = arith.constant 1.000000e+00 : f32
    %293 = vector.broadcast %cst_129 : f32 to vector<8x384xf32>
    %294 = arith.addf %293, %292 : vector<8x384xf32>
    %cst_130 = arith.constant 1.000000e+00 : f32
    %295 = vector.broadcast %cst_130 : f32 to vector<8x384xf32>
    %296 = arith.divf %295, %294 : vector<8x384xf32>
    %297 = vector.extract_strided_slice %296 {offsets = [0, 0], sizes = [8, 128], strides = [1, 1]} : vector<8x384xf32> to vector<8x128xf32>
    %298 = vector.extract_strided_slice %296 {offsets = [0, 128], sizes = [8, 128], strides = [1, 1]} : vector<8x384xf32> to vector<8x128xf32>
    %299 = vector.extract_strided_slice %296 {offsets = [0, 256], sizes = [8, 128], strides = [1, 1]} : vector<8x384xf32> to vector<8x128xf32>
    %300 = vector.extract_strided_slice %288 {offsets = [0, 384], sizes = [8, 128], strides = [1, 1]} : vector<8x512xf32> to vector<8x128xf32>
    %301 = math.tanh %300 : vector<8x128xf32>
    %302 = arith.mulf %298, %274 : vector<8x128xf32>
    %303 = arith.mulf %297, %301 : vector<8x128xf32>
    %304 = arith.addf %302, %303 : vector<8x128xf32>
    %305 = math.tanh %304 : vector<8x128xf32>
    %306 = arith.mulf %299, %305 : vector<8x128xf32>
    %c72_131 = arith.constant 72 : index
    %c0_132 = arith.constant 0 : index
    %307 = vector.load %arg13[%c72_131, %c0_132] : memref<120x128xf32, #tpu.memory_space<vmem>>, vector<8x128xf32>
    tpu.vector_store %arg13[%c72_131, %c0_132], %306 {strides = array<i32>} : memref<120x128xf32, #tpu.memory_space<vmem>>, vector<8x128xf32>,
    %c80 = arith.constant 80 : index
    %c0_133 = arith.constant 0 : index
    %308 = vector.load %arg12[%c80, %c0_133] : memref<120x512xf32, #tpu.memory_space<vmem>>, vector<8x512xf32>
    %c10 = arith.constant 10 : index
    %c0_134 = arith.constant 0 : index
    %c0_135 = arith.constant 0 : index
    %309 = vector.load %arg2[%c10, %c0_134, %c0_135] : memref<15x1x512xf32, #tpu.memory_space<vmem>>, vector<1x1x512xf32>
    %310 = vector.shape_cast %309 : vector<1x1x512xf32> to vector<1x512xf32>
    %311 = vector.broadcast %310 : vector<1x512xf32> to vector<8x512xf32>
    %312 = arith.mulf %308, %311 : vector<8x512xf32>
    %c10_136 = arith.constant 10 : index
    %c0_137 = arith.constant 0 : index
    %c0_138 = arith.constant 0 : index
    %313 = vector.load %arg5[%c10_136, %c0_137, %c0_138] : memref<15x1x512xf32, #tpu.memory_space<vmem>>, vector<1x1x512xf32>
    %314 = vector.shape_cast %313 : vector<1x1x512xf32> to vector<1x512xf32>
    %315 = vector.broadcast %314 : vector<1x512xf32> to vector<8x512xf32>
    %316 = arith.addf %312, %315 : vector<8x512xf32>
    %cst_139 = arith.constant dense<0.000000e+00> : vector<8x512xf32>
    %317 = tpu.matmul %306, %5, %cst_139 {dimension_numbers = #tpu.dot_dimension_numbers<[1], [0], [0], [1], [0, 0, 1, 1], [], []>} : vector<8x128xf32>, vector<128x512xf32>, vector<8x512xf32> -> vector<8x512xf32>
    %318 = arith.addf %316, %317 : vector<8x512xf32>
    %319 = vector.extract_strided_slice %318 {offsets = [0, 0], sizes = [8, 384], strides = [1, 1]} : vector<8x512xf32> to vector<8x384xf32>
    %cst_140 = arith.constant 0.000000e+00 : f32
    %320 = vector.broadcast %cst_140 : f32 to vector<8x384xf32>
    %321 = arith.subf %320, %319 : vector<8x384xf32>
    %322 = math.exp %321 : vector<8x384xf32>
    %cst_141 = arith.constant 1.000000e+00 : f32
    %323 = vector.broadcast %cst_141 : f32 to vector<8x384xf32>
    %324 = arith.addf %323, %322 : vector<8x384xf32>
    %cst_142 = arith.constant 1.000000e+00 : f32
    %325 = vector.broadcast %cst_142 : f32 to vector<8x384xf32>
    %326 = arith.divf %325, %324 : vector<8x384xf32>
    %327 = vector.extract_strided_slice %326 {offsets = [0, 0], sizes = [8, 128], strides = [1, 1]} : vector<8x384xf32> to vector<8x128xf32>
    %328 = vector.extract_strided_slice %326 {offsets = [0, 128], sizes = [8, 128], strides = [1, 1]} : vector<8x384xf32> to vector<8x128xf32>
    %329 = vector.extract_strided_slice %326 {offsets = [0, 256], sizes = [8, 128], strides = [1, 1]} : vector<8x384xf32> to vector<8x128xf32>
    %330 = vector.extract_strided_slice %318 {offsets = [0, 384], sizes = [8, 128], strides = [1, 1]} : vector<8x512xf32> to vector<8x128xf32>
    %331 = math.tanh %330 : vector<8x128xf32>
    %332 = arith.mulf %328, %304 : vector<8x128xf32>
    %333 = arith.mulf %327, %331 : vector<8x128xf32>
    %334 = arith.addf %332, %333 : vector<8x128xf32>
    %335 = math.tanh %334 : vector<8x128xf32>
    %336 = arith.mulf %329, %335 : vector<8x128xf32>
    %c80_143 = arith.constant 80 : index
    %c0_144 = arith.constant 0 : index
    %337 = vector.load %arg13[%c80_143, %c0_144] : memref<120x128xf32, #tpu.memory_space<vmem>>, vector<8x128xf32>
    tpu.vector_store %arg13[%c80_143, %c0_144], %336 {strides = array<i32>} : memref<120x128xf32, #tpu.memory_space<vmem>>, vector<8x128xf32>,
    %c88 = arith.constant 88 : index
    %c0_145 = arith.constant 0 : index
    %338 = vector.load %arg12[%c88, %c0_145] : memref<120x512xf32, #tpu.memory_space<vmem>>, vector<8x512xf32>
    %c11 = arith.constant 11 : index
    %c0_146 = arith.constant 0 : index
    %c0_147 = arith.constant 0 : index
    %339 = vector.load %arg2[%c11, %c0_146, %c0_147] : memref<15x1x512xf32, #tpu.memory_space<vmem>>, vector<1x1x512xf32>
    %340 = vector.shape_cast %339 : vector<1x1x512xf32> to vector<1x512xf32>
    %341 = vector.broadcast %340 : vector<1x512xf32> to vector<8x512xf32>
    %342 = arith.mulf %338, %341 : vector<8x512xf32>
    %c11_148 = arith.constant 11 : index
    %c0_149 = arith.constant 0 : index
    %c0_150 = arith.constant 0 : index
    %343 = vector.load %arg5[%c11_148, %c0_149, %c0_150] : memref<15x1x512xf32, #tpu.memory_space<vmem>>, vector<1x1x512xf32>
    %344 = vector.shape_cast %343 : vector<1x1x512xf32> to vector<1x512xf32>
    %345 = vector.broadcast %344 : vector<1x512xf32> to vector<8x512xf32>
    %346 = arith.addf %342, %345 : vector<8x512xf32>
    %cst_151 = arith.constant dense<0.000000e+00> : vector<8x512xf32>
    %347 = tpu.matmul %336, %5, %cst_151 {dimension_numbers = #tpu.dot_dimension_numbers<[1], [0], [0], [1], [0, 0, 1, 1], [], []>} : vector<8x128xf32>, vector<128x512xf32>, vector<8x512xf32> -> vector<8x512xf32>
    %348 = arith.addf %346, %347 : vector<8x512xf32>
    %349 = vector.extract_strided_slice %348 {offsets = [0, 0], sizes = [8, 384], strides = [1, 1]} : vector<8x512xf32> to vector<8x384xf32>
    %cst_152 = arith.constant 0.000000e+00 : f32
    %350 = vector.broadcast %cst_152 : f32 to vector<8x384xf32>
    %351 = arith.subf %350, %349 : vector<8x384xf32>
    %352 = math.exp %351 : vector<8x384xf32>
    %cst_153 = arith.constant 1.000000e+00 : f32
    %353 = vector.broadcast %cst_153 : f32 to vector<8x384xf32>
    %354 = arith.addf %353, %352 : vector<8x384xf32>
    %cst_154 = arith.constant 1.000000e+00 : f32
    %355 = vector.broadcast %cst_154 : f32 to vector<8x384xf32>
    %356 = arith.divf %355, %354 : vector<8x384xf32>
    %357 = vector.extract_strided_slice %356 {offsets = [0, 0], sizes = [8, 128], strides = [1, 1]} : vector<8x384xf32> to vector<8x128xf32>
    %358 = vector.extract_strided_slice %356 {offsets = [0, 128], sizes = [8, 128], strides = [1, 1]} : vector<8x384xf32> to vector<8x128xf32>
    %359 = vector.extract_strided_slice %356 {offsets = [0, 256], sizes = [8, 128], strides = [1, 1]} : vector<8x384xf32> to vector<8x128xf32>
    %360 = vector.extract_strided_slice %348 {offsets = [0, 384], sizes = [8, 128], strides = [1, 1]} : vector<8x512xf32> to vector<8x128xf32>
    %361 = math.tanh %360 : vector<8x128xf32>
    %362 = arith.mulf %358, %334 : vector<8x128xf32>
    %363 = arith.mulf %357, %361 : vector<8x128xf32>
    %364 = arith.addf %362, %363 : vector<8x128xf32>
    %365 = math.tanh %364 : vector<8x128xf32>
    %366 = arith.mulf %359, %365 : vector<8x128xf32>
    %c88_155 = arith.constant 88 : index
    %c0_156 = arith.constant 0 : index
    %367 = vector.load %arg13[%c88_155, %c0_156] : memref<120x128xf32, #tpu.memory_space<vmem>>, vector<8x128xf32>
    tpu.vector_store %arg13[%c88_155, %c0_156], %366 {strides = array<i32>} : memref<120x128xf32, #tpu.memory_space<vmem>>, vector<8x128xf32>,
    %c96 = arith.constant 96 : index
    %c0_157 = arith.constant 0 : index
    %368 = vector.load %arg12[%c96, %c0_157] : memref<120x512xf32, #tpu.memory_space<vmem>>, vector<8x512xf32>
    %c12 = arith.constant 12 : index
    %c0_158 = arith.constant 0 : index
    %c0_159 = arith.constant 0 : index
    %369 = vector.load %arg2[%c12, %c0_158, %c0_159] : memref<15x1x512xf32, #tpu.memory_space<vmem>>, vector<1x1x512xf32>
    %370 = vector.shape_cast %369 : vector<1x1x512xf32> to vector<1x512xf32>
    %371 = vector.broadcast %370 : vector<1x512xf32> to vector<8x512xf32>
    %372 = arith.mulf %368, %371 : vector<8x512xf32>
    %c12_160 = arith.constant 12 : index
    %c0_161 = arith.constant 0 : index
    %c0_162 = arith.constant 0 : index
    %373 = vector.load %arg5[%c12_160, %c0_161, %c0_162] : memref<15x1x512xf32, #tpu.memory_space<vmem>>, vector<1x1x512xf32>
    %374 = vector.shape_cast %373 : vector<1x1x512xf32> to vector<1x512xf32>
    %375 = vector.broadcast %374 : vector<1x512xf32> to vector<8x512xf32>
    %376 = arith.addf %372, %375 : vector<8x512xf32>
    %cst_163 = arith.constant dense<0.000000e+00> : vector<8x512xf32>
    %377 = tpu.matmul %366, %5, %cst_163 {dimension_numbers = #tpu.dot_dimension_numbers<[1], [0], [0], [1], [0, 0, 1, 1], [], []>} : vector<8x128xf32>, vector<128x512xf32>, vector<8x512xf32> -> vector<8x512xf32>
    %378 = arith.addf %376, %377 : vector<8x512xf32>
    %379 = vector.extract_strided_slice %378 {offsets = [0, 0], sizes = [8, 384], strides = [1, 1]} : vector<8x512xf32> to vector<8x384xf32>
    %cst_164 = arith.constant 0.000000e+00 : f32
    %380 = vector.broadcast %cst_164 : f32 to vector<8x384xf32>
    %381 = arith.subf %380, %379 : vector<8x384xf32>
    %382 = math.exp %381 : vector<8x384xf32>
    %cst_165 = arith.constant 1.000000e+00 : f32
    %383 = vector.broadcast %cst_165 : f32 to vector<8x384xf32>
    %384 = arith.addf %383, %382 : vector<8x384xf32>
    %cst_166 = arith.constant 1.000000e+00 : f32
    %385 = vector.broadcast %cst_166 : f32 to vector<8x384xf32>
    %386 = arith.divf %385, %384 : vector<8x384xf32>
    %387 = vector.extract_strided_slice %386 {offsets = [0, 0], sizes = [8, 128], strides = [1, 1]} : vector<8x384xf32> to vector<8x128xf32>
    %388 = vector.extract_strided_slice %386 {offsets = [0, 128], sizes = [8, 128], strides = [1, 1]} : vector<8x384xf32> to vector<8x128xf32>
    %389 = vector.extract_strided_slice %386 {offsets = [0, 256], sizes = [8, 128], strides = [1, 1]} : vector<8x384xf32> to vector<8x128xf32>
    %390 = vector.extract_strided_slice %378 {offsets = [0, 384], sizes = [8, 128], strides = [1, 1]} : vector<8x512xf32> to vector<8x128xf32>
    %391 = math.tanh %390 : vector<8x128xf32>
    %392 = arith.mulf %388, %364 : vector<8x128xf32>
    %393 = arith.mulf %387, %391 : vector<8x128xf32>
    %394 = arith.addf %392, %393 : vector<8x128xf32>
    %395 = math.tanh %394 : vector<8x128xf32>
    %396 = arith.mulf %389, %395 : vector<8x128xf32>
    %c96_167 = arith.constant 96 : index
    %c0_168 = arith.constant 0 : index
    %397 = vector.load %arg13[%c96_167, %c0_168] : memref<120x128xf32, #tpu.memory_space<vmem>>, vector<8x128xf32>
    tpu.vector_store %arg13[%c96_167, %c0_168], %396 {strides = array<i32>} : memref<120x128xf32, #tpu.memory_space<vmem>>, vector<8x128xf32>,
    %c104 = arith.constant 104 : index
    %c0_169 = arith.constant 0 : index
    %398 = vector.load %arg12[%c104, %c0_169] : memref<120x512xf32, #tpu.memory_space<vmem>>, vector<8x512xf32>
    %c13 = arith.constant 13 : index
    %c0_170 = arith.constant 0 : index
    %c0_171 = arith.constant 0 : index
    %399 = vector.load %arg2[%c13, %c0_170, %c0_171] : memref<15x1x512xf32, #tpu.memory_space<vmem>>, vector<1x1x512xf32>
    %400 = vector.shape_cast %399 : vector<1x1x512xf32> to vector<1x512xf32>
    %401 = vector.broadcast %400 : vector<1x512xf32> to vector<8x512xf32>
    %402 = arith.mulf %398, %401 : vector<8x512xf32>
    %c13_172 = arith.constant 13 : index
    %c0_173 = arith.constant 0 : index
    %c0_174 = arith.constant 0 : index
    %403 = vector.load %arg5[%c13_172, %c0_173, %c0_174] : memref<15x1x512xf32, #tpu.memory_space<vmem>>, vector<1x1x512xf32>
    %404 = vector.shape_cast %403 : vector<1x1x512xf32> to vector<1x512xf32>
    %405 = vector.broadcast %404 : vector<1x512xf32> to vector<8x512xf32>
    %406 = arith.addf %402, %405 : vector<8x512xf32>
    %cst_175 = arith.constant dense<0.000000e+00> : vector<8x512xf32>
    %407 = tpu.matmul %396, %5, %cst_175 {dimension_numbers = #tpu.dot_dimension_numbers<[1], [0], [0], [1], [0, 0, 1, 1], [], []>} : vector<8x128xf32>, vector<128x512xf32>, vector<8x512xf32> -> vector<8x512xf32>
    %408 = arith.addf %406, %407 : vector<8x512xf32>
    %409 = vector.extract_strided_slice %408 {offsets = [0, 0], sizes = [8, 384], strides = [1, 1]} : vector<8x512xf32> to vector<8x384xf32>
    %cst_176 = arith.constant 0.000000e+00 : f32
    %410 = vector.broadcast %cst_176 : f32 to vector<8x384xf32>
    %411 = arith.subf %410, %409 : vector<8x384xf32>
    %412 = math.exp %411 : vector<8x384xf32>
    %cst_177 = arith.constant 1.000000e+00 : f32
    %413 = vector.broadcast %cst_177 : f32 to vector<8x384xf32>
    %414 = arith.addf %413, %412 : vector<8x384xf32>
    %cst_178 = arith.constant 1.000000e+00 : f32
    %415 = vector.broadcast %cst_178 : f32 to vector<8x384xf32>
    %416 = arith.divf %415, %414 : vector<8x384xf32>
    %417 = vector.extract_strided_slice %416 {offsets = [0, 0], sizes = [8, 128], strides = [1, 1]} : vector<8x384xf32> to vector<8x128xf32>
    %418 = vector.extract_strided_slice %416 {offsets = [0, 128], sizes = [8, 128], strides = [1, 1]} : vector<8x384xf32> to vector<8x128xf32>
    %419 = vector.extract_strided_slice %416 {offsets = [0, 256], sizes = [8, 128], strides = [1, 1]} : vector<8x384xf32> to vector<8x128xf32>
    %420 = vector.extract_strided_slice %408 {offsets = [0, 384], sizes = [8, 128], strides = [1, 1]} : vector<8x512xf32> to vector<8x128xf32>
    %421 = math.tanh %420 : vector<8x128xf32>
    %422 = arith.mulf %418, %394 : vector<8x128xf32>
    %423 = arith.mulf %417, %421 : vector<8x128xf32>
    %424 = arith.addf %422, %423 : vector<8x128xf32>
    %425 = math.tanh %424 : vector<8x128xf32>
    %426 = arith.mulf %419, %425 : vector<8x128xf32>
    %c104_179 = arith.constant 104 : index
    %c0_180 = arith.constant 0 : index
    %427 = vector.load %arg13[%c104_179, %c0_180] : memref<120x128xf32, #tpu.memory_space<vmem>>, vector<8x128xf32>
    tpu.vector_store %arg13[%c104_179, %c0_180], %426 {strides = array<i32>} : memref<120x128xf32, #tpu.memory_space<vmem>>, vector<8x128xf32>,
    %c112 = arith.constant 112 : index
    %c0_181 = arith.constant 0 : index
    %428 = vector.load %arg12[%c112, %c0_181] : memref<120x512xf32, #tpu.memory_space<vmem>>, vector<8x512xf32>
    %c14 = arith.constant 14 : index
    %c0_182 = arith.constant 0 : index
    %c0_183 = arith.constant 0 : index
    %429 = vector.load %arg2[%c14, %c0_182, %c0_183] : memref<15x1x512xf32, #tpu.memory_space<vmem>>, vector<1x1x512xf32>
    %430 = vector.shape_cast %429 : vector<1x1x512xf32> to vector<1x512xf32>
    %431 = vector.broadcast %430 : vector<1x512xf32> to vector<8x512xf32>
    %432 = arith.mulf %428, %431 : vector<8x512xf32>
    %c14_184 = arith.constant 14 : index
    %c0_185 = arith.constant 0 : index
    %c0_186 = arith.constant 0 : index
    %433 = vector.load %arg5[%c14_184, %c0_185, %c0_186] : memref<15x1x512xf32, #tpu.memory_space<vmem>>, vector<1x1x512xf32>
    %434 = vector.shape_cast %433 : vector<1x1x512xf32> to vector<1x512xf32>
    %435 = vector.broadcast %434 : vector<1x512xf32> to vector<8x512xf32>
    %436 = arith.addf %432, %435 : vector<8x512xf32>
    %cst_187 = arith.constant dense<0.000000e+00> : vector<8x512xf32>
    %437 = tpu.matmul %426, %5, %cst_187 {dimension_numbers = #tpu.dot_dimension_numbers<[1], [0], [0], [1], [0, 0, 1, 1], [], []>} : vector<8x128xf32>, vector<128x512xf32>, vector<8x512xf32> -> vector<8x512xf32>
    %438 = arith.addf %436, %437 : vector<8x512xf32>
    %439 = vector.extract_strided_slice %438 {offsets = [0, 0], sizes = [8, 384], strides = [1, 1]} : vector<8x512xf32> to vector<8x384xf32>
    %cst_188 = arith.constant 0.000000e+00 : f32
    %440 = vector.broadcast %cst_188 : f32 to vector<8x384xf32>
    %441 = arith.subf %440, %439 : vector<8x384xf32>
    %442 = math.exp %441 : vector<8x384xf32>
    %cst_189 = arith.constant 1.000000e+00 : f32
    %443 = vector.broadcast %cst_189 : f32 to vector<8x384xf32>
    %444 = arith.addf %443, %442 : vector<8x384xf32>
    %cst_190 = arith.constant 1.000000e+00 : f32
    %445 = vector.broadcast %cst_190 : f32 to vector<8x384xf32>
    %446 = arith.divf %445, %444 : vector<8x384xf32>
    %447 = vector.extract_strided_slice %446 {offsets = [0, 0], sizes = [8, 128], strides = [1, 1]} : vector<8x384xf32> to vector<8x128xf32>
    %448 = vector.extract_strided_slice %446 {offsets = [0, 128], sizes = [8, 128], strides = [1, 1]} : vector<8x384xf32> to vector<8x128xf32>
    %449 = vector.extract_strided_slice %446 {offsets = [0, 256], sizes = [8, 128], strides = [1, 1]} : vector<8x384xf32> to vector<8x128xf32>
    %450 = vector.extract_strided_slice %438 {offsets = [0, 384], sizes = [8, 128], strides = [1, 1]} : vector<8x512xf32> to vector<8x128xf32>
    %451 = math.tanh %450 : vector<8x128xf32>
    %452 = arith.mulf %448, %424 : vector<8x128xf32>
    %453 = arith.mulf %447, %451 : vector<8x128xf32>
    %454 = arith.addf %452, %453 : vector<8x128xf32>
    %455 = math.tanh %454 : vector<8x128xf32>
    %456 = arith.mulf %449, %455 : vector<8x128xf32>
    %c112_191 = arith.constant 112 : index
    %c0_192 = arith.constant 0 : index
    %457 = vector.load %arg13[%c112_191, %c0_192] : memref<120x128xf32, #tpu.memory_space<vmem>>, vector<8x128xf32>
    tpu.vector_store %arg13[%c112_191, %c0_192], %456 {strides = array<i32>} : memref<120x128xf32, #tpu.memory_space<vmem>>, vector<8x128xf32>,
    %c0_193 = arith.constant 0 : index
    %c0_194 = arith.constant 0 : index
    %c0_195 = arith.constant 0 : index
    %458 = vector.load %arg6[%c0_193, %c0_194, %c0_195] : memref<3x1x32xf32, #tpu.memory_space<vmem>>, vector<1x1x32xf32>
    %459 = vector.shape_cast %458 : vector<1x1x32xf32> to vector<1x32xf32>
    %c0_196 = arith.constant 0 : index
    %c0_197 = arith.constant 0 : index
    %c0_198 = arith.constant 0 : index
    %460 = vector.load %arg7[%c0_196, %c0_197, %c0_198] : memref<3x1x1xf32, #tpu.memory_space<vmem>>, vector<1x1x1xf32>
    %461 = vector.shape_cast %460 : vector<1x1x1xf32> to vector<1x1xf32>
    %c80_199 = arith.constant 80 : index
    %c0_200 = arith.constant 0 : index
    %462 = vector.load %arg13[%c80_199, %c0_200] : memref<120x128xf32, #tpu.memory_space<vmem>>, vector<8x32xf32>
    %c88_201 = arith.constant 88 : index
    %c0_202 = arith.constant 0 : index
    %463 = vector.load %arg13[%c88_201, %c0_202] : memref<120x128xf32, #tpu.memory_space<vmem>>, vector<8x32xf32>
    %c96_203 = arith.constant 96 : index
    %c0_204 = arith.constant 0 : index
    %464 = vector.load %arg13[%c96_203, %c0_204] : memref<120x128xf32, #tpu.memory_space<vmem>>, vector<8x32xf32>
    %c104_205 = arith.constant 104 : index
    %c0_206 = arith.constant 0 : index
    %465 = vector.load %arg13[%c104_205, %c0_206] : memref<120x128xf32, #tpu.memory_space<vmem>>, vector<8x32xf32>
    %c112_207 = arith.constant 112 : index
    %c0_208 = arith.constant 0 : index
    %466 = vector.load %arg13[%c112_207, %c0_208] : memref<120x128xf32, #tpu.memory_space<vmem>>, vector<8x32xf32>
    %467 = vector.broadcast %459 : vector<1x32xf32> to vector<8x32xf32>
    %468 = arith.mulf %462, %467 : vector<8x32xf32>
    %cst_209 = arith.constant dense<0.000000e+00> : vector<8xf32>
    %469 = vector.multi_reduction <add>, %468, %cst_209 [1] : vector<8x32xf32> to vector<8xf32>
    %470 = vector.shape_cast %469 : vector<8xf32> to vector<8x1xf32>
    %471 = vector.broadcast %459 : vector<1x32xf32> to vector<8x32xf32>
    %472 = arith.mulf %463, %471 : vector<8x32xf32>
    %cst_210 = arith.constant dense<0.000000e+00> : vector<8xf32>
    %473 = vector.multi_reduction <add>, %472, %cst_210 [1] : vector<8x32xf32> to vector<8xf32>
    %474 = vector.shape_cast %473 : vector<8xf32> to vector<8x1xf32>
    %475 = vector.broadcast %459 : vector<1x32xf32> to vector<8x32xf32>
    %476 = arith.mulf %464, %475 : vector<8x32xf32>
    %cst_211 = arith.constant dense<0.000000e+00> : vector<8xf32>
    %477 = vector.multi_reduction <add>, %476, %cst_211 [1] : vector<8x32xf32> to vector<8xf32>
    %478 = vector.shape_cast %477 : vector<8xf32> to vector<8x1xf32>
    %479 = vector.broadcast %459 : vector<1x32xf32> to vector<8x32xf32>
    %480 = arith.mulf %465, %479 : vector<8x32xf32>
    %cst_212 = arith.constant dense<0.000000e+00> : vector<8xf32>
    %481 = vector.multi_reduction <add>, %480, %cst_212 [1] : vector<8x32xf32> to vector<8xf32>
    %482 = vector.shape_cast %481 : vector<8xf32> to vector<8x1xf32>
    %483 = vector.broadcast %459 : vector<1x32xf32> to vector<8x32xf32>
    %484 = arith.mulf %466, %483 : vector<8x32xf32>
    %cst_213 = arith.constant dense<0.000000e+00> : vector<8xf32>
    %485 = vector.multi_reduction <add>, %484, %cst_213 [1] : vector<8x32xf32> to vector<8xf32>
    %486 = vector.shape_cast %485 : vector<8xf32> to vector<8x1xf32>
    %487 = tpu.concatenate %470, %474, %478, %482, %486 in 1 : vector<8x1xf32>, vector<8x1xf32>, vector<8x1xf32>, vector<8x1xf32>, vector<8x1xf32> -> vector<8x5xf32>
    %488 = vector.broadcast %461 : vector<1x1xf32> to vector<8x5xf32>
    %489 = arith.addf %487, %488 : vector<8x5xf32>
    %cst_214 = arith.constant dense<0xFF800000> : vector<8xf32>
    %490 = vector.multi_reduction <maximumf>, %489, %cst_214 [1] : vector<8x5xf32> to vector<8xf32>
    %491 = vector.shape_cast %490 : vector<8xf32> to vector<8x1xf32>
    %492 = vector.broadcast %491 : vector<8x1xf32> to vector<8x5xf32>
    %493 = arith.subf %489, %492 : vector<8x5xf32>
    %494 = math.exp %493 : vector<8x5xf32>
    %cst_215 = arith.constant dense<0.000000e+00> : vector<8xf32>
    %495 = vector.multi_reduction <add>, %494, %cst_215 [1] : vector<8x5xf32> to vector<8xf32>
    %496 = vector.shape_cast %495 : vector<8xf32> to vector<8x1xf32>
    %497 = tpu.reciprocal %496 {approx = true} : vector<8x1xf32> -> vector<8x1xf32>
    %498 = vector.broadcast %497 : vector<8x1xf32> to vector<8x5xf32>
    %499 = arith.mulf %494, %498 : vector<8x5xf32>
    %500 = vector.extract_strided_slice %499 {offsets = [0, 0], sizes = [8, 1], strides = [1, 1]} : vector<8x5xf32> to vector<8x1xf32>
    %501 = vector.broadcast %500 : vector<8x1xf32> to vector<8x32xf32>
    %502 = arith.mulf %501, %462 : vector<8x32xf32>
    %503 = vector.extract_strided_slice %499 {offsets = [0, 1], sizes = [8, 1], strides = [1, 1]} : vector<8x5xf32> to vector<8x1xf32>
    %504 = vector.broadcast %503 : vector<8x1xf32> to vector<8x32xf32>
    %505 = arith.mulf %504, %463 : vector<8x32xf32>
    %506 = arith.addf %502, %505 : vector<8x32xf32>
    %507 = vector.extract_strided_slice %499 {offsets = [0, 2], sizes = [8, 1], strides = [1, 1]} : vector<8x5xf32> to vector<8x1xf32>
    %508 = vector.broadcast %507 : vector<8x1xf32> to vector<8x32xf32>
    %509 = arith.mulf %508, %464 : vector<8x32xf32>
    %510 = arith.addf %506, %509 : vector<8x32xf32>
    %511 = vector.extract_strided_slice %499 {offsets = [0, 3], sizes = [8, 1], strides = [1, 1]} : vector<8x5xf32> to vector<8x1xf32>
    %512 = vector.broadcast %511 : vector<8x1xf32> to vector<8x32xf32>
    %513 = arith.mulf %512, %465 : vector<8x32xf32>
    %514 = arith.addf %510, %513 : vector<8x32xf32>
    %515 = vector.extract_strided_slice %499 {offsets = [0, 4], sizes = [8, 1], strides = [1, 1]} : vector<8x5xf32> to vector<8x1xf32>
    %516 = vector.broadcast %515 : vector<8x1xf32> to vector<8x32xf32>
    %517 = arith.mulf %516, %466 : vector<8x32xf32>
    %518 = arith.addf %514, %517 : vector<8x32xf32>
    %c0_216 = arith.constant 0 : index
    %c0_217 = arith.constant 0 : index
    %c0_218 = arith.constant 0 : index
    %519 = vector.load %arg8[%c0_216, %c0_217, %c0_218] : memref<3x1x32xf32, #tpu.memory_space<vmem>>, vector<1x1x32xf32>
    %520 = vector.shape_cast %519 : vector<1x1x32xf32> to vector<1x32xf32>
    %c0_219 = arith.constant 0 : index
    %c0_220 = arith.constant 0 : index
    %c0_221 = arith.constant 0 : index
    %521 = vector.load %arg9[%c0_219, %c0_220, %c0_221] : memref<3x1x1xf32, #tpu.memory_space<vmem>>, vector<1x1x1xf32>
    %522 = vector.shape_cast %521 : vector<1x1x1xf32> to vector<1x1xf32>
    %523 = vector.broadcast %520 : vector<1x32xf32> to vector<8x32xf32>
    %524 = arith.mulf %518, %523 : vector<8x32xf32>
    %cst_222 = arith.constant dense<0.000000e+00> : vector<8xf32>
    %525 = vector.multi_reduction <add>, %524, %cst_222 [1] : vector<8x32xf32> to vector<8xf32>
    %526 = vector.shape_cast %525 : vector<8xf32> to vector<8x1xf32>
    %527 = vector.broadcast %522 : vector<1x1xf32> to vector<8x1xf32>
    %528 = arith.addf %526, %527 : vector<8x1xf32>
    %c1_223 = arith.constant 1 : index
    %c0_224 = arith.constant 0 : index
    %c0_225 = arith.constant 0 : index
    %529 = vector.load %arg6[%c1_223, %c0_224, %c0_225] : memref<3x1x32xf32, #tpu.memory_space<vmem>>, vector<1x1x32xf32>
    %530 = vector.shape_cast %529 : vector<1x1x32xf32> to vector<1x32xf32>
    %c1_226 = arith.constant 1 : index
    %c0_227 = arith.constant 0 : index
    %c0_228 = arith.constant 0 : index
    %531 = vector.load %arg7[%c1_226, %c0_227, %c0_228] : memref<3x1x1xf32, #tpu.memory_space<vmem>>, vector<1x1x1xf32>
    %532 = vector.shape_cast %531 : vector<1x1x1xf32> to vector<1x1xf32>
    %c40_229 = arith.constant 40 : index
    %c32_230 = arith.constant 32 : index
    %533 = vector.load %arg13[%c40_229, %c32_230] : memref<120x128xf32, #tpu.memory_space<vmem>>, vector<8x32xf32>
    %c48_231 = arith.constant 48 : index
    %c32_232 = arith.constant 32 : index
    %534 = vector.load %arg13[%c48_231, %c32_232] : memref<120x128xf32, #tpu.memory_space<vmem>>, vector<8x32xf32>
    %c56_233 = arith.constant 56 : index
    %c32_234 = arith.constant 32 : index
    %535 = vector.load %arg13[%c56_233, %c32_234] : memref<120x128xf32, #tpu.memory_space<vmem>>, vector<8x32xf32>
    %c64_235 = arith.constant 64 : index
    %c32_236 = arith.constant 32 : index
    %536 = vector.load %arg13[%c64_235, %c32_236] : memref<120x128xf32, #tpu.memory_space<vmem>>, vector<8x32xf32>
    %c72_237 = arith.constant 72 : index
    %c32_238 = arith.constant 32 : index
    %537 = vector.load %arg13[%c72_237, %c32_238] : memref<120x128xf32, #tpu.memory_space<vmem>>, vector<8x32xf32>
    %c80_239 = arith.constant 80 : index
    %c32_240 = arith.constant 32 : index
    %538 = vector.load %arg13[%c80_239, %c32_240] : memref<120x128xf32, #tpu.memory_space<vmem>>, vector<8x32xf32>
    %c88_241 = arith.constant 88 : index
    %c32_242 = arith.constant 32 : index
    %539 = vector.load %arg13[%c88_241, %c32_242] : memref<120x128xf32, #tpu.memory_space<vmem>>, vector<8x32xf32>
    %c96_243 = arith.constant 96 : index
    %c32_244 = arith.constant 32 : index
    %540 = vector.load %arg13[%c96_243, %c32_244] : memref<120x128xf32, #tpu.memory_space<vmem>>, vector<8x32xf32>
    %c104_245 = arith.constant 104 : index
    %c32_246 = arith.constant 32 : index
    %541 = vector.load %arg13[%c104_245, %c32_246] : memref<120x128xf32, #tpu.memory_space<vmem>>, vector<8x32xf32>
    %c112_247 = arith.constant 112 : index
    %c32_248 = arith.constant 32 : index
    %542 = vector.load %arg13[%c112_247, %c32_248] : memref<120x128xf32, #tpu.memory_space<vmem>>, vector<8x32xf32>
    %543 = vector.broadcast %530 : vector<1x32xf32> to vector<8x32xf32>
    %544 = arith.mulf %533, %543 : vector<8x32xf32>
    %cst_249 = arith.constant dense<0.000000e+00> : vector<8xf32>
    %545 = vector.multi_reduction <add>, %544, %cst_249 [1] : vector<8x32xf32> to vector<8xf32>
    %546 = vector.shape_cast %545 : vector<8xf32> to vector<8x1xf32>
    %547 = vector.broadcast %530 : vector<1x32xf32> to vector<8x32xf32>
    %548 = arith.mulf %534, %547 : vector<8x32xf32>
    %cst_250 = arith.constant dense<0.000000e+00> : vector<8xf32>
    %549 = vector.multi_reduction <add>, %548, %cst_250 [1] : vector<8x32xf32> to vector<8xf32>
    %550 = vector.shape_cast %549 : vector<8xf32> to vector<8x1xf32>
    %551 = vector.broadcast %530 : vector<1x32xf32> to vector<8x32xf32>
    %552 = arith.mulf %535, %551 : vector<8x32xf32>
    %cst_251 = arith.constant dense<0.000000e+00> : vector<8xf32>
    %553 = vector.multi_reduction <add>, %552, %cst_251 [1] : vector<8x32xf32> to vector<8xf32>
    %554 = vector.shape_cast %553 : vector<8xf32> to vector<8x1xf32>
    %555 = vector.broadcast %530 : vector<1x32xf32> to vector<8x32xf32>
    %556 = arith.mulf %536, %555 : vector<8x32xf32>
    %cst_252 = arith.constant dense<0.000000e+00> : vector<8xf32>
    %557 = vector.multi_reduction <add>, %556, %cst_252 [1] : vector<8x32xf32> to vector<8xf32>
    %558 = vector.shape_cast %557 : vector<8xf32> to vector<8x1xf32>
    %559 = vector.broadcast %530 : vector<1x32xf32> to vector<8x32xf32>
    %560 = arith.mulf %537, %559 : vector<8x32xf32>
    %cst_253 = arith.constant dense<0.000000e+00> : vector<8xf32>
    %561 = vector.multi_reduction <add>, %560, %cst_253 [1] : vector<8x32xf32> to vector<8xf32>
    %562 = vector.shape_cast %561 : vector<8xf32> to vector<8x1xf32>
    %563 = vector.broadcast %530 : vector<1x32xf32> to vector<8x32xf32>
    %564 = arith.mulf %538, %563 : vector<8x32xf32>
    %cst_254 = arith.constant dense<0.000000e+00> : vector<8xf32>
    %565 = vector.multi_reduction <add>, %564, %cst_254 [1] : vector<8x32xf32> to vector<8xf32>
    %566 = vector.shape_cast %565 : vector<8xf32> to vector<8x1xf32>
    %567 = vector.broadcast %530 : vector<1x32xf32> to vector<8x32xf32>
    %568 = arith.mulf %539, %567 : vector<8x32xf32>
    %cst_255 = arith.constant dense<0.000000e+00> : vector<8xf32>
    %569 = vector.multi_reduction <add>, %568, %cst_255 [1] : vector<8x32xf32> to vector<8xf32>
    %570 = vector.shape_cast %569 : vector<8xf32> to vector<8x1xf32>
    %571 = vector.broadcast %530 : vector<1x32xf32> to vector<8x32xf32>
    %572 = arith.mulf %540, %571 : vector<8x32xf32>
    %cst_256 = arith.constant dense<0.000000e+00> : vector<8xf32>
    %573 = vector.multi_reduction <add>, %572, %cst_256 [1] : vector<8x32xf32> to vector<8xf32>
    %574 = vector.shape_cast %573 : vector<8xf32> to vector<8x1xf32>
    %575 = vector.broadcast %530 : vector<1x32xf32> to vector<8x32xf32>
    %576 = arith.mulf %541, %575 : vector<8x32xf32>
    %cst_257 = arith.constant dense<0.000000e+00> : vector<8xf32>
    %577 = vector.multi_reduction <add>, %576, %cst_257 [1] : vector<8x32xf32> to vector<8xf32>
    %578 = vector.shape_cast %577 : vector<8xf32> to vector<8x1xf32>
    %579 = vector.broadcast %530 : vector<1x32xf32> to vector<8x32xf32>
    %580 = arith.mulf %542, %579 : vector<8x32xf32>
    %cst_258 = arith.constant dense<0.000000e+00> : vector<8xf32>
    %581 = vector.multi_reduction <add>, %580, %cst_258 [1] : vector<8x32xf32> to vector<8xf32>
    %582 = vector.shape_cast %581 : vector<8xf32> to vector<8x1xf32>
    %583 = tpu.concatenate %546, %550, %554, %558, %562, %566, %570, %574, %578, %582 in 1 : vector<8x1xf32>, vector<8x1xf32>, vector<8x1xf32>, vector<8x1xf32>, vector<8x1xf32>, vector<8x1xf32>, vector<8x1xf32>, vector<8x1xf32>, vector<8x1xf32>, vector<8x1xf32> -> vector<8x10xf32>
    %584 = vector.broadcast %532 : vector<1x1xf32> to vector<8x10xf32>
    %585 = arith.addf %583, %584 : vector<8x10xf32>
    %cst_259 = arith.constant dense<0xFF800000> : vector<8xf32>
    %586 = vector.multi_reduction <maximumf>, %585, %cst_259 [1] : vector<8x10xf32> to vector<8xf32>
    %587 = vector.shape_cast %586 : vector<8xf32> to vector<8x1xf32>
    %588 = vector.broadcast %587 : vector<8x1xf32> to vector<8x10xf32>
    %589 = arith.subf %585, %588 : vector<8x10xf32>
    %590 = math.exp %589 : vector<8x10xf32>
    %cst_260 = arith.constant dense<0.000000e+00> : vector<8xf32>
    %591 = vector.multi_reduction <add>, %590, %cst_260 [1] : vector<8x10xf32> to vector<8xf32>
    %592 = vector.shape_cast %591 : vector<8xf32> to vector<8x1xf32>
    %593 = tpu.reciprocal %592 {approx = true} : vector<8x1xf32> -> vector<8x1xf32>
    %594 = vector.broadcast %593 : vector<8x1xf32> to vector<8x10xf32>
    %595 = arith.mulf %590, %594 : vector<8x10xf32>
    %596 = vector.extract_strided_slice %595 {offsets = [0, 0], sizes = [8, 1], strides = [1, 1]} : vector<8x10xf32> to vector<8x1xf32>
    %597 = vector.broadcast %596 : vector<8x1xf32> to vector<8x32xf32>
    %598 = arith.mulf %597, %533 : vector<8x32xf32>
    %599 = vector.extract_strided_slice %595 {offsets = [0, 1], sizes = [8, 1], strides = [1, 1]} : vector<8x10xf32> to vector<8x1xf32>
    %600 = vector.broadcast %599 : vector<8x1xf32> to vector<8x32xf32>
    %601 = arith.mulf %600, %534 : vector<8x32xf32>
    %602 = arith.addf %598, %601 : vector<8x32xf32>
    %603 = vector.extract_strided_slice %595 {offsets = [0, 2], sizes = [8, 1], strides = [1, 1]} : vector<8x10xf32> to vector<8x1xf32>
    %604 = vector.broadcast %603 : vector<8x1xf32> to vector<8x32xf32>
    %605 = arith.mulf %604, %535 : vector<8x32xf32>
    %606 = arith.addf %602, %605 : vector<8x32xf32>
    %607 = vector.extract_strided_slice %595 {offsets = [0, 3], sizes = [8, 1], strides = [1, 1]} : vector<8x10xf32> to vector<8x1xf32>
    %608 = vector.broadcast %607 : vector<8x1xf32> to vector<8x32xf32>
    %609 = arith.mulf %608, %536 : vector<8x32xf32>
    %610 = arith.addf %606, %609 : vector<8x32xf32>
    %611 = vector.extract_strided_slice %595 {offsets = [0, 4], sizes = [8, 1], strides = [1, 1]} : vector<8x10xf32> to vector<8x1xf32>
    %612 = vector.broadcast %611 : vector<8x1xf32> to vector<8x32xf32>
    %613 = arith.mulf %612, %537 : vector<8x32xf32>
    %614 = arith.addf %610, %613 : vector<8x32xf32>
    %615 = vector.extract_strided_slice %595 {offsets = [0, 5], sizes = [8, 1], strides = [1, 1]} : vector<8x10xf32> to vector<8x1xf32>
    %616 = vector.broadcast %615 : vector<8x1xf32> to vector<8x32xf32>
    %617 = arith.mulf %616, %538 : vector<8x32xf32>
    %618 = arith.addf %614, %617 : vector<8x32xf32>
    %619 = vector.extract_strided_slice %595 {offsets = [0, 6], sizes = [8, 1], strides = [1, 1]} : vector<8x10xf32> to vector<8x1xf32>
    %620 = vector.broadcast %619 : vector<8x1xf32> to vector<8x32xf32>
    %621 = arith.mulf %620, %539 : vector<8x32xf32>
    %622 = arith.addf %618, %621 : vector<8x32xf32>
    %623 = vector.extract_strided_slice %595 {offsets = [0, 7], sizes = [8, 1], strides = [1, 1]} : vector<8x10xf32> to vector<8x1xf32>
    %624 = vector.broadcast %623 : vector<8x1xf32> to vector<8x32xf32>
    %625 = arith.mulf %624, %540 : vector<8x32xf32>
    %626 = arith.addf %622, %625 : vector<8x32xf32>
    %627 = vector.extract_strided_slice %595 {offsets = [0, 8], sizes = [8, 1], strides = [1, 1]} : vector<8x10xf32> to vector<8x1xf32>
    %628 = vector.broadcast %627 : vector<8x1xf32> to vector<8x32xf32>
    %629 = arith.mulf %628, %541 : vector<8x32xf32>
    %630 = arith.addf %626, %629 : vector<8x32xf32>
    %631 = vector.extract_strided_slice %595 {offsets = [0, 9], sizes = [8, 1], strides = [1, 1]} : vector<8x10xf32> to vector<8x1xf32>
    %632 = vector.broadcast %631 : vector<8x1xf32> to vector<8x32xf32>
    %633 = arith.mulf %632, %542 : vector<8x32xf32>
    %634 = arith.addf %630, %633 : vector<8x32xf32>
    %c1_261 = arith.constant 1 : index
    %c0_262 = arith.constant 0 : index
    %c0_263 = arith.constant 0 : index
    %635 = vector.load %arg8[%c1_261, %c0_262, %c0_263] : memref<3x1x32xf32, #tpu.memory_space<vmem>>, vector<1x1x32xf32>
    %636 = vector.shape_cast %635 : vector<1x1x32xf32> to vector<1x32xf32>
    %c1_264 = arith.constant 1 : index
    %c0_265 = arith.constant 0 : index
    %c0_266 = arith.constant 0 : index
    %637 = vector.load %arg9[%c1_264, %c0_265, %c0_266] : memref<3x1x1xf32, #tpu.memory_space<vmem>>, vector<1x1x1xf32>
    %638 = vector.shape_cast %637 : vector<1x1x1xf32> to vector<1x1xf32>
    %639 = vector.broadcast %636 : vector<1x32xf32> to vector<8x32xf32>
    %640 = arith.mulf %634, %639 : vector<8x32xf32>
    %cst_267 = arith.constant dense<0.000000e+00> : vector<8xf32>
    %641 = vector.multi_reduction <add>, %640, %cst_267 [1] : vector<8x32xf32> to vector<8xf32>
    %642 = vector.shape_cast %641 : vector<8xf32> to vector<8x1xf32>
    %643 = vector.broadcast %638 : vector<1x1xf32> to vector<8x1xf32>
    %644 = arith.addf %642, %643 : vector<8x1xf32>
    %c2_268 = arith.constant 2 : index
    %c0_269 = arith.constant 0 : index
    %c0_270 = arith.constant 0 : index
    %645 = vector.load %arg6[%c2_268, %c0_269, %c0_270] : memref<3x1x32xf32, #tpu.memory_space<vmem>>, vector<1x1x32xf32>
    %646 = vector.shape_cast %645 : vector<1x1x32xf32> to vector<1x32xf32>
    %c2_271 = arith.constant 2 : index
    %c0_272 = arith.constant 0 : index
    %c0_273 = arith.constant 0 : index
    %647 = vector.load %arg7[%c2_271, %c0_272, %c0_273] : memref<3x1x1xf32, #tpu.memory_space<vmem>>, vector<1x1x1xf32>
    %648 = vector.shape_cast %647 : vector<1x1x1xf32> to vector<1x1xf32>
    %c0_274 = arith.constant 0 : index
    %c64_275 = arith.constant 64 : index
    %649 = vector.load %arg13[%c0_274, %c64_275] : memref<120x128xf32, #tpu.memory_space<vmem>>, vector<8x32xf32>
    %c8_276 = arith.constant 8 : index
    %c64_277 = arith.constant 64 : index
    %650 = vector.load %arg13[%c8_276, %c64_277] : memref<120x128xf32, #tpu.memory_space<vmem>>, vector<8x32xf32>
    %c16_278 = arith.constant 16 : index
    %c64_279 = arith.constant 64 : index
    %651 = vector.load %arg13[%c16_278, %c64_279] : memref<120x128xf32, #tpu.memory_space<vmem>>, vector<8x32xf32>
    %c24_280 = arith.constant 24 : index
    %c64_281 = arith.constant 64 : index
    %652 = vector.load %arg13[%c24_280, %c64_281] : memref<120x128xf32, #tpu.memory_space<vmem>>, vector<8x32xf32>
    %c32_282 = arith.constant 32 : index
    %c64_283 = arith.constant 64 : index
    %653 = vector.load %arg13[%c32_282, %c64_283] : memref<120x128xf32, #tpu.memory_space<vmem>>, vector<8x32xf32>
    %c40_284 = arith.constant 40 : index
    %c64_285 = arith.constant 64 : index
    %654 = vector.load %arg13[%c40_284, %c64_285] : memref<120x128xf32, #tpu.memory_space<vmem>>, vector<8x32xf32>
    %c48_286 = arith.constant 48 : index
    %c64_287 = arith.constant 64 : index
    %655 = vector.load %arg13[%c48_286, %c64_287] : memref<120x128xf32, #tpu.memory_space<vmem>>, vector<8x32xf32>
    %c56_288 = arith.constant 56 : index
    %c64_289 = arith.constant 64 : index
    %656 = vector.load %arg13[%c56_288, %c64_289] : memref<120x128xf32, #tpu.memory_space<vmem>>, vector<8x32xf32>
    %c64_290 = arith.constant 64 : index
    %c64_291 = arith.constant 64 : index
    %657 = vector.load %arg13[%c64_290, %c64_291] : memref<120x128xf32, #tpu.memory_space<vmem>>, vector<8x32xf32>
    %c72_292 = arith.constant 72 : index
    %c64_293 = arith.constant 64 : index
    %658 = vector.load %arg13[%c72_292, %c64_293] : memref<120x128xf32, #tpu.memory_space<vmem>>, vector<8x32xf32>
    %c80_294 = arith.constant 80 : index
    %c64_295 = arith.constant 64 : index
    %659 = vector.load %arg13[%c80_294, %c64_295] : memref<120x128xf32, #tpu.memory_space<vmem>>, vector<8x32xf32>
    %c88_296 = arith.constant 88 : index
    %c64_297 = arith.constant 64 : index
    %660 = vector.load %arg13[%c88_296, %c64_297] : memref<120x128xf32, #tpu.memory_space<vmem>>, vector<8x32xf32>
    %c96_298 = arith.constant 96 : index
    %c64_299 = arith.constant 64 : index
    %661 = vector.load %arg13[%c96_298, %c64_299] : memref<120x128xf32, #tpu.memory_space<vmem>>, vector<8x32xf32>
    %c104_300 = arith.constant 104 : index
    %c64_301 = arith.constant 64 : index
    %662 = vector.load %arg13[%c104_300, %c64_301] : memref<120x128xf32, #tpu.memory_space<vmem>>, vector<8x32xf32>
    %c112_302 = arith.constant 112 : index
    %c64_303 = arith.constant 64 : index
    %663 = vector.load %arg13[%c112_302, %c64_303] : memref<120x128xf32, #tpu.memory_space<vmem>>, vector<8x32xf32>
    %664 = vector.broadcast %646 : vector<1x32xf32> to vector<8x32xf32>
    %665 = arith.mulf %649, %664 : vector<8x32xf32>
    %cst_304 = arith.constant dense<0.000000e+00> : vector<8xf32>
    %666 = vector.multi_reduction <add>, %665, %cst_304 [1] : vector<8x32xf32> to vector<8xf32>
    %667 = vector.shape_cast %666 : vector<8xf32> to vector<8x1xf32>
    %668 = vector.broadcast %646 : vector<1x32xf32> to vector<8x32xf32>
    %669 = arith.mulf %650, %668 : vector<8x32xf32>
    %cst_305 = arith.constant dense<0.000000e+00> : vector<8xf32>
    %670 = vector.multi_reduction <add>, %669, %cst_305 [1] : vector<8x32xf32> to vector<8xf32>
    %671 = vector.shape_cast %670 : vector<8xf32> to vector<8x1xf32>
    %672 = vector.broadcast %646 : vector<1x32xf32> to vector<8x32xf32>
    %673 = arith.mulf %651, %672 : vector<8x32xf32>
    %cst_306 = arith.constant dense<0.000000e+00> : vector<8xf32>
    %674 = vector.multi_reduction <add>, %673, %cst_306 [1] : vector<8x32xf32> to vector<8xf32>
    %675 = vector.shape_cast %674 : vector<8xf32> to vector<8x1xf32>
    %676 = vector.broadcast %646 : vector<1x32xf32> to vector<8x32xf32>
    %677 = arith.mulf %652, %676 : vector<8x32xf32>
    %cst_307 = arith.constant dense<0.000000e+00> : vector<8xf32>
    %678 = vector.multi_reduction <add>, %677, %cst_307 [1] : vector<8x32xf32> to vector<8xf32>
    %679 = vector.shape_cast %678 : vector<8xf32> to vector<8x1xf32>
    %680 = vector.broadcast %646 : vector<1x32xf32> to vector<8x32xf32>
    %681 = arith.mulf %653, %680 : vector<8x32xf32>
    %cst_308 = arith.constant dense<0.000000e+00> : vector<8xf32>
    %682 = vector.multi_reduction <add>, %681, %cst_308 [1] : vector<8x32xf32> to vector<8xf32>
    %683 = vector.shape_cast %682 : vector<8xf32> to vector<8x1xf32>
    %684 = vector.broadcast %646 : vector<1x32xf32> to vector<8x32xf32>
    %685 = arith.mulf %654, %684 : vector<8x32xf32>
    %cst_309 = arith.constant dense<0.000000e+00> : vector<8xf32>
    %686 = vector.multi_reduction <add>, %685, %cst_309 [1] : vector<8x32xf32> to vector<8xf32>
    %687 = vector.shape_cast %686 : vector<8xf32> to vector<8x1xf32>
    %688 = vector.broadcast %646 : vector<1x32xf32> to vector<8x32xf32>
    %689 = arith.mulf %655, %688 : vector<8x32xf32>
    %cst_310 = arith.constant dense<0.000000e+00> : vector<8xf32>
    %690 = vector.multi_reduction <add>, %689, %cst_310 [1] : vector<8x32xf32> to vector<8xf32>
    %691 = vector.shape_cast %690 : vector<8xf32> to vector<8x1xf32>
    %692 = vector.broadcast %646 : vector<1x32xf32> to vector<8x32xf32>
    %693 = arith.mulf %656, %692 : vector<8x32xf32>
    %cst_311 = arith.constant dense<0.000000e+00> : vector<8xf32>
    %694 = vector.multi_reduction <add>, %693, %cst_311 [1] : vector<8x32xf32> to vector<8xf32>
    %695 = vector.shape_cast %694 : vector<8xf32> to vector<8x1xf32>
    %696 = vector.broadcast %646 : vector<1x32xf32> to vector<8x32xf32>
    %697 = arith.mulf %657, %696 : vector<8x32xf32>
    %cst_312 = arith.constant dense<0.000000e+00> : vector<8xf32>
    %698 = vector.multi_reduction <add>, %697, %cst_312 [1] : vector<8x32xf32> to vector<8xf32>
    %699 = vector.shape_cast %698 : vector<8xf32> to vector<8x1xf32>
    %700 = vector.broadcast %646 : vector<1x32xf32> to vector<8x32xf32>
    %701 = arith.mulf %658, %700 : vector<8x32xf32>
    %cst_313 = arith.constant dense<0.000000e+00> : vector<8xf32>
    %702 = vector.multi_reduction <add>, %701, %cst_313 [1] : vector<8x32xf32> to vector<8xf32>
    %703 = vector.shape_cast %702 : vector<8xf32> to vector<8x1xf32>
    %704 = vector.broadcast %646 : vector<1x32xf32> to vector<8x32xf32>
    %705 = arith.mulf %659, %704 : vector<8x32xf32>
    %cst_314 = arith.constant dense<0.000000e+00> : vector<8xf32>
    %706 = vector.multi_reduction <add>, %705, %cst_314 [1] : vector<8x32xf32> to vector<8xf32>
    %707 = vector.shape_cast %706 : vector<8xf32> to vector<8x1xf32>
    %708 = vector.broadcast %646 : vector<1x32xf32> to vector<8x32xf32>
    %709 = arith.mulf %660, %708 : vector<8x32xf32>
    %cst_315 = arith.constant dense<0.000000e+00> : vector<8xf32>
    %710 = vector.multi_reduction <add>, %709, %cst_315 [1] : vector<8x32xf32> to vector<8xf32>
    %711 = vector.shape_cast %710 : vector<8xf32> to vector<8x1xf32>
    %712 = vector.broadcast %646 : vector<1x32xf32> to vector<8x32xf32>
    %713 = arith.mulf %661, %712 : vector<8x32xf32>
    %cst_316 = arith.constant dense<0.000000e+00> : vector<8xf32>
    %714 = vector.multi_reduction <add>, %713, %cst_316 [1] : vector<8x32xf32> to vector<8xf32>
    %715 = vector.shape_cast %714 : vector<8xf32> to vector<8x1xf32>
    %716 = vector.broadcast %646 : vector<1x32xf32> to vector<8x32xf32>
    %717 = arith.mulf %662, %716 : vector<8x32xf32>
    %cst_317 = arith.constant dense<0.000000e+00> : vector<8xf32>
    %718 = vector.multi_reduction <add>, %717, %cst_317 [1] : vector<8x32xf32> to vector<8xf32>
    %719 = vector.shape_cast %718 : vector<8xf32> to vector<8x1xf32>
    %720 = vector.broadcast %646 : vector<1x32xf32> to vector<8x32xf32>
    %721 = arith.mulf %663, %720 : vector<8x32xf32>
    %cst_318 = arith.constant dense<0.000000e+00> : vector<8xf32>
    %722 = vector.multi_reduction <add>, %721, %cst_318 [1] : vector<8x32xf32> to vector<8xf32>
    %723 = vector.shape_cast %722 : vector<8xf32> to vector<8x1xf32>
    %724 = tpu.concatenate %667, %671, %675, %679, %683, %687, %691, %695, %699, %703, %707, %711, %715, %719, %723 in 1 : vector<8x1xf32>, vector<8x1xf32>, vector<8x1xf32>, vector<8x1xf32>, vector<8x1xf32>, vector<8x1xf32>, vector<8x1xf32>, vector<8x1xf32>, vector<8x1xf32>, vector<8x1xf32>, vector<8x1xf32>, vector<8x1xf32>, vector<8x1xf32>, vector<8x1xf32>, vector<8x1xf32> -> vector<8x15xf32>
    %725 = vector.broadcast %648 : vector<1x1xf32> to vector<8x15xf32>
    %726 = arith.addf %724, %725 : vector<8x15xf32>
    %cst_319 = arith.constant dense<0xFF800000> : vector<8xf32>
    %727 = vector.multi_reduction <maximumf>, %726, %cst_319 [1] : vector<8x15xf32> to vector<8xf32>
    %728 = vector.shape_cast %727 : vector<8xf32> to vector<8x1xf32>
    %729 = vector.broadcast %728 : vector<8x1xf32> to vector<8x15xf32>
    %730 = arith.subf %726, %729 : vector<8x15xf32>
    %731 = math.exp %730 : vector<8x15xf32>
    %cst_320 = arith.constant dense<0.000000e+00> : vector<8xf32>
    %732 = vector.multi_reduction <add>, %731, %cst_320 [1] : vector<8x15xf32> to vector<8xf32>
    %733 = vector.shape_cast %732 : vector<8xf32> to vector<8x1xf32>
    %734 = tpu.reciprocal %733 {approx = true} : vector<8x1xf32> -> vector<8x1xf32>
    %735 = vector.broadcast %734 : vector<8x1xf32> to vector<8x15xf32>
    %736 = arith.mulf %731, %735 : vector<8x15xf32>
    %737 = vector.extract_strided_slice %736 {offsets = [0, 0], sizes = [8, 1], strides = [1, 1]} : vector<8x15xf32> to vector<8x1xf32>
    %738 = vector.broadcast %737 : vector<8x1xf32> to vector<8x32xf32>
    %739 = arith.mulf %738, %649 : vector<8x32xf32>
    %740 = vector.extract_strided_slice %736 {offsets = [0, 1], sizes = [8, 1], strides = [1, 1]} : vector<8x15xf32> to vector<8x1xf32>
    %741 = vector.broadcast %740 : vector<8x1xf32> to vector<8x32xf32>
    %742 = arith.mulf %741, %650 : vector<8x32xf32>
    %743 = arith.addf %739, %742 : vector<8x32xf32>
    %744 = vector.extract_strided_slice %736 {offsets = [0, 2], sizes = [8, 1], strides = [1, 1]} : vector<8x15xf32> to vector<8x1xf32>
    %745 = vector.broadcast %744 : vector<8x1xf32> to vector<8x32xf32>
    %746 = arith.mulf %745, %651 : vector<8x32xf32>
    %747 = arith.addf %743, %746 : vector<8x32xf32>
    %748 = vector.extract_strided_slice %736 {offsets = [0, 3], sizes = [8, 1], strides = [1, 1]} : vector<8x15xf32> to vector<8x1xf32>
    %749 = vector.broadcast %748 : vector<8x1xf32> to vector<8x32xf32>
    %750 = arith.mulf %749, %652 : vector<8x32xf32>
    %751 = arith.addf %747, %750 : vector<8x32xf32>
    %752 = vector.extract_strided_slice %736 {offsets = [0, 4], sizes = [8, 1], strides = [1, 1]} : vector<8x15xf32> to vector<8x1xf32>
    %753 = vector.broadcast %752 : vector<8x1xf32> to vector<8x32xf32>
    %754 = arith.mulf %753, %653 : vector<8x32xf32>
    %755 = arith.addf %751, %754 : vector<8x32xf32>
    %756 = vector.extract_strided_slice %736 {offsets = [0, 5], sizes = [8, 1], strides = [1, 1]} : vector<8x15xf32> to vector<8x1xf32>
    %757 = vector.broadcast %756 : vector<8x1xf32> to vector<8x32xf32>
    %758 = arith.mulf %757, %654 : vector<8x32xf32>
    %759 = arith.addf %755, %758 : vector<8x32xf32>
    %760 = vector.extract_strided_slice %736 {offsets = [0, 6], sizes = [8, 1], strides = [1, 1]} : vector<8x15xf32> to vector<8x1xf32>
    %761 = vector.broadcast %760 : vector<8x1xf32> to vector<8x32xf32>
    %762 = arith.mulf %761, %655 : vector<8x32xf32>
    %763 = arith.addf %759, %762 : vector<8x32xf32>
    %764 = vector.extract_strided_slice %736 {offsets = [0, 7], sizes = [8, 1], strides = [1, 1]} : vector<8x15xf32> to vector<8x1xf32>
    %765 = vector.broadcast %764 : vector<8x1xf32> to vector<8x32xf32>
    %766 = arith.mulf %765, %656 : vector<8x32xf32>
    %767 = arith.addf %763, %766 : vector<8x32xf32>
    %768 = vector.extract_strided_slice %736 {offsets = [0, 8], sizes = [8, 1], strides = [1, 1]} : vector<8x15xf32> to vector<8x1xf32>
    %769 = vector.broadcast %768 : vector<8x1xf32> to vector<8x32xf32>
    %770 = arith.mulf %769, %657 : vector<8x32xf32>
    %771 = arith.addf %767, %770 : vector<8x32xf32>
    %772 = vector.extract_strided_slice %736 {offsets = [0, 9], sizes = [8, 1], strides = [1, 1]} : vector<8x15xf32> to vector<8x1xf32>
    %773 = vector.broadcast %772 : vector<8x1xf32> to vector<8x32xf32>
    %774 = arith.mulf %773, %658 : vector<8x32xf32>
    %775 = arith.addf %771, %774 : vector<8x32xf32>
    %776 = vector.extract_strided_slice %736 {offsets = [0, 10], sizes = [8, 1], strides = [1, 1]} : vector<8x15xf32> to vector<8x1xf32>
    %777 = vector.broadcast %776 : vector<8x1xf32> to vector<8x32xf32>
    %778 = arith.mulf %777, %659 : vector<8x32xf32>
    %779 = arith.addf %775, %778 : vector<8x32xf32>
    %780 = vector.extract_strided_slice %736 {offsets = [0, 11], sizes = [8, 1], strides = [1, 1]} : vector<8x15xf32> to vector<8x1xf32>
    %781 = vector.broadcast %780 : vector<8x1xf32> to vector<8x32xf32>
    %782 = arith.mulf %781, %660 : vector<8x32xf32>
    %783 = arith.addf %779, %782 : vector<8x32xf32>
    %784 = vector.extract_strided_slice %736 {offsets = [0, 12], sizes = [8, 1], strides = [1, 1]} : vector<8x15xf32> to vector<8x1xf32>
    %785 = vector.broadcast %784 : vector<8x1xf32> to vector<8x32xf32>
    %786 = arith.mulf %785, %661 : vector<8x32xf32>
    %787 = arith.addf %783, %786 : vector<8x32xf32>
    %788 = vector.extract_strided_slice %736 {offsets = [0, 13], sizes = [8, 1], strides = [1, 1]} : vector<8x15xf32> to vector<8x1xf32>
    %789 = vector.broadcast %788 : vector<8x1xf32> to vector<8x32xf32>
    %790 = arith.mulf %789, %662 : vector<8x32xf32>
    %791 = arith.addf %787, %790 : vector<8x32xf32>
    %792 = vector.extract_strided_slice %736 {offsets = [0, 14], sizes = [8, 1], strides = [1, 1]} : vector<8x15xf32> to vector<8x1xf32>
    %793 = vector.broadcast %792 : vector<8x1xf32> to vector<8x32xf32>
    %794 = arith.mulf %793, %663 : vector<8x32xf32>
    %795 = arith.addf %791, %794 : vector<8x32xf32>
    %c2_321 = arith.constant 2 : index
    %c0_322 = arith.constant 0 : index
    %c0_323 = arith.constant 0 : index
    %796 = vector.load %arg8[%c2_321, %c0_322, %c0_323] : memref<3x1x32xf32, #tpu.memory_space<vmem>>, vector<1x1x32xf32>
    %797 = vector.shape_cast %796 : vector<1x1x32xf32> to vector<1x32xf32>
    %c2_324 = arith.constant 2 : index
    %c0_325 = arith.constant 0 : index
    %c0_326 = arith.constant 0 : index
    %798 = vector.load %arg9[%c2_324, %c0_325, %c0_326] : memref<3x1x1xf32, #tpu.memory_space<vmem>>, vector<1x1x1xf32>
    %799 = vector.shape_cast %798 : vector<1x1x1xf32> to vector<1x1xf32>
    %800 = vector.broadcast %797 : vector<1x32xf32> to vector<8x32xf32>
    %801 = arith.mulf %795, %800 : vector<8x32xf32>
    %cst_327 = arith.constant dense<0.000000e+00> : vector<8xf32>
    %802 = vector.multi_reduction <add>, %801, %cst_327 [1] : vector<8x32xf32> to vector<8xf32>
    %803 = vector.shape_cast %802 : vector<8xf32> to vector<8x1xf32>
    %804 = vector.broadcast %799 : vector<1x1xf32> to vector<8x1xf32>
    %805 = arith.addf %803, %804 : vector<8x1xf32>
    %806 = tpu.concatenate %528, %644, %805 in 1 : vector<8x1xf32>, vector<8x1xf32>, vector<8x1xf32> -> vector<8x3xf32>
    %c0_328 = arith.constant 0 : index
    %c0_329 = arith.constant 0 : index
    %807 = vector.load %arg10[%c0_328, %c0_329] : memref<1x3xf32, #tpu.memory_space<vmem>>, vector<1x3xf32>
    %cst_330 = arith.constant dense<0xFF800000> : vector<1xf32>
    %808 = vector.multi_reduction <maximumf>, %807, %cst_330 [1] : vector<1x3xf32> to vector<1xf32>
    %809 = vector.shape_cast %808 : vector<1xf32> to vector<1x1xf32>
    %810 = vector.broadcast %809 : vector<1x1xf32> to vector<1x3xf32>
    %811 = arith.subf %807, %810 : vector<1x3xf32>
    %812 = math.exp %811 : vector<1x3xf32>
    %cst_331 = arith.constant dense<0.000000e+00> : vector<1xf32>
    %813 = vector.multi_reduction <add>, %812, %cst_331 [1] : vector<1x3xf32> to vector<1xf32>
    %814 = vector.shape_cast %813 : vector<1xf32> to vector<1x1xf32>
    %815 = tpu.reciprocal %814 {approx = true} : vector<1x1xf32> -> vector<1x1xf32>
    %816 = vector.broadcast %815 : vector<1x1xf32> to vector<1x3xf32>
    %817 = arith.mulf %812, %816 : vector<1x3xf32>
    %818 = vector.broadcast %817 : vector<1x3xf32> to vector<8x3xf32>
    %819 = arith.mulf %806, %818 : vector<8x3xf32>
    %cst_332 = arith.constant dense<0.000000e+00> : vector<8xf32>
    %820 = vector.multi_reduction <add>, %819, %cst_332 [1] : vector<8x3xf32> to vector<8xf32>
    %821 = vector.shape_cast %820 : vector<8xf32> to vector<8x1xf32>
    %c0_333 = arith.constant 0 : index
    %c0_334 = arith.constant 0 : index
    %822 = vector.load %arg11[%c0_333, %c0_334] : memref<8x1xf32, #tpu.memory_space<vmem>>, vector<8x1xf32>
    tpu.vector_store %arg11[%c0_333, %c0_334], %821 {strides = array<i32>} : memref<8x1xf32, #tpu.memory_space<vmem>>, vector<8x1xf32>,
    return
  }
  func.func @transform_0(%arg0: i32) -> (i32, i32, i32) {
    %c0_i32 = arith.constant 0 : i32
    %c0_i32_0 = arith.constant 0 : i32
    %c0_i32_1 = arith.constant 0 : i32
    return %c0_i32, %arg0, %c0_i32_0 : i32, i32, i32
  }
  func.func @transform_1(%arg0: i32) -> (i32, i32, i32) {
    %c0_i32 = arith.constant 0 : i32
    %c0_i32_0 = arith.constant 0 : i32
    %c0_i32_1 = arith.constant 0 : i32
    %c0_i32_2 = arith.constant 0 : i32
    return %c0_i32, %c0_i32_0, %c0_i32_1 : i32, i32, i32
  }
  func.func @transform_2(%arg0: i32) -> (i32, i32) {
    %c0_i32 = arith.constant 0 : i32
    %c0_i32_0 = arith.constant 0 : i32
    %c0_i32_1 = arith.constant 0 : i32
    return %c0_i32, %c0_i32_0 : i32, i32
  }
  func.func @transform_3(%arg0: i32) -> (i32, i32) {
    %c0_i32 = arith.constant 0 : i32
    %c0_i32_0 = arith.constant 0 : i32
    %c0_i32_1 = arith.constant 0 : i32
    return %c0_i32, %c0_i32_0 : i32, i32
  }
  func.func @transform_4(%arg0: i32) -> (i32, i32, i32) {
    %c0_i32 = arith.constant 0 : i32
    %c0_i32_0 = arith.constant 0 : i32
    %c0_i32_1 = arith.constant 0 : i32
    %c0_i32_2 = arith.constant 0 : i32
    return %c0_i32, %c0_i32_0, %c0_i32_1 : i32, i32, i32
  }
  func.func @transform_5(%arg0: i32) -> (i32, i32, i32) {
    %c0_i32 = arith.constant 0 : i32
    %c0_i32_0 = arith.constant 0 : i32
    %c0_i32_1 = arith.constant 0 : i32
    %c0_i32_2 = arith.constant 0 : i32
    return %c0_i32, %c0_i32_0, %c0_i32_1 : i32, i32, i32
  }
  func.func @transform_6(%arg0: i32) -> (i32, i32, i32) {
    %c0_i32 = arith.constant 0 : i32
    %c0_i32_0 = arith.constant 0 : i32
    %c0_i32_1 = arith.constant 0 : i32
    %c0_i32_2 = arith.constant 0 : i32
    return %c0_i32, %c0_i32_0, %c0_i32_1 : i32, i32, i32
  }
  func.func @transform_7(%arg0: i32) -> (i32, i32, i32) {
    %c0_i32 = arith.constant 0 : i32
    %c0_i32_0 = arith.constant 0 : i32
    %c0_i32_1 = arith.constant 0 : i32
    %c0_i32_2 = arith.constant 0 : i32
    return %c0_i32, %c0_i32_0, %c0_i32_1 : i32, i32, i32
  }
  func.func @transform_8(%arg0: i32) -> (i32, i32, i32) {
    %c0_i32 = arith.constant 0 : i32
    %c0_i32_0 = arith.constant 0 : i32
    %c0_i32_1 = arith.constant 0 : i32
    %c0_i32_2 = arith.constant 0 : i32
    return %c0_i32, %c0_i32_0, %c0_i32_1 : i32, i32, i32
  }
  func.func @transform_9(%arg0: i32) -> (i32, i32) {
    %c0_i32 = arith.constant 0 : i32
    %c0_i32_0 = arith.constant 0 : i32
    %c0_i32_1 = arith.constant 0 : i32
    return %c0_i32, %c0_i32_0 : i32, i32
  }
  func.func @transform_10(%arg0: i32) -> (i32, i32) {
    %c0_i32 = arith.constant 0 : i32
    %c0_i32_0 = arith.constant 0 : i32
    return %arg0, %c0_i32 : i32, i32
  }
}

</mosaic_0001>

<llo_original>
// kernel: tpu_custom_call.1
$region0: #{tpu_custom_call.1}
  #allocation0 [shape = 'u32[]', space=smem, size = 0x4, offset = 0x4, fixed_abs, tag = 'smem constant byte address 0x4 - core index']
  #allocation1 [shape = 'u32[144,128]{1,0:T(1,128)}', space=vmem, size = 0x12000, scoped, tag = 'internal scratch']
  #allocation2 [shape = 'f32[120,512]{1,0:T(8,128)}', space=vmem, size = 0x3c000, scoped, tag = 'scratch operand']
  #allocation3 [shape = 'f32[120,128]{1,0:T(8,128)}', space=vmem, size = 0xf000, scoped, tag = 'scratch operand']
  %s0 = inlined_call_operand.vmem [shape: f32[15,8,8], index: 0, kind: input, shape index: {}]
  %s1 = inlined_call_operand.vmem [shape: f32[15,1,512], index: 1, kind: input, shape index: {}]
  %s2 = inlined_call_operand.vmem [shape: f32[8,512], index: 2, kind: input, shape index: {}]
  %s3 = inlined_call_operand.hbm [shape: f32[128,512], index: 3, kind: input, shape index: {}]
  %s4 = inlined_call_operand.vmem [shape: f32[15,1,512], index: 4, kind: input, shape index: {}]
  %s5 = inlined_call_operand.vmem [shape: f32[3,1,32], index: 5, kind: input, shape index: {}]
  %s6 = inlined_call_operand.vmem [shape: f32[3,1,1], index: 6, kind: input, shape index: {}]
  %s7 = inlined_call_operand.vmem [shape: f32[3,1,32], index: 7, kind: input, shape index: {}]
  %s8 = inlined_call_operand.vmem [shape: f32[3,1,1], index: 8, kind: input, shape index: {}]
  %s9 = inlined_call_operand.vmem [shape: f32[1,3], index: 9, kind: input, shape index: {}]
  %s10 = inlined_call_operand.vmem [shape: f32[8,1], index: 10, kind: output, shape index: {}]
  %s11 = sld [smem:[#allocation0]]
  $region54: #{tpu_custom_call.1} parent=0
    _
  %s13 = ssub.s32 1, %s11
  %s14 = scalar_select 0, %s13, %s11
  $region1: #{tpu_custom_call.1} parent=0
    #allocation4 [shape = 'u8[262144]{0}', space=vmem, size = 0x40000, scoped, tag = 'input window, operand 3, single buffered']
    #allocation5 [shape = 's32[1]{0}', space=sflag, size = 0x4, scoped, tag = 'scoped memory for tpu_custom_call.1']
    %15 = vsyncpa [#allocation5], 0
    // Predicated region
    $region2: #{tpu_custom_call.1} parent=1 // pred_check
      _
    $region3: #{tpu_custom_call.1} parent=1 // pred_check_branch
      %17 = sbr.rel (0) target = $region5
    $region4: #{tpu_custom_call.1} parent=1 // pred_region
      _
    $region5: #{tpu_custom_call.1} parent=1 // pred_fallthru
      _
    // Predicated region
    $region6: #{tpu_custom_call.1} parent=1 // pred_check
      _
    $region7: #{tpu_custom_call.1} parent=1 // pred_check_branch
      %19 = sbr.rel (0) target = $region9
    $region8: #{tpu_custom_call.1} parent=1 // pred_region
      _
    $region9: #{tpu_custom_call.1} parent=1 // pred_fallthru
      _
    // Predicated region
    $region10: #{tpu_custom_call.1} parent=1 // pred_check
      _
    $region11: #{tpu_custom_call.1} parent=1 // pred_check_branch
      %21 = sbr.rel (0) target = $region13
    $region12: #{tpu_custom_call.1} parent=1 // pred_region
      _
    $region13: #{tpu_custom_call.1} parent=1 // pred_fallthru
      _
    // Predicated region
    $region14: #{tpu_custom_call.1} parent=1 // pred_check
      _
    $region15: #{tpu_custom_call.1} parent=1 // pred_check_branch
      %23 = sbr.rel (0) target = $region17
    $region16: #{tpu_custom_call.1} parent=1 // pred_region
      %s25 = ssub.s32 8192, 8192
      %26 = vsyncadd [#allocation5], %s25
      %s27 = sshll.u32 [#allocation4], 4
      %s28 = int_to_ptr.vmem [resolvable:$true] %s27
      %33 = dma.hbm_to_vmem [thread:$0]  %s3, 8192, %s28, [#allocation5], 512, 512, 32
    $region17: #{tpu_custom_call.1} parent=1 // pred_fallthru
      _
    // Predicated region
    $region18: #{tpu_custom_call.1} parent=1 // pred_check
      _
    $region19: #{tpu_custom_call.1} parent=1 // pred_check_branch
      %35 = sbr.rel (0) target = $region21
    $region20: #{tpu_custom_call.1} parent=1 // pred_region
      _
    $region21: #{tpu_custom_call.1} parent=1 // pred_fallthru
      _
    // Predicated region
    $region22: #{tpu_custom_call.1} parent=1 // pred_check
      _
    $region23: #{tpu_custom_call.1} parent=1 // pred_check_branch
      %37 = sbr.rel (0) target = $region25
    $region24: #{tpu_custom_call.1} parent=1 // pred_region
      _
    $region25: #{tpu_custom_call.1} parent=1 // pred_fallthru
      _
    // Predicated region
    $region26: #{tpu_custom_call.1} parent=1 // pred_check
      _
    $region27: #{tpu_custom_call.1} parent=1 // pred_check_branch
      %39 = sbr.rel (0) target = $region29
    $region28: #{tpu_custom_call.1} parent=1 // pred_region
      _
    $region29: #{tpu_custom_call.1} parent=1 // pred_fallthru
      _
    // Predicated region
    $region30: #{tpu_custom_call.1} parent=1 // pred_check
      _
    $region31: #{tpu_custom_call.1} parent=1 // pred_check_branch
      %41 = sbr.rel (0) target = $region33
    $region32: #{tpu_custom_call.1} parent=1 // pred_region
      _
    $region33: #{tpu_custom_call.1} parent=1 // pred_fallthru
      _
    // Predicated region
    $region34: #{tpu_custom_call.1} parent=1 // pred_check
      _
    $region35: #{tpu_custom_call.1} parent=1 // pred_check_branch
      %43 = sbr.rel (0) target = $region37
    $region36: #{tpu_custom_call.1} parent=1 // pred_region
      _
    $region37: #{tpu_custom_call.1} parent=1 // pred_fallthru
      _
    // Predicated region
    $region38: #{tpu_custom_call.1} parent=1 // pred_check
      _
    $region39: #{tpu_custom_call.1} parent=1 // pred_check_branch
      %45 = sbr.rel (0) target = $region41
    $region40: #{tpu_custom_call.1} parent=1 // pred_region
      _
    $region41: #{tpu_custom_call.1} parent=1 // pred_fallthru
      _
    // Predicated region
    $region42: #{tpu_custom_call.1} parent=1 // pred_check
      _
    $region43: #{tpu_custom_call.1} parent=1 // pred_check_branch
      %47 = sbr.rel (0) target = $region45
    $region44: #{tpu_custom_call.1} parent=1 // pred_region
      %48 = dma.done [#allocation5], 8192
    $region45: #{tpu_custom_call.1} parent=1 // pred_fallthru
      _
    %v49 = vld [vmem:[%s0] sm:$0xff]
    %v50 = vld [vmem:[%s0 + $0x8] sm:$0xff]
    %v51 = vld [vmem:[%s0 + $0x10] sm:$0xff]
    %v52 = vld [vmem:[%s0 + $0x18] sm:$0xff]
    %v53 = vld [vmem:[%s0 + $0x20] sm:$0xff]
    %v54 = vld [vmem:[%s0 + $0x28] sm:$0xff]
    %v55 = vld [vmem:[%s0 + $0x30] sm:$0xff]
    %v56 = vld [vmem:[%s0 + $0x38] sm:$0xff]
    %v57 = vld [vmem:[%s0 + $0x40] sm:$0xff]
    %v58 = vld [vmem:[%s0 + $0x48] sm:$0xff]
    %v59 = vld [vmem:[%s0 + $0x50] sm:$0xff]
    %v60 = vld [vmem:[%s0 + $0x58] sm:$0xff]
    %v61 = vld [vmem:[%s0 + $0x60] sm:$0xff]
    %v62 = vld [vmem:[%s0 + $0x68] sm:$0xff]
    %v63 = vld [vmem:[%s0 + $0x70] sm:$0xff]
    %v64 = vld [vmem:[%s2] sm:$0xff]
    %v65 = vld [vmem:[%s2 + $0x8] sm:$0xff]
    %v66 = vld [vmem:[%s2 + $0x10] sm:$0xff]
    %v67 = vld [vmem:[%s2 + $0x18] sm:$0xff]
    %vm68 = vcmask 64512
    %v70 = vsel %vm68, %v49, 0
    %v73 = vsel %vm68, %v50, 0
    %v76 = vsel %vm68, %v51, 0
    %v79 = vsel %vm68, %v52, 0
    %v82 = vsel %vm68, %v53, 0
    %v85 = vsel %vm68, %v54, 0
    %v88 = vsel %vm68, %v55, 0
    %v91 = vsel %vm68, %v56, 0
    %v94 = vsel %vm68, %v57, 0
    %v97 = vsel %vm68, %v58, 0
    %v100 = vsel %vm68, %v59, 0
    %v103 = vsel %vm68, %v60, 0
    %v106 = vsel %vm68, %v61, 0
    %v109 = vsel %vm68, %v62, 0
    %v112 = vsel %vm68, %v63, 0
    %114 = vmatprep.subr.mxu0 0.0
    %115 = vmatpush1.msra.mxu0 0.0
    %116 = vmatprep.subr.mxu0 0.0
    %117 = vmatpush1.msra.mxu0 0.0
    %118 = vmatprep.subr.mxu0 0.0
    %119 = vmatpush1.msra.mxu0 0.0
    %120 = vmatprep.subr.mxu0 0.0
    %121 = vmatpush1.msra.mxu0 0.0
    %122 = vmatprep.subr.mxu0 0.0
    %123 = vmatpush1.msra.mxu0 0.0
    %124 = vmatprep.subr.mxu0 0.0
    %125 = vmatpush1.msra.mxu0 0.0
    %126 = vmatprep.subr.mxu0 0.0
    %127 = vmatpush1.msra.mxu0 0.0
    %128 = vmatprep.subr.mxu0 0.0
    %129 = vmatpush1.msra.mxu0 0.0
    %130 = vmatprep.subr.mxu0 0.0
    %131 = vmatpush1.msra.mxu0 0.0
    %132 = vmatprep.subr.mxu0 0.0
    %133 = vmatpush1.msra.mxu0 0.0
    %134 = vmatprep.subr.mxu0 0.0
    %135 = vmatpush1.msra.mxu0 0.0
    %136 = vmatprep.subr.mxu0 0.0
    %137 = vmatpush1.msra.mxu0 0.0
    %138 = vmatprep.subr.mxu0 0.0
    %139 = vmatpush1.msra.mxu0 0.0
    %140 = vmatprep.subr.mxu0 0.0
    %141 = vmatpush1.msra.mxu0 0.0
    %142 = vmatprep.subr.mxu0 0.0
    %143 = vmatpush1.msra.mxu0 0.0
    %144 = vmatprep.subr.mxu0 %v65
    %145 = vmatpush1.msra.mxu0 %v64
    %146 = vmatprep.subr.mxu0 0.0
    %147 = vmatpush2.msra.mxu0 0.0
    %148 = vmatprep.subr.mxu0 0.0
    %149 = vmatpush2.msra.mxu0 0.0
    %150 = vmatprep.subr.mxu0 0.0
    %151 = vmatpush2.msra.mxu0 0.0
    %152 = vmatprep.subr.mxu0 0.0
    %153 = vmatpush2.msra.mxu0 0.0
    %154 = vmatprep.subr.mxu0 0.0
    %155 = vmatpush2.msra.mxu0 0.0
    %156 = vmatprep.subr.mxu0 0.0
    %157 = vmatpush2.msra.mxu0 0.0
    %158 = vmatprep.subr.mxu0 0.0
    %159 = vmatpush2.msra.mxu0 0.0
    %160 = vmatprep.subr.mxu0 0.0
    %161 = vmatpush2.msra.mxu0 0.0
    %162 = vmatprep.subr.mxu0 0.0
    %163 = vmatpush2.msra.mxu0 0.0
    %164 = vmatprep.subr.mxu0 0.0
    %165 = vmatpush2.msra.mxu0 0.0
    %166 = vmatprep.subr.mxu0 0.0
    %167 = vmatpush2.msra.mxu0 0.0
    %168 = vmatprep.subr.mxu0 0.0
    %169 = vmatpush2.msra.mxu0 0.0
    %170 = vmatprep.subr.mxu0 0.0
    %171 = vmatpush2.msra.mxu0 0.0
    %172 = vmatprep.subr.mxu0 0.0
    %173 = vmatpush2.msra.mxu0 0.0
    %174 = vmatprep.subr.mxu0 0.0
    %175 = vmatpush2.msra.mxu0 0.0
    %176 = vmatprep.subr.mxu0 0.0
    %177 = vmatpush2.msra.mxu0 0.0
    %178 = vmatprep.mubr.f32.mxu0 0.0
    %179 = vmatmul.mubr.f32.gmra.mxu0 %v70
    %v180 = vpop.f32.mrf.mxu0
    %v181 = vadd.f32 0.0, %v180
    %v182 = vpop.f32.mrf.mxu0
    %v183 = vadd.f32 0.0, %v182
    %184 = vmatprep.mubr.f32.mxu0 0.0
    %185 = vmatmul.mubr.f32.gmra.mxu0 %v73
    %v186 = vpop.f32.mrf.mxu0
    %v187 = vadd.f32 0.0, %v186
    %v188 = vpop.f32.mrf.mxu0
    %v189 = vadd.f32 0.0, %v188
    %190 = vmatprep.mubr.f32.mxu0 0.0
    %191 = vmatmul.mubr.f32.gmra.mxu0 %v76
    %v192 = vpop.f32.mrf.mxu0
    %v193 = vadd.f32 0.0, %v192
    %v194 = vpop.f32.mrf.mxu0
    %v195 = vadd.f32 0.0, %v194
    %196 = vmatprep.mubr.f32.mxu0 0.0
    %197 = vmatmul.mubr.f32.gmra.mxu0 %v79
    %v198 = vpop.f32.mrf.mxu0
    %v199 = vadd.f32 0.0, %v198
    %v200 = vpop.f32.mrf.mxu0
    %v201 = vadd.f32 0.0, %v200
    %202 = vmatprep.mubr.f32.mxu0 0.0
    %203 = vmatmul.mubr.f32.gmra.mxu0 %v82
    %v204 = vpop.f32.mrf.mxu0
    %v205 = vadd.f32 0.0, %v204
    %v206 = vpop.f32.mrf.mxu0
    %v207 = vadd.f32 0.0, %v206
    %208 = vmatprep.mubr.f32.mxu0 0.0
    %209 = vmatmul.mubr.f32.gmra.mxu0 %v85
    %v210 = vpop.f32.mrf.mxu0
    %v211 = vadd.f32 0.0, %v210
    %v212 = vpop.f32.mrf.mxu0
    %v213 = vadd.f32 0.0, %v212
    %214 = vmatprep.mubr.f32.mxu0 0.0
    %215 = vmatmul.mubr.f32.gmra.mxu0 %v88
    %v216 = vpop.f32.mrf.mxu0
    %v217 = vadd.f32 0.0, %v216
    %v218 = vpop.f32.mrf.mxu0
    %v219 = vadd.f32 0.0, %v218
    %220 = vmatprep.mubr.f32.mxu0 0.0
    %221 = vmatmul.mubr.f32.gmra.mxu0 %v91
    %v222 = vpop.f32.mrf.mxu0
    %v223 = vadd.f32 0.0, %v222
    %v224 = vpop.f32.mrf.mxu0
    %v225 = vadd.f32 0.0, %v224
    %226 = vmatprep.mubr.f32.mxu0 0.0
    %227 = vmatmul.mubr.f32.gmra.mxu0 %v94
    %v228 = vpop.f32.mrf.mxu0
    %v229 = vadd.f32 0.0, %v228
    %v230 = vpop.f32.mrf.mxu0
    %v231 = vadd.f32 0.0, %v230
    %232 = vmatprep.mubr.f32.mxu0 0.0
    %233 = vmatmul.mubr.f32.gmra.mxu0 %v97
    %v234 = vpop.f32.mrf.mxu0
    %v235 = vadd.f32 0.0, %v234
    %v236 = vpop.f32.mrf.mxu0
    %v237 = vadd.f32 0.0, %v236
    %238 = vmatprep.mubr.f32.mxu0 0.0
    %239 = vmatmul.mubr.f32.gmra.mxu0 %v100
    %v240 = vpop.f32.mrf.mxu0
    %v241 = vadd.f32 0.0, %v240
    %v242 = vpop.f32.mrf.mxu0
    %v243 = vadd.f32 0.0, %v242
    %244 = vmatprep.mubr.f32.mxu0 0.0
    %245 = vmatmul.mubr.f32.gmra.mxu0 %v103
    %v246 = vpop.f32.mrf.mxu0
    %v247 = vadd.f32 0.0, %v246
    %v248 = vpop.f32.mrf.mxu0
    %v249 = vadd.f32 0.0, %v248
    %250 = vmatprep.mubr.f32.mxu0 0.0
    %251 = vmatmul.mubr.f32.gmra.mxu0 %v106
    %v252 = vpop.f32.mrf.mxu0
    %v253 = vadd.f32 0.0, %v252
    %v254 = vpop.f32.mrf.mxu0
    %v255 = vadd.f32 0.0, %v254
    %256 = vmatprep.mubr.f32.mxu0 0.0
    %257 = vmatmul.mubr.f32.gmra.mxu0 %v109
    %v258 = vpop.f32.mrf.mxu0
    %v259 = vadd.f32 0.0, %v258
    %v260 = vpop.f32.mrf.mxu0
    %v261 = vadd.f32 0.0, %v260
    %262 = vmatprep.mubr.f32.mxu0 0.0
    %263 = vmatmul.mubr.f32.gmra.mxu0 %v112
    %v264 = vpop.f32.mrf.mxu0
    %v265 = vadd.f32 0.0, %v264
    %v266 = vpop.f32.mrf.mxu0
    %v267 = vadd.f32 0.0, %v266
    %268 = vdwg.mxu0
    %269 = vmatprep.subr.mxu0 0.0
    %270 = vmatpush1.msra.mxu0 0.0
    %271 = vmatprep.subr.mxu0 0.0
    %272 = vmatpush1.msra.mxu0 0.0
    %273 = vmatprep.subr.mxu0 0.0
    %274 = vmatpush1.msra.mxu0 0.0
    %275 = vmatprep.subr.mxu0 0.0
    %276 = vmatpush1.msra.mxu0 0.0
    %277 = vmatprep.subr.mxu0 0.0
    %278 = vmatpush1.msra.mxu0 0.0
    %279 = vmatprep.subr.mxu0 0.0
    %280 = vmatpush1.msra.mxu0 0.0
    %281 = vmatprep.subr.mxu0 0.0
    %282 = vmatpush1.msra.mxu0 0.0
    %283 = vmatprep.subr.mxu0 0.0
    %284 = vmatpush1.msra.mxu0 0.0
    %285 = vmatprep.subr.mxu0 0.0
    %286 = vmatpush1.msra.mxu0 0.0
    %287 = vmatprep.subr.mxu0 0.0
    %288 = vmatpush1.msra.mxu0 0.0
    %289 = vmatprep.subr.mxu0 0.0
    %290 = vmatpush1.msra.mxu0 0.0
    %291 = vmatprep.subr.mxu0 0.0
    %292 = vmatpush1.msra.mxu0 0.0
    %293 = vmatprep.subr.mxu0 0.0
    %294 = vmatpush1.msra.mxu0 0.0
    %295 = vmatprep.subr.mxu0 0.0
    %296 = vmatpush1.msra.mxu0 0.0
    %297 = vmatprep.subr.mxu0 0.0
    %298 = vmatpush1.msra.mxu0 0.0
    %299 = vmatprep.subr.mxu0 %v67
    %300 = vmatpush1.msra.mxu0 %v66
    %301 = vmatprep.subr.mxu0 0.0
    %302 = vmatpush2.msra.mxu0 0.0
    %303 = vmatprep.subr.mxu0 0.0
    %304 = vmatpush2.msra.mxu0 0.0
    %305 = vmatprep.subr.mxu0 0.0
    %306 = vmatpush2.msra.mxu0 0.0
    %307 = vmatprep.subr.mxu0 0.0
    %308 = vmatpush2.msra.mxu0 0.0
    %309 = vmatprep.subr.mxu0 0.0
    %310 = vmatpush2.msra.mxu0 0.0
    %311 = vmatprep.subr.mxu0 0.0
    %312 = vmatpush2.msra.mxu0 0.0
    %313 = vmatprep.subr.mxu0 0.0
    %314 = vmatpush2.msra.mxu0 0.0
    %315 = vmatprep.subr.mxu0 0.0
    %316 = vmatpush2.msra.mxu0 0.0
    %317 = vmatprep.subr.mxu0 0.0
    %318 = vmatpush2.msra.mxu0 0.0
    %319 = vmatprep.subr.mxu0 0.0
    %320 = vmatpush2.msra.mxu0 0.0
    %321 = vmatprep.subr.mxu0 0.0
    %322 = vmatpush2.msra.mxu0 0.0
    %323 = vmatprep.subr.mxu0 0.0
    %324 = vmatpush2.msra.mxu0 0.0
    %325 = vmatprep.subr.mxu0 0.0
    %326 = vmatpush2.msra.mxu0 0.0
    %327 = vmatprep.subr.mxu0 0.0
    %328 = vmatpush2.msra.mxu0 0.0
    %329 = vmatprep.subr.mxu0 0.0
    %330 = vmatpush2.msra.mxu0 0.0
    %331 = vmatprep.subr.mxu0 0.0
    %332 = vmatpush2.msra.mxu0 0.0
    %333 = vmatprep.mubr.f32.mxu0 0.0
    %334 = vmatmul.mubr.f32.gmra.mxu0 %v70
    %v335 = vpop.f32.mrf.mxu0
    %v336 = vadd.f32 0.0, %v335
    %v337 = vpop.f32.mrf.mxu0
    %v338 = vadd.f32 0.0, %v337
    %339 = vmatprep.mubr.f32.mxu0 0.0
    %340 = vmatmul.mubr.f32.gmra.mxu0 %v73
    %v341 = vpop.f32.mrf.mxu0
    %v342 = vadd.f32 0.0, %v341
    %v343 = vpop.f32.mrf.mxu0
    %v344 = vadd.f32 0.0, %v343
    %345 = vmatprep.mubr.f32.mxu0 0.0
    %346 = vmatmul.mubr.f32.gmra.mxu0 %v76
    %v347 = vpop.f32.mrf.mxu0
    %v348 = vadd.f32 0.0, %v347
    %v349 = vpop.f32.mrf.mxu0
    %v350 = vadd.f32 0.0, %v349
    %351 = vmatprep.mubr.f32.mxu0 0.0
    %352 = vmatmul.mubr.f32.gmra.mxu0 %v79
    %v353 = vpop.f32.mrf.mxu0
    %v354 = vadd.f32 0.0, %v353
    %v355 = vpop.f32.mrf.mxu0
    %v356 = vadd.f32 0.0, %v355
    %357 = vmatprep.mubr.f32.mxu0 0.0
    %358 = vmatmul.mubr.f32.gmra.mxu0 %v82
    %v359 = vpop.f32.mrf.mxu0
    %v360 = vadd.f32 0.0, %v359
    %v361 = vpop.f32.mrf.mxu0
    %v362 = vadd.f32 0.0, %v361
    %363 = vmatprep.mubr.f32.mxu0 0.0
    %364 = vmatmul.mubr.f32.gmra.mxu0 %v85
    %v365 = vpop.f32.mrf.mxu0
    %v366 = vadd.f32 0.0, %v365
    %v367 = vpop.f32.mrf.mxu0
    %v368 = vadd.f32 0.0, %v367
    %369 = vmatprep.mubr.f32.mxu0 0.0
    %370 = vmatmul.mubr.f32.gmra.mxu0 %v88
    %v371 = vpop.f32.mrf.mxu0
    %v372 = vadd.f32 0.0, %v371
    %v373 = vpop.f32.mrf.mxu0
    %v374 = vadd.f32 0.0, %v373
    %375 = vmatprep.mubr.f32.mxu0 0.0
    %376 = vmatmul.mubr.f32.gmra.mxu0 %v91
    %v377 = vpop.f32.mrf.mxu0
    %v378 = vadd.f32 0.0, %v377
    %v379 = vpop.f32.mrf.mxu0
    %v380 = vadd.f32 0.0, %v379
    %381 = vmatprep.mubr.f32.mxu0 0.0
    %382 = vmatmul.mubr.f32.gmra.mxu0 %v94
    %v383 = vpop.f32.mrf.mxu0
    %v384 = vadd.f32 0.0, %v383
    %v385 = vpop.f32.mrf.mxu0
    %v386 = vadd.f32 0.0, %v385
    %387 = vmatprep.mubr.f32.mxu0 0.0
    %388 = vmatmul.mubr.f32.gmra.mxu0 %v97
    %v389 = vpop.f32.mrf.mxu0
    %v390 = vadd.f32 0.0, %v389
    %v391 = vpop.f32.mrf.mxu0
    %v392 = vadd.f32 0.0, %v391
    %393 = vmatprep.mubr.f32.mxu0 0.0
    %394 = vmatmul.mubr.f32.gmra.mxu0 %v100
    %v395 = vpop.f32.mrf.mxu0
    %v396 = vadd.f32 0.0, %v395
    %v397 = vpop.f32.mrf.mxu0
    %v398 = vadd.f32 0.0, %v397
    %399 = vmatprep.mubr.f32.mxu0 0.0
    %400 = vmatmul.mubr.f32.gmra.mxu0 %v103
    %v401 = vpop.f32.mrf.mxu0
    %v402 = vadd.f32 0.0, %v401
    %v403 = vpop.f32.mrf.mxu0
    %v404 = vadd.f32 0.0, %v403
    %405 = vmatprep.mubr.f32.mxu0 0.0
    %406 = vmatmul.mubr.f32.gmra.mxu0 %v106
    %v407 = vpop.f32.mrf.mxu0
    %v408 = vadd.f32 0.0, %v407
    %v409 = vpop.f32.mrf.mxu0
    %v410 = vadd.f32 0.0, %v409
    %411 = vmatprep.mubr.f32.mxu0 0.0
    %412 = vmatmul.mubr.f32.gmra.mxu0 %v109
    %v413 = vpop.f32.mrf.mxu0
    %v414 = vadd.f32 0.0, %v413
    %v415 = vpop.f32.mrf.mxu0
    %v416 = vadd.f32 0.0, %v415
    %417 = vmatprep.mubr.f32.mxu0 0.0
    %418 = vmatmul.mubr.f32.gmra.mxu0 %v112
    %v419 = vpop.f32.mrf.mxu0
    %v420 = vadd.f32 0.0, %v419
    %v421 = vpop.f32.mrf.mxu0
    %v422 = vadd.f32 0.0, %v421
    %423 = vdwg.mxu0
    %424 = vst [vmem:[#allocation2] sm:$0xff] %v181
    %425 = vst [vmem:[#allocation2 + $0x8] sm:$0xff] %v183
    %426 = vst [vmem:[#allocation2 + $0x10] sm:$0xff] %v336
    %427 = vst [vmem:[#allocation2 + $0x18] sm:$0xff] %v338
    %428 = vst [vmem:[#allocation2 + $0x20] sm:$0xff] %v187
    %429 = vst [vmem:[#allocation2 + $0x28] sm:$0xff] %v189
    %430 = vst [vmem:[#allocation2 + $0x30] sm:$0xff] %v342
    %431 = vst [vmem:[#allocation2 + $0x38] sm:$0xff] %v344
    %432 = vst [vmem:[#allocation2 + $0x40] sm:$0xff] %v193
    %433 = vst [vmem:[#allocation2 + $0x48] sm:$0xff] %v195
    %434 = vst [vmem:[#allocation2 + $0x50] sm:$0xff] %v348
    %435 = vst [vmem:[#allocation2 + $0x58] sm:$0xff] %v350
    %436 = vst [vmem:[#allocation2 + $0x60] sm:$0xff] %v199
    %437 = vst [vmem:[#allocation2 + $0x68] sm:$0xff] %v201
    %438 = vst [vmem:[#allocation2 + $0x70] sm:$0xff] %v354
    %439 = vst [vmem:[#allocation2 + $0x78] sm:$0xff] %v356
    %440 = vst [vmem:[#allocation2 + $0x80] sm:$0xff] %v205
    %441 = vst [vmem:[#allocation2 + $0x88] sm:$0xff] %v207
    %442 = vst [vmem:[#allocation2 + $0x90] sm:$0xff] %v360
    %443 = vst [vmem:[#allocation2 + $0x98] sm:$0xff] %v362
    %444 = vst [vmem:[#allocation2 + $0xa0] sm:$0xff] %v211
    %445 = vst [vmem:[#allocation2 + $0xa8] sm:$0xff] %v213
    %446 = vst [vmem:[#allocation2 + $0xb0] sm:$0xff] %v366
    %447 = vst [vmem:[#allocation2 + $0xb8] sm:$0xff] %v368
    %448 = vst [vmem:[#allocation2 + $0xc0] sm:$0xff] %v217
    %449 = vst [vmem:[#allocation2 + $0xc8] sm:$0xff] %v219
    %450 = vst [vmem:[#allocation2 + $0xd0] sm:$0xff] %v372
    %451 = vst [vmem:[#allocation2 + $0xd8] sm:$0xff] %v374
    %452 = vst [vmem:[#allocation2 + $0xe0] sm:$0xff] %v223
    %453 = vst [vmem:[#allocation2 + $0xe8] sm:$0xff] %v225
    %454 = vst [vmem:[#allocation2 + $0xf0] sm:$0xff] %v378
    %455 = vst [vmem:[#allocation2 + $0xf8] sm:$0xff] %v380
    %456 = vst [vmem:[#allocation2 + $0x100] sm:$0xff] %v229
    %457 = vst [vmem:[#allocation2 + $0x108] sm:$0xff] %v231
    %458 = vst [vmem:[#allocation2 + $0x110] sm:$0xff] %v384
    %459 = vst [vmem:[#allocation2 + $0x118] sm:$0xff] %v386
    %460 = vst [vmem:[#allocation2 + $0x120] sm:$0xff] %v235
    %461 = vst [vmem:[#allocation2 + $0x128] sm:$0xff] %v237
    %462 = vst [vmem:[#allocation2 + $0x130] sm:$0xff] %v390
    %463 = vst [vmem:[#allocation2 + $0x138] sm:$0xff] %v392
    %464 = vst [vmem:[#allocation2 + $0x140] sm:$0xff] %v241
    %465 = vst [vmem:[#allocation2 + $0x148] sm:$0xff] %v243
    %466 = vst [vmem:[#allocation2 + $0x150] sm:$0xff] %v396
    %467 = vst [vmem:[#allocation2 + $0x158] sm:$0xff] %v398
    %468 = vst [vmem:[#allocation2 + $0x160] sm:$0xff] %v247
    %469 = vst [vmem:[#allocation2 + $0x168] sm:$0xff] %v249
    %470 = vst [vmem:[#allocation2 + $0x170] sm:$0xff] %v402
    %471 = vst [vmem:[#allocation2 + $0x178] sm:$0xff] %v404
    %472 = vst [vmem:[#allocation2 + $0x180] sm:$0xff] %v253
    %473 = vst [vmem:[#allocation2 + $0x188] sm:$0xff] %v255
    %474 = vst [vmem:[#allocation2 + $0x190] sm:$0xff] %v408
    %475 = vst [vmem:[#allocation2 + $0x198] sm:$0xff] %v410
    %476 = vst [vmem:[#allocation2 + $0x1a0] sm:$0xff] %v259
    %477 = vst [vmem:[#allocation2 + $0x1a8] sm:$0xff] %v261
    %478 = vst [vmem:[#allocation2 + $0x1b0] sm:$0xff] %v414
    %479 = vst [vmem:[#allocation2 + $0x1b8] sm:$0xff] %v416
    %480 = vst [vmem:[#allocation2 + $0x1c0] sm:$0xff] %v265
    %481 = vst [vmem:[#allocation2 + $0x1c8] sm:$0xff] %v267
    %482 = vst [vmem:[#allocation2 + $0x1d0] sm:$0xff] %v420
    %483 = vst [vmem:[#allocation2 + $0x1d8] sm:$0xff] %v422
    %v484 = vld [vmem:[#allocation4] sm:$0xff]
    %v485 = vld [vmem:[#allocation4 + $0x8] sm:$0xff]
    %v486 = vld [vmem:[#allocation4 + $0x10] sm:$0xff]
    %v487 = vld [vmem:[#allocation4 + $0x18] sm:$0xff]
    %v488 = vld [vmem:[#allocation4 + $0x20] sm:$0xff]
    %v489 = vld [vmem:[#allocation4 + $0x28] sm:$0xff]
    %v490 = vld [vmem:[#allocation4 + $0x30] sm:$0xff]
    %v491 = vld [vmem:[#allocation4 + $0x38] sm:$0xff]
    %v492 = vld [vmem:[#allocation4 + $0x40] sm:$0xff]
    %v493 = vld [vmem:[#allocation4 + $0x48] sm:$0xff]
    %v494 = vld [vmem:[#allocation4 + $0x50] sm:$0xff]
    %v495 = vld [vmem:[#allocation4 + $0x58] sm:$0xff]
    %v496 = vld [vmem:[#allocation4 + $0x60] sm:$0xff]
    %v497 = vld [vmem:[#allocation4 + $0x68] sm:$0xff]
    %v498 = vld [vmem:[#allocation4 + $0x70] sm:$0xff]
    %v499 = vld [vmem:[#allocation4 + $0x78] sm:$0xff]
    %v500 = vld [vmem:[#allocation4 + $0x80] sm:$0xff]
    %v501 = vld [vmem:[#allocation4 + $0x88] sm:$0xff]
    %v502 = vld [vmem:[#allocation4 + $0x90] sm:$0xff]
    %v503 = vld [vmem:[#allocation4 + $0x98] sm:$0xff]
    %v504 = vld [vmem:[#allocation4 + $0xa0] sm:$0xff]
    %v505 = vld [vmem:[#allocation4 + $0xa8] sm:$0xff]
    %v506 = vld [vmem:[#allocation4 + $0xb0] sm:$0xff]
    %v507 = vld [vmem:[#allocation4 + $0xb8] sm:$0xff]
    %v508 = vld [vmem:[#allocation4 + $0xc0] sm:$0xff]
    %v509 = vld [vmem:[#allocation4 + $0xc8] sm:$0xff]
    %v510 = vld [vmem:[#allocation4 + $0xd0] sm:$0xff]
    %v511 = vld [vmem:[#allocation4 + $0xd8] sm:$0xff]
    %v512 = vld [vmem:[#allocation4 + $0xe0] sm:$0xff]
    %v513 = vld [vmem:[#allocation4 + $0xe8] sm:$0xff]
    %v514 = vld [vmem:[#allocation4 + $0xf0] sm:$0xff]
    %v515 = vld [vmem:[#allocation4 + $0xf8] sm:$0xff]
    %v516 = vld [vmem:[#allocation4 + $0x100] sm:$0xff]
    %v517 = vld [vmem:[#allocation4 + $0x108] sm:$0xff]
    %v518 = vld [vmem:[#allocation4 + $0x110] sm:$0xff]
    %v519 = vld [vmem:[#allocation4 + $0x118] sm:$0xff]
    %v520 = vld [vmem:[#allocation4 + $0x120] sm:$0xff]
    %v521 = vld [vmem:[#allocation4 + $0x128] sm:$0xff]
    %v522 = vld [vmem:[#allocation4 + $0x130] sm:$0xff]
    %v523 = vld [vmem:[#allocation4 + $0x138] sm:$0xff]
    %v524 = vld [vmem:[#allocation4 + $0x140] sm:$0xff]
    %v525 = vld [vmem:[#allocation4 + $0x148] sm:$0xff]
    %v526 = vld [vmem:[#allocation4 + $0x150] sm:$0xff]
    %v527 = vld [vmem:[#allocation4 + $0x158] sm:$0xff]
    %v528 = vld [vmem:[#allocation4 + $0x160] sm:$0xff]
    %v529 = vld [vmem:[#allocation4 + $0x168] sm:$0xff]
    %v530 = vld [vmem:[#allocation4 + $0x170] sm:$0xff]
    %v531 = vld [vmem:[#allocation4 + $0x178] sm:$0xff]
    %v532 = vld [vmem:[#allocation4 + $0x180] sm:$0xff]
    %v533 = vld [vmem:[#allocation4 + $0x188] sm:$0xff]
    %v534 = vld [vmem:[#allocation4 + $0x190] sm:$0xff]
    %v535 = vld [vmem:[#allocation4 + $0x198] sm:$0xff]
    %v536 = vld [vmem:[#allocation4 + $0x1a0] sm:$0xff]
    %v537 = vld [vmem:[#allocation4 + $0x1a8] sm:$0xff]
    %v538 = vld [vmem:[#allocation4 + $0x1b0] sm:$0xff]
    %v539 = vld [vmem:[#allocation4 + $0x1b8] sm:$0xff]
    %v540 = vld [vmem:[#allocation4 + $0x1c0] sm:$0xff]
    %v541 = vld [vmem:[#allocation4 + $0x1c8] sm:$0xff]
    %v542 = vld [vmem:[#allocation4 + $0x1d0] sm:$0xff]
    %v543 = vld [vmem:[#allocation4 + $0x1d8] sm:$0xff]
    %v544 = vld [vmem:[#allocation4 + $0x1e0] sm:$0xff]
    %v545 = vld [vmem:[#allocation4 + $0x1e8] sm:$0xff]
    %v546 = vld [vmem:[#allocation4 + $0x1f0] sm:$0xff]
    %v547 = vld [vmem:[#allocation4 + $0x1f8] sm:$0xff]
    %v548 = vld [vmem:[#allocation2] sm:$0xff]
    %v549 = vld [vmem:[#allocation2 + $0x8] sm:$0xff]
    %v550 = vld [vmem:[#allocation2 + $0x10] sm:$0xff]
    %v551 = vld [vmem:[#allocation2 + $0x18] sm:$0xff]
    %v552 = vld [vmem:[%s1] sm:$0xf]
    %v554 = vlaneseq
    %v555 = vshrl.u32 %v554, 7
    %v556 = vsub.s32 0, %v555
    %v557 = vrot.slane %v552, %v556
    %v558 = vlaneseq
    %v559 = vshrl.u32 %v558, 7
    %v560 = vsub.s32 1, %v559
    %v561 = vrot.slane %v552, %v560
    %v562 = vlaneseq
    %v563 = vshrl.u32 %v562, 7
    %v564 = vsub.s32 2, %v563
    %v565 = vrot.slane %v552, %v564
    %v566 = vlaneseq
    %v567 = vshrl.u32 %v566, 7
    %v568 = vsub.s32 3, %v567
    %v569 = vrot.slane %v552, %v568
    %v574 = vmul.f32 %v548, %v557
    %v575 = vmul.f32 %v549, %v561
    %v576 = vmul.f32 %v550, %v565
    %v577 = vmul.f32 %v551, %v569
    %v578 = vld [vmem:[%s4] sm:$0xf]
    %v580 = vlaneseq
    %v581 = vshrl.u32 %v580, 7
    %v582 = vsub.s32 0, %v581
    %v583 = vrot.slane %v578, %v582
    %v584 = vlaneseq
    %v585 = vshrl.u32 %v584, 7
    %v586 = vsub.s32 1, %v585
    %v587 = vrot.slane %v578, %v586
    %v588 = vlaneseq
    %v589 = vshrl.u32 %v588, 7
    %v590 = vsub.s32 2, %v589
    %v591 = vrot.slane %v578, %v590
    %v592 = vlaneseq
    %v593 = vshrl.u32 %v592, 7
    %v594 = vsub.s32 3, %v593
    %v595 = vrot.slane %v578, %v594
    %v600 = vadd.f32 %v574, %v583
    %v601 = vadd.f32 %v575, %v587
    %v602 = vadd.f32 %v576, %v591
    %v603 = vadd.f32 %v577, %v595
    %604 = vmatprep.subr.mxu0 %v545
    %605 = vmatpush1.msra.mxu0 %v544
    %606 = vmatprep.subr.mxu0 %v541
    %607 = vmatpush1.msra.mxu0 %v540
    %608 = vmatprep.subr.mxu0 %v537
    %609 = vmatpush1.msra.mxu0 %v536
    %610 = vmatprep.subr.mxu0 %v533
    %611 = vmatpush1.msra.mxu0 %v532
    %612 = vmatprep.subr.mxu0 %v529
    %613 = vmatpush1.msra.mxu0 %v528
    %614 = vmatprep.subr.mxu0 %v525
    %615 = vmatpush1.msra.mxu0 %v524
    %616 = vmatprep.subr.mxu0 %v521
    %617 = vmatpush1.msra.mxu0 %v520
    %618 = vmatprep.subr.mxu0 %v517
    %619 = vmatpush1.msra.mxu0 %v516
    %620 = vmatprep.subr.mxu0 %v513
    %621 = vmatpush1.msra.mxu0 %v512
    %622 = vmatprep.subr.mxu0 %v509
    %623 = vmatpush1.msra.mxu0 %v508
    %624 = vmatprep.subr.mxu0 %v505
    %625 = vmatpush1.msra.mxu0 %v504
    %626 = vmatprep.subr.mxu0 %v501
    %627 = vmatpush1.msra.mxu0 %v500
    %628 = vmatprep.subr.mxu0 %v497
    %629 = vmatpush1.msra.mxu0 %v496
    %630 = vmatprep.subr.mxu0 %v493
    %631 = vmatpush1.msra.mxu0 %v492
    %632 = vmatprep.subr.mxu0 %v489
    %633 = vmatpush1.msra.mxu0 %v488
    %634 = vmatprep.subr.mxu0 %v485
    %635 = vmatpush1.msra.mxu0 %v484
    %636 = vmatprep.subr.mxu0 0.0
    %637 = vmatpush2.msra.mxu0 0.0
    %638 = vmatprep.subr.mxu0 0.0
    %639 = vmatpush2.msra.mxu0 0.0
    %640 = vmatprep.subr.mxu0 0.0
    %641 = vmatpush2.msra.mxu0 0.0
    %642 = vmatprep.subr.mxu0 0.0
    %643 = vmatpush2.msra.mxu0 0.0
    %644 = vmatprep.subr.mxu0 0.0
    %645 = vmatpush2.msra.mxu0 0.0
    %646 = vmatprep.subr.mxu0 0.0
    %647 = vmatpush2.msra.mxu0 0.0
    %648 = vmatprep.subr.mxu0 0.0
    %649 = vmatpush2.msra.mxu0 0.0
    %650 = vmatprep.subr.mxu0 0.0
    %651 = vmatpush2.msra.mxu0 0.0
    %652 = vmatprep.subr.mxu0 0.0
    %653 = vmatpush2.msra.mxu0 0.0
    %654 = vmatprep.subr.mxu0 0.0
    %655 = vmatpush2.msra.mxu0 0.0
    %656 = vmatprep.subr.mxu0 0.0
    %657 = vmatpush2.msra.mxu0 0.0
    %658 = vmatprep.subr.mxu0 0.0
    %659 = vmatpush2.msra.mxu0 0.0
    %660 = vmatprep.subr.mxu0 0.0
    %661 = vmatpush2.msra.mxu0 0.0
    %662 = vmatprep.subr.mxu0 0.0
    %663 = vmatpush2.msra.mxu0 0.0
    %664 = vmatprep.subr.mxu0 0.0
    %665 = vmatpush2.msra.mxu0 0.0
    %666 = vmatprep.subr.mxu0 0.0
    %667 = vmatpush2.msra.mxu0 0.0
    %668 = vmatprep.mubr.f32.mxu0 0.0
    %669 = vmatmul.mubr.f32.gmra.mxu0 0.0
    %v670 = vpop.f32.mrf.mxu0
    %v671 = vadd.f32 0.0, %v670
    %v672 = vpop.f32.mrf.mxu0
    %v673 = vadd.f32 0.0, %v672
    %674 = vdwg.mxu0
    %675 = vmatprep.subr.mxu0 %v547
    %676 = vmatpush1.msra.mxu0 %v546
    %677 = vmatprep.subr.mxu0 %v543
    %678 = vmatpush1.msra.mxu0 %v542
    %679 = vmatprep.subr.mxu0 %v539
    %680 = vmatpush1.msra.mxu0 %v538
    %681 = vmatprep.subr.mxu0 %v535
    %682 = vmatpush1.msra.mxu0 %v534
    %683 = vmatprep.subr.mxu0 %v531
    %684 = vmatpush1.msra.mxu0 %v530
    %685 = vmatprep.subr.mxu0 %v527
    %686 = vmatpush1.msra.mxu0 %v526
    %687 = vmatprep.subr.mxu0 %v523
    %688 = vmatpush1.msra.mxu0 %v522
    %689 = vmatprep.subr.mxu0 %v519
    %690 = vmatpush1.msra.mxu0 %v518
    %691 = vmatprep.subr.mxu0 %v515
    %692 = vmatpush1.msra.mxu0 %v514
    %693 = vmatprep.subr.mxu0 %v511
    %694 = vmatpush1.msra.mxu0 %v510
    %695 = vmatprep.subr.mxu0 %v507
    %696 = vmatpush1.msra.mxu0 %v506
    %697 = vmatprep.subr.mxu0 %v503
    %698 = vmatpush1.msra.mxu0 %v502
    %699 = vmatprep.subr.mxu0 %v499
    %700 = vmatpush1.msra.mxu0 %v498
    %701 = vmatprep.subr.mxu0 %v495
    %702 = vmatpush1.msra.mxu0 %v494
    %703 = vmatprep.subr.mxu0 %v491
    %704 = vmatpush1.msra.mxu0 %v490
    %705 = vmatprep.subr.mxu0 %v487
    %706 = vmatpush1.msra.mxu0 %v486
    %707 = vmatprep.subr.mxu0 0.0
    %708 = vmatpush2.msra.mxu0 0.0
    %709 = vmatprep.subr.mxu0 0.0
    %710 = vmatpush2.msra.mxu0 0.0
    %711 = vmatprep.subr.mxu0 0.0
    %712 = vmatpush2.msra.mxu0 0.0
    %713 = vmatprep.subr.mxu0 0.0
    %714 = vmatpush2.msra.mxu0 0.0
    %715 = vmatprep.subr.mxu0 0.0
    %716 = vmatpush2.msra.mxu0 0.0
    %717 = vmatprep.subr.mxu0 0.0
    %718 = vmatpush2.msra.mxu0 0.0
    %719 = vmatprep.subr.mxu0 0.0
    %720 = vmatpush2.msra.mxu0 0.0
    %721 = vmatprep.subr.mxu0 0.0
    %722 = vmatpush2.msra.mxu0 0.0
    %723 = vmatprep.subr.mxu0 0.0
    %724 = vmatpush2.msra.mxu0 0.0
    %725 = vmatprep.subr.mxu0 0.0
    %726 = vmatpush2.msra.mxu0 0.0
    %727 = vmatprep.subr.mxu0 0.0
    %728 = vmatpush2.msra.mxu0 0.0
    %729 = vmatprep.subr.mxu0 0.0
    %730 = vmatpush2.msra.mxu0 0.0
    %731 = vmatprep.subr.mxu0 0.0
    %732 = vmatpush2.msra.mxu0 0.0
    %733 = vmatprep.subr.mxu0 0.0
    %734 = vmatpush2.msra.mxu0 0.0
    %735 = vmatprep.subr.mxu0 0.0
    %736 = vmatpush2.msra.mxu0 0.0
    %737 = vmatprep.subr.mxu0 0.0
    %738 = vmatpush2.msra.mxu0 0.0
    %739 = vmatprep.mubr.f32.mxu0 0.0
    %740 = vmatmul.mubr.f32.gmra.mxu0 0.0
    %v741 = vpop.f32.mrf.mxu0
    %v742 = vadd.f32 0.0, %v741
    %v743 = vpop.f32.mrf.mxu0
    %v744 = vadd.f32 0.0, %v743
    %745 = vdwg.mxu0
    %v746 = vadd.f32 %v600, %v671
    %v747 = vadd.f32 %v601, %v673
    %v748 = vadd.f32 %v602, %v742
    %v749 = vadd.f32 %v603, %v744
    %v750 = vsub.f32 0.0, %v746
    %v751 = vsub.f32 0.0, %v747
    %v752 = vsub.f32 0.0, %v748
    %v753 = vmul.f32 %v750, 1.442695
    %v754 = vpow.pop %v753
    %v755 = vmul.f32 %v751, 1.442695
    %v756 = vpow.pop %v755
    %v757 = vmul.f32 %v752, 1.442695
    %v758 = vpow.pop %v757
    %v759 = vadd.f32 %v754, 1.0
    %v760 = vadd.f32 %v756, 1.0
    %v761 = vadd.f32 %v758, 1.0
    %v762 = vrcp.pop %v759
    %v763 = vmul.f32 1.0, %v762
    %v764 = vrcp.pop %v760
    %v765 = vmul.f32 1.0, %v764
    %v766 = vrcp.pop %v761
    %v767 = vmul.f32 1.0, %v766
    %v768 = vtanh.pop %v749
    %v769 = vmul.f32 %v765, 0.0
    %v770 = vmul.f32 %v763, %v768
    %v771 = vadd.f32 %v769, %v770
    %v772 = vtanh.pop %v771
    %v773 = vmul.f32 %v767, %v772
    %774 = vst [vmem:[#allocation3] sm:$0xff] %v773
    %v775 = vld [vmem:[#allocation2 + $0x20] sm:$0xff]
    %v776 = vld [vmem:[#allocation2 + $0x28] sm:$0xff]
    %v777 = vld [vmem:[#allocation2 + $0x30] sm:$0xff]
    %v778 = vld [vmem:[#allocation2 + $0x38] sm:$0xff]
    %s779 = scalar_lea.vmem %s1, 4
    %v780 = vld [vmem:[%s779] sm:$0xf]
    %v782 = vlaneseq
    %v783 = vshrl.u32 %v782, 7
    %v784 = vsub.s32 0, %v783
    %v785 = vrot.slane %v780, %v784
    %v786 = vlaneseq
    %v787 = vshrl.u32 %v786, 7
    %v788 = vsub.s32 1, %v787
    %v789 = vrot.slane %v780, %v788
    %v790 = vlaneseq
    %v791 = vshrl.u32 %v790, 7
    %v792 = vsub.s32 2, %v791
    %v793 = vrot.slane %v780, %v792
    %v794 = vlaneseq
    %v795 = vshrl.u32 %v794, 7
    %v796 = vsub.s32 3, %v795
    %v797 = vrot.slane %v780, %v796
    %v802 = vmul.f32 %v775, %v785
    %v803 = vmul.f32 %v776, %v789
    %v804 = vmul.f32 %v777, %v793
    %v805 = vmul.f32 %v778, %v797
    %s806 = scalar_lea.vmem %s4, 4
    %v807 = vld [vmem:[%s806] sm:$0xf]
    %v809 = vlaneseq
    %v810 = vshrl.u32 %v809, 7
    %v811 = vsub.s32 0, %v810
    %v812 = vrot.slane %v807, %v811
    %v813 = vlaneseq
    %v814 = vshrl.u32 %v813, 7
    %v815 = vsub.s32 1, %v814
    %v816 = vrot.slane %v807, %v815
    %v817 = vlaneseq
    %v818 = vshrl.u32 %v817, 7
    %v819 = vsub.s32 2, %v818
    %v820 = vrot.slane %v807, %v819
    %v821 = vlaneseq
    %v822 = vshrl.u32 %v821, 7
    %v823 = vsub.s32 3, %v822
    %v824 = vrot.slane %v807, %v823
    %v829 = vadd.f32 %v802, %v812
    %v830 = vadd.f32 %v803, %v816
    %v831 = vadd.f32 %v804, %v820
    %v832 = vadd.f32 %v805, %v824
    %833 = vmatprep.subr.mxu0 %v545
    %834 = vmatpush1.msra.mxu0 %v544
    %835 = vmatprep.subr.mxu0 %v541
    %836 = vmatpush1.msra.mxu0 %v540
    %837 = vmatprep.subr.mxu0 %v537
    %838 = vmatpush1.msra.mxu0 %v536
    %839 = vmatprep.subr.mxu0 %v533
    %840 = vmatpush1.msra.mxu0 %v532
    %841 = vmatprep.subr.mxu0 %v529
    %842 = vmatpush1.msra.mxu0 %v528
    %843 = vmatprep.subr.mxu0 %v525
    %844 = vmatpush1.msra.mxu0 %v524
    %845 = vmatprep.subr.mxu0 %v521
    %846 = vmatpush1.msra.mxu0 %v520
    %847 = vmatprep.subr.mxu0 %v517
    %848 = vmatpush1.msra.mxu0 %v516
    %849 = vmatprep.subr.mxu0 %v513
    %850 = vmatpush1.msra.mxu0 %v512
    %851 = vmatprep.subr.mxu0 %v509
    %852 = vmatpush1.msra.mxu0 %v508
    %853 = vmatprep.subr.mxu0 %v505
    %854 = vmatpush1.msra.mxu0 %v504
    %855 = vmatprep.subr.mxu0 %v501
    %856 = vmatpush1.msra.mxu0 %v500
    %857 = vmatprep.subr.mxu0 %v497
    %858 = vmatpush1.msra.mxu0 %v496
    %859 = vmatprep.subr.mxu0 %v493
    %860 = vmatpush1.msra.mxu0 %v492
    %861 = vmatprep.subr.mxu0 %v489
    %862 = vmatpush1.msra.mxu0 %v488
    %863 = vmatprep.subr.mxu0 %v485
    %864 = vmatpush1.msra.mxu0 %v484
    %865 = vmatprep.subr.mxu0 0.0
    %866 = vmatpush2.msra.mxu0 0.0
    %867 = vmatprep.subr.mxu0 0.0
    %868 = vmatpush2.msra.mxu0 0.0
    %869 = vmatprep.subr.mxu0 0.0
    %870 = vmatpush2.msra.mxu0 0.0
    %871 = vmatprep.subr.mxu0 0.0
    %872 = vmatpush2.msra.mxu0 0.0
    %873 = vmatprep.subr.mxu0 0.0
    %874 = vmatpush2.msra.mxu0 0.0
    %875 = vmatprep.subr.mxu0 0.0
    %876 = vmatpush2.msra.mxu0 0.0
    %877 = vmatprep.subr.mxu0 0.0
    %878 = vmatpush2.msra.mxu0 0.0
    %879 = vmatprep.subr.mxu0 0.0
    %880 = vmatpush2.msra.mxu0 0.0
    %881 = vmatprep.subr.mxu0 0.0
    %882 = vmatpush2.msra.mxu0 0.0
    %883 = vmatprep.subr.mxu0 0.0
    %884 = vmatpush2.msra.mxu0 0.0
    %885 = vmatprep.subr.mxu0 0.0
    %886 = vmatpush2.msra.mxu0 0.0
    %887 = vmatprep.subr.mxu0 0.0
    %888 = vmatpush2.msra.mxu0 0.0
    %889 = vmatprep.subr.mxu0 0.0
    %890 = vmatpush2.msra.mxu0 0.0
    %891 = vmatprep.subr.mxu0 0.0
    %892 = vmatpush2.msra.mxu0 0.0
    %893 = vmatprep.subr.mxu0 0.0
    %894 = vmatpush2.msra.mxu0 0.0
    %895 = vmatprep.subr.mxu0 0.0
    %896 = vmatpush2.msra.mxu0 0.0
    %897 = vmatprep.mubr.f32.mxu0 0.0
    %898 = vmatmul.mubr.f32.gmra.mxu0 %v773
    %v899 = vpop.f32.mrf.mxu0
    %v900 = vadd.f32 0.0, %v899
    %v901 = vpop.f32.mrf.mxu0
    %v902 = vadd.f32 0.0, %v901
    %903 = vdwg.mxu0
    %904 = vmatprep.subr.mxu0 %v547
    %905 = vmatpush1.msra.mxu0 %v546
    %906 = vmatprep.subr.mxu0 %v543
    %907 = vmatpush1.msra.mxu0 %v542
    %908 = vmatprep.subr.mxu0 %v539
    %909 = vmatpush1.msra.mxu0 %v538
    %910 = vmatprep.subr.mxu0 %v535
    %911 = vmatpush1.msra.mxu0 %v534
    %912 = vmatprep.subr.mxu0 %v531
    %913 = vmatpush1.msra.mxu0 %v530
    %914 = vmatprep.subr.mxu0 %v527
    %915 = vmatpush1.msra.mxu0 %v526
    %916 = vmatprep.subr.mxu0 %v523
    %917 = vmatpush1.msra.mxu0 %v522
    %918 = vmatprep.subr.mxu0 %v519
    %919 = vmatpush1.msra.mxu0 %v518
    %920 = vmatprep.subr.mxu0 %v515
    %921 = vmatpush1.msra.mxu0 %v514
    %922 = vmatprep.subr.mxu0 %v511
    %923 = vmatpush1.msra.mxu0 %v510
    %924 = vmatprep.subr.mxu0 %v507
    %925 = vmatpush1.msra.mxu0 %v506
    %926 = vmatprep.subr.mxu0 %v503
    %927 = vmatpush1.msra.mxu0 %v502
    %928 = vmatprep.subr.mxu0 %v499
    %929 = vmatpush1.msra.mxu0 %v498
    %930 = vmatprep.subr.mxu0 %v495
    %931 = vmatpush1.msra.mxu0 %v494
    %932 = vmatprep.subr.mxu0 %v491
    %933 = vmatpush1.msra.mxu0 %v490
    %934 = vmatprep.subr.mxu0 %v487
    %935 = vmatpush1.msra.mxu0 %v486
    %936 = vmatprep.subr.mxu0 0.0
    %937 = vmatpush2.msra.mxu0 0.0
    %938 = vmatprep.subr.mxu0 0.0
    %939 = vmatpush2.msra.mxu0 0.0
    %940 = vmatprep.subr.mxu0 0.0
    %941 = vmatpush2.msra.mxu0 0.0
    %942 = vmatprep.subr.mxu0 0.0
    %943 = vmatpush2.msra.mxu0 0.0
    %944 = vmatprep.subr.mxu0 0.0
    %945 = vmatpush2.msra.mxu0 0.0
    %946 = vmatprep.subr.mxu0 0.0
    %947 = vmatpush2.msra.mxu0 0.0
    %948 = vmatprep.subr.mxu0 0.0
    %949 = vmatpush2.msra.mxu0 0.0
    %950 = vmatprep.subr.mxu0 0.0
    %951 = vmatpush2.msra.mxu0 0.0
    %952 = vmatprep.subr.mxu0 0.0
    %953 = vmatpush2.msra.mxu0 0.0
    %954 = vmatprep.subr.mxu0 0.0
    %955 = vmatpush2.msra.mxu0 0.0
    %956 = vmatprep.subr.mxu0 0.0
    %957 = vmatpush2.msra.mxu0 0.0
    %958 = vmatprep.subr.mxu0 0.0
    %959 = vmatpush2.msra.mxu0 0.0
    %960 = vmatprep.subr.mxu0 0.0
    %961 = vmatpush2.msra.mxu0 0.0
    %962 = vmatprep.subr.mxu0 0.0
    %963 = vmatpush2.msra.mxu0 0.0
    %964 = vmatprep.subr.mxu0 0.0
    %965 = vmatpush2.msra.mxu0 0.0
    %966 = vmatprep.subr.mxu0 0.0
    %967 = vmatpush2.msra.mxu0 0.0
    %968 = vmatprep.mubr.f32.mxu0 0.0
    %969 = vmatmul.mubr.f32.gmra.mxu0 %v773
    %v970 = vpop.f32.mrf.mxu0
    %v971 = vadd.f32 0.0, %v970
    %v972 = vpop.f32.mrf.mxu0
    %v973 = vadd.f32 0.0, %v972
    %974 = vdwg.mxu0
    %v975 = vadd.f32 %v829, %v900
    %v976 = vadd.f32 %v830, %v902
    %v977 = vadd.f32 %v831, %v971
    %v978 = vadd.f32 %v832, %v973
    %v979 = vsub.f32 0.0, %v975
    %v980 = vsub.f32 0.0, %v976
    %v981 = vsub.f32 0.0, %v977
    %v982 = vmul.f32 %v979, 1.442695
    %v983 = vpow.pop %v982
    %v984 = vmul.f32 %v980, 1.442695
    %v985 = vpow.pop %v984
    %v986 = vmul.f32 %v981, 1.442695
    %v987 = vpow.pop %v986
    %v988 = vadd.f32 %v983, 1.0
    %v989 = vadd.f32 %v985, 1.0
    %v990 = vadd.f32 %v987, 1.0
    %v991 = vrcp.pop %v988
    %v992 = vmul.f32 1.0, %v991
    %v993 = vrcp.pop %v989
    %v994 = vmul.f32 1.0, %v993
    %v995 = vrcp.pop %v990
    %v996 = vmul.f32 1.0, %v995
    %v997 = vtanh.pop %v978
    %v998 = vmul.f32 %v994, %v771
    %v999 = vmul.f32 %v992, %v997
    %v1000 = vadd.f32 %v998, %v999
    %v1001 = vtanh.pop %v1000
    %v1002 = vmul.f32 %v996, %v1001
    %1003 = vst [vmem:[#allocation3 + $0x8] sm:$0xff] %v1002
    %v1004 = vld [vmem:[#allocation2 + $0x40] sm:$0xff]
    %v1005 = vld [vmem:[#allocation2 + $0x48] sm:$0xff]
    %v1006 = vld [vmem:[#allocation2 + $0x50] sm:$0xff]
    %v1007 = vld [vmem:[#allocation2 + $0x58] sm:$0xff]
    %s1008 = scalar_lea.vmem %s1, 8
    %v1009 = vld [vmem:[%s1008] sm:$0xf]
    %v1011 = vlaneseq
    %v1012 = vshrl.u32 %v1011, 7
    %v1013 = vsub.s32 0, %v1012
    %v1014 = vrot.slane %v1009, %v1013
    %v1015 = vlaneseq
    %v1016 = vshrl.u32 %v1015, 7
    %v1017 = vsub.s32 1, %v1016
    %v1018 = vrot.slane %v1009, %v1017
    %v1019 = vlaneseq
    %v1020 = vshrl.u32 %v1019, 7
    %v1021 = vsub.s32 2, %v1020
    %v1022 = vrot.slane %v1009, %v1021
    %v1023 = vlaneseq
    %v1024 = vshrl.u32 %v1023, 7
    %v1025 = vsub.s32 3, %v1024
    %v1026 = vrot.slane %v1009, %v1025
    %v1031 = vmul.f32 %v1004, %v1014
    %v1032 = vmul.f32 %v1005, %v1018
    %v1033 = vmul.f32 %v1006, %v1022
    %v1034 = vmul.f32 %v1007, %v1026
    %s1035 = scalar_lea.vmem %s4, 8
    %v1036 = vld [vmem:[%s1035] sm:$0xf]
    %v1038 = vlaneseq
    %v1039 = vshrl.u32 %v1038, 7
    %v1040 = vsub.s32 0, %v1039
    %v1041 = vrot.slane %v1036, %v1040
    %v1042 = vlaneseq
    %v1043 = vshrl.u32 %v1042, 7
    %v1044 = vsub.s32 1, %v1043
    %v1045 = vrot.slane %v1036, %v1044
    %v1046 = vlaneseq
    %v1047 = vshrl.u32 %v1046, 7
    %v1048 = vsub.s32 2, %v1047
    %v1049 = vrot.slane %v1036, %v1048
    %v1050 = vlaneseq
    %v1051 = vshrl.u32 %v1050, 7
    %v1052 = vsub.s32 3, %v1051
    %v1053 = vrot.slane %v1036, %v1052
    %v1058 = vadd.f32 %v1031, %v1041
    %v1059 = vadd.f32 %v1032, %v1045
    %v1060 = vadd.f32 %v1033, %v1049
    %v1061 = vadd.f32 %v1034, %v1053
    %1062 = vmatprep.subr.mxu0 %v545
    %1063 = vmatpush1.msra.mxu0 %v544
    %1064 = vmatprep.subr.mxu0 %v541
    %1065 = vmatpush1.msra.mxu0 %v540
    %1066 = vmatprep.subr.mxu0 %v537
    %1067 = vmatpush1.msra.mxu0 %v536
    %1068 = vmatprep.subr.mxu0 %v533
    %1069 = vmatpush1.msra.mxu0 %v532
    %1070 = vmatprep.subr.mxu0 %v529
    %1071 = vmatpush1.msra.mxu0 %v528
    %1072 = vmatprep.subr.mxu0 %v525
    %1073 = vmatpush1.msra.mxu0 %v524
    %1074 = vmatprep.subr.mxu0 %v521
    %1075 = vmatpush1.msra.mxu0 %v520
    %1076 = vmatprep.subr.mxu0 %v517
    %1077 = vmatpush1.msra.mxu0 %v516
    %1078 = vmatprep.subr.mxu0 %v513
    %1079 = vmatpush1.msra.mxu0 %v512
    %1080 = vmatprep.subr.mxu0 %v509
    %1081 = vmatpush1.msra.mxu0 %v508
    %1082 = vmatprep.subr.mxu0 %v505
    %1083 = vmatpush1.msra.mxu0 %v504
    %1084 = vmatprep.subr.mxu0 %v501
    %1085 = vmatpush1.msra.mxu0 %v500
    %1086 = vmatprep.subr.mxu0 %v497
    %1087 = vmatpush1.msra.mxu0 %v496
    %1088 = vmatprep.subr.mxu0 %v493
    %1089 = vmatpush1.msra.mxu0 %v492
    %1090 = vmatprep.subr.mxu0 %v489
    %1091 = vmatpush1.msra.mxu0 %v488
    %1092 = vmatprep.subr.mxu0 %v485
    %1093 = vmatpush1.msra.mxu0 %v484
    %1094 = vmatprep.subr.mxu0 0.0
    %1095 = vmatpush2.msra.mxu0 0.0
    %1096 = vmatprep.subr.mxu0 0.0
    %1097 = vmatpush2.msra.mxu0 0.0
    %1098 = vmatprep.subr.mxu0 0.0
    %1099 = vmatpush2.msra.mxu0 0.0
    %1100 = vmatprep.subr.mxu0 0.0
    %1101 = vmatpush2.msra.mxu0 0.0
    %1102 = vmatprep.subr.mxu0 0.0
    %1103 = vmatpush2.msra.mxu0 0.0
    %1104 = vmatprep.subr.mxu0 0.0
    %1105 = vmatpush2.msra.mxu0 0.0
    %1106 = vmatprep.subr.mxu0 0.0
    %1107 = vmatpush2.msra.mxu0 0.0
    %1108 = vmatprep.subr.mxu0 0.0
    %1109 = vmatpush2.msra.mxu0 0.0
    %1110 = vmatprep.subr.mxu0 0.0
    %1111 = vmatpush2.msra.mxu0 0.0
    %1112 = vmatprep.subr.mxu0 0.0
    %1113 = vmatpush2.msra.mxu0 0.0
    %1114 = vmatprep.subr.mxu0 0.0
    %1115 = vmatpush2.msra.mxu0 0.0
    %1116 = vmatprep.subr.mxu0 0.0
    %1117 = vmatpush2.msra.mxu0 0.0
    %1118 = vmatprep.subr.mxu0 0.0
    %1119 = vmatpush2.msra.mxu0 0.0
    %1120 = vmatprep.subr.mxu0 0.0
    %1121 = vmatpush2.msra.mxu0 0.0
    %1122 = vmatprep.subr.mxu0 0.0
    %1123 = vmatpush2.msra.mxu0 0.0
    %1124 = vmatprep.subr.mxu0 0.0
    %1125 = vmatpush2.msra.mxu0 0.0
    %1126 = vmatprep.mubr.f32.mxu0 0.0
    %1127 = vmatmul.mubr.f32.gmra.mxu0 %v1002
    %v1128 = vpop.f32.mrf.mxu0
    %v1129 = vadd.f32 0.0, %v1128
    %v1130 = vpop.f32.mrf.mxu0
    %v1131 = vadd.f32 0.0, %v1130
    %1132 = vdwg.mxu0
    %1133 = vmatprep.subr.mxu0 %v547
    %1134 = vmatpush1.msra.mxu0 %v546
    %1135 = vmatprep.subr.mxu0 %v543
    %1136 = vmatpush1.msra.mxu0 %v542
    %1137 = vmatprep.subr.mxu0 %v539
    %1138 = vmatpush1.msra.mxu0 %v538
    %1139 = vmatprep.subr.mxu0 %v535
    %1140 = vmatpush1.msra.mxu0 %v534
    %1141 = vmatprep.subr.mxu0 %v531
    %1142 = vmatpush1.msra.mxu0 %v530
    %1143 = vmatprep.subr.mxu0 %v527
    %1144 = vmatpush1.msra.mxu0 %v526
    %1145 = vmatprep.subr.mxu0 %v523
    %1146 = vmatpush1.msra.mxu0 %v522
    %1147 = vmatprep.subr.mxu0 %v519
    %1148 = vmatpush1.msra.mxu0 %v518
    %1149 = vmatprep.subr.mxu0 %v515
    %1150 = vmatpush1.msra.mxu0 %v514
    %1151 = vmatprep.subr.mxu0 %v511
    %1152 = vmatpush1.msra.mxu0 %v510
    %1153 = vmatprep.subr.mxu0 %v507
    %1154 = vmatpush1.msra.mxu0 %v506
    %1155 = vmatprep.subr.mxu0 %v503
    %1156 = vmatpush1.msra.mxu0 %v502
    %1157 = vmatprep.subr.mxu0 %v499
    %1158 = vmatpush1.msra.mxu0 %v498
    %1159 = vmatprep.subr.mxu0 %v495
    %1160 = vmatpush1.msra.mxu0 %v494
    %1161 = vmatprep.subr.mxu0 %v491
    %1162 = vmatpush1.msra.mxu0 %v490
    %1163 = vmatprep.subr.mxu0 %v487
    %1164 = vmatpush1.msra.mxu0 %v486
    %1165 = vmatprep.subr.mxu0 0.0
    %1166 = vmatpush2.msra.mxu0 0.0
    %1167 = vmatprep.subr.mxu0 0.0
    %1168 = vmatpush2.msra.mxu0 0.0
    %1169 = vmatprep.subr.mxu0 0.0
    %1170 = vmatpush2.msra.mxu0 0.0
    %1171 = vmatprep.subr.mxu0 0.0
    %1172 = vmatpush2.msra.mxu0 0.0
    %1173 = vmatprep.subr.mxu0 0.0
    %1174 = vmatpush2.msra.mxu0 0.0
    %1175 = vmatprep.subr.mxu0 0.0
    %1176 = vmatpush2.msra.mxu0 0.0
    %1177 = vmatprep.subr.mxu0 0.0
    %1178 = vmatpush2.msra.mxu0 0.0
    %1179 = vmatprep.subr.mxu0 0.0
    %1180 = vmatpush2.msra.mxu0 0.0
    %1181 = vmatprep.subr.mxu0 0.0
    %1182 = vmatpush2.msra.mxu0 0.0
    %1183 = vmatprep.subr.mxu0 0.0
    %1184 = vmatpush2.msra.mxu0 0.0
    %1185 = vmatprep.subr.mxu0 0.0
    %1186 = vmatpush2.msra.mxu0 0.0
    %1187 = vmatprep.subr.mxu0 0.0
    %1188 = vmatpush2.msra.mxu0 0.0
    %1189 = vmatprep.subr.mxu0 0.0
    %1190 = vmatpush2.msra.mxu0 0.0
    %1191 = vmatprep.subr.mxu0 0.0
    %1192 = vmatpush2.msra.mxu0 0.0
    %1193 = vmatprep.subr.mxu0 0.0
    %1194 = vmatpush2.msra.mxu0 0.0
    %1195 = vmatprep.subr.mxu0 0.0
    %1196 = vmatpush2.msra.mxu0 0.0
    %1197 = vmatprep.mubr.f32.mxu0 0.0
    %1198 = vmatmul.mubr.f32.gmra.mxu0 %v1002
    %v1199 = vpop.f32.mrf.mxu0
    %v1200 = vadd.f32 0.0, %v1199
    %v1201 = vpop.f32.mrf.mxu0
    %v1202 = vadd.f32 0.0, %v1201
    %1203 = vdwg.mxu0
    %v1204 = vadd.f32 %v1058, %v1129
    %v1205 = vadd.f32 %v1059, %v1131
    %v1206 = vadd.f32 %v1060, %v1200
    %v1207 = vadd.f32 %v1061, %v1202
    %v1208 = vsub.f32 0.0, %v1204
    %v1209 = vsub.f32 0.0, %v1205
    %v1210 = vsub.f32 0.0, %v1206
    %v1211 = vmul.f32 %v1208, 1.442695
    %v1212 = vpow.pop %v1211
    %v1213 = vmul.f32 %v1209, 1.442695
    %v1214 = vpow.pop %v1213
    %v1215 = vmul.f32 %v1210, 1.442695
    %v1216 = vpow.pop %v1215
    %v1217 = vadd.f32 %v1212, 1.0
    %v1218 = vadd.f32 %v1214, 1.0
    %v1219 = vadd.f32 %v1216, 1.0
    %v1220 = vrcp.pop %v1217
    %v1221 = vmul.f32 1.0, %v1220
    %v1222 = vrcp.pop %v1218
    %v1223 = vmul.f32 1.0, %v1222
    %v1224 = vrcp.pop %v1219
    %v1225 = vmul.f32 1.0, %v1224
    %v1226 = vtanh.pop %v1207
    %v1227 = vmul.f32 %v1223, %v1000
    %v1228 = vmul.f32 %v1221, %v1226
    %v1229 = vadd.f32 %v1227, %v1228
    %v1230 = vtanh.pop %v1229
    %v1231 = vmul.f32 %v1225, %v1230
    %1232 = vst [vmem:[#allocation3 + $0x10] sm:$0xff] %v1231
    %v1233 = vld [vmem:[#allocation2 + $0x60] sm:$0xff]
    %v1234 = vld [vmem:[#allocation2 + $0x68] sm:$0xff]
    %v1235 = vld [vmem:[#allocation2 + $0x70] sm:$0xff]
    %v1236 = vld [vmem:[#allocation2 + $0x78] sm:$0xff]
    %s1237 = scalar_lea.vmem %s1, 12
    %v1238 = vld [vmem:[%s1237] sm:$0xf]
    %v1240 = vlaneseq
    %v1241 = vshrl.u32 %v1240, 7
    %v1242 = vsub.s32 0, %v1241
    %v1243 = vrot.slane %v1238, %v1242
    %v1244 = vlaneseq
    %v1245 = vshrl.u32 %v1244, 7
    %v1246 = vsub.s32 1, %v1245
    %v1247 = vrot.slane %v1238, %v1246
    %v1248 = vlaneseq
    %v1249 = vshrl.u32 %v1248, 7
    %v1250 = vsub.s32 2, %v1249
    %v1251 = vrot.slane %v1238, %v1250
    %v1252 = vlaneseq
    %v1253 = vshrl.u32 %v1252, 7
    %v1254 = vsub.s32 3, %v1253
    %v1255 = vrot.slane %v1238, %v1254
    %v1260 = vmul.f32 %v1233, %v1243
    %v1261 = vmul.f32 %v1234, %v1247
    %v1262 = vmul.f32 %v1235, %v1251
    %v1263 = vmul.f32 %v1236, %v1255
    %s1264 = scalar_lea.vmem %s4, 12
    %v1265 = vld [vmem:[%s1264] sm:$0xf]
    %v1267 = vlaneseq
    %v1268 = vshrl.u32 %v1267, 7
    %v1269 = vsub.s32 0, %v1268
    %v1270 = vrot.slane %v1265, %v1269
    %v1271 = vlaneseq
    %v1272 = vshrl.u32 %v1271, 7
    %v1273 = vsub.s32 1, %v1272
    %v1274 = vrot.slane %v1265, %v1273
    %v1275 = vlaneseq
    %v1276 = vshrl.u32 %v1275, 7
    %v1277 = vsub.s32 2, %v1276
    %v1278 = vrot.slane %v1265, %v1277
    %v1279 = vlaneseq
    %v1280 = vshrl.u32 %v1279, 7
    %v1281 = vsub.s32 3, %v1280
    %v1282 = vrot.slane %v1265, %v1281
    %v1287 = vadd.f32 %v1260, %v1270
    %v1288 = vadd.f32 %v1261, %v1274
    %v1289 = vadd.f32 %v1262, %v1278
    %v1290 = vadd.f32 %v1263, %v1282
    %1291 = vmatprep.subr.mxu0 %v545
    %1292 = vmatpush1.msra.mxu0 %v544
    %1293 = vmatprep.subr.mxu0 %v541
    %1294 = vmatpush1.msra.mxu0 %v540
    %1295 = vmatprep.subr.mxu0 %v537
    %1296 = vmatpush1.msra.mxu0 %v536
    %1297 = vmatprep.subr.mxu0 %v533
    %1298 = vmatpush1.msra.mxu0 %v532
    %1299 = vmatprep.subr.mxu0 %v529
    %1300 = vmatpush1.msra.mxu0 %v528
    %1301 = vmatprep.subr.mxu0 %v525
    %1302 = vmatpush1.msra.mxu0 %v524
    %1303 = vmatprep.subr.mxu0 %v521
    %1304 = vmatpush1.msra.mxu0 %v520
    %1305 = vmatprep.subr.mxu0 %v517
    %1306 = vmatpush1.msra.mxu0 %v516
    %1307 = vmatprep.subr.mxu0 %v513
    %1308 = vmatpush1.msra.mxu0 %v512
    %1309 = vmatprep.subr.mxu0 %v509
    %1310 = vmatpush1.msra.mxu0 %v508
    %1311 = vmatprep.subr.mxu0 %v505
    %1312 = vmatpush1.msra.mxu0 %v504
    %1313 = vmatprep.subr.mxu0 %v501
    %1314 = vmatpush1.msra.mxu0 %v500
    %1315 = vmatprep.subr.mxu0 %v497
    %1316 = vmatpush1.msra.mxu0 %v496
    %1317 = vmatprep.subr.mxu0 %v493
    %1318 = vmatpush1.msra.mxu0 %v492
    %1319 = vmatprep.subr.mxu0 %v489
    %1320 = vmatpush1.msra.mxu0 %v488
    %1321 = vmatprep.subr.mxu0 %v485
    %1322 = vmatpush1.msra.mxu0 %v484
    %1323 = vmatprep.subr.mxu0 0.0
    %1324 = vmatpush2.msra.mxu0 0.0
    %1325 = vmatprep.subr.mxu0 0.0
    %1326 = vmatpush2.msra.mxu0 0.0
    %1327 = vmatprep.subr.mxu0 0.0
    %1328 = vmatpush2.msra.mxu0 0.0
    %1329 = vmatprep.subr.mxu0 0.0
    %1330 = vmatpush2.msra.mxu0 0.0
    %1331 = vmatprep.subr.mxu0 0.0
    %1332 = vmatpush2.msra.mxu0 0.0
    %1333 = vmatprep.subr.mxu0 0.0
    %1334 = vmatpush2.msra.mxu0 0.0
    %1335 = vmatprep.subr.mxu0 0.0
    %1336 = vmatpush2.msra.mxu0 0.0
    %1337 = vmatprep.subr.mxu0 0.0
    %1338 = vmatpush2.msra.mxu0 0.0
    %1339 = vmatprep.subr.mxu0 0.0
    %1340 = vmatpush2.msra.mxu0 0.0
    %1341 = vmatprep.subr.mxu0 0.0
    %1342 = vmatpush2.msra.mxu0 0.0
    %1343 = vmatprep.subr.mxu0 0.0
    %1344 = vmatpush2.msra.mxu0 0.0
    %1345 = vmatprep.subr.mxu0 0.0
    %1346 = vmatpush2.msra.mxu0 0.0
    %1347 = vmatprep.subr.mxu0 0.0
    %1348 = vmatpush2.msra.mxu0 0.0
    %1349 = vmatprep.subr.mxu0 0.0
    %1350 = vmatpush2.msra.mxu0 0.0
    %1351 = vmatprep.subr.mxu0 0.0
    %1352 = vmatpush2.msra.mxu0 0.0
    %1353 = vmatprep.subr.mxu0 0.0
    %1354 = vmatpush2.msra.mxu0 0.0
    %1355 = vmatprep.mubr.f32.mxu0 0.0
    %1356 = vmatmul.mubr.f32.gmra.mxu0 %v1231
    %v1357 = vpop.f32.mrf.mxu0
    %v1358 = vadd.f32 0.0, %v1357
    %v1359 = vpop.f32.mrf.mxu0
    %v1360 = vadd.f32 0.0, %v1359
    %1361 = vdwg.mxu0
    %1362 = vmatprep.subr.mxu0 %v547
    %1363 = vmatpush1.msra.mxu0 %v546
    %1364 = vmatprep.subr.mxu0 %v543
    %1365 = vmatpush1.msra.mxu0 %v542
    %1366 = vmatprep.subr.mxu0 %v539
    %1367 = vmatpush1.msra.mxu0 %v538
    %1368 = vmatprep.subr.mxu0 %v535
    %1369 = vmatpush1.msra.mxu0 %v534
    %1370 = vmatprep.subr.mxu0 %v531
    %1371 = vmatpush1.msra.mxu0 %v530
    %1372 = vmatprep.subr.mxu0 %v527
    %1373 = vmatpush1.msra.mxu0 %v526
    %1374 = vmatprep.subr.mxu0 %v523
    %1375 = vmatpush1.msra.mxu0 %v522
    %1376 = vmatprep.subr.mxu0 %v519
    %1377 = vmatpush1.msra.mxu0 %v518
    %1378 = vmatprep.subr.mxu0 %v515
    %1379 = vmatpush1.msra.mxu0 %v514
    %1380 = vmatprep.subr.mxu0 %v511
    %1381 = vmatpush1.msra.mxu0 %v510
    %1382 = vmatprep.subr.mxu0 %v507
    %1383 = vmatpush1.msra.mxu0 %v506
    %1384 = vmatprep.subr.mxu0 %v503
    %1385 = vmatpush1.msra.mxu0 %v502
    %1386 = vmatprep.subr.mxu0 %v499
    %1387 = vmatpush1.msra.mxu0 %v498
    %1388 = vmatprep.subr.mxu0 %v495
    %1389 = vmatpush1.msra.mxu0 %v494
    %1390 = vmatprep.subr.mxu0 %v491
    %1391 = vmatpush1.msra.mxu0 %v490
    %1392 = vmatprep.subr.mxu0 %v487
    %1393 = vmatpush1.msra.mxu0 %v486
    %1394 = vmatprep.subr.mxu0 0.0
    %1395 = vmatpush2.msra.mxu0 0.0
    %1396 = vmatprep.subr.mxu0 0.0
    %1397 = vmatpush2.msra.mxu0 0.0
    %1398 = vmatprep.subr.mxu0 0.0
    %1399 = vmatpush2.msra.mxu0 0.0
    %1400 = vmatprep.subr.mxu0 0.0
    %1401 = vmatpush2.msra.mxu0 0.0
    %1402 = vmatprep.subr.mxu0 0.0
    %1403 = vmatpush2.msra.mxu0 0.0
    %1404 = vmatprep.subr.mxu0 0.0
    %1405 = vmatpush2.msra.mxu0 0.0
    %1406 = vmatprep.subr.mxu0 0.0
    %1407 = vmatpush2.msra.mxu0 0.0
    %1408 = vmatprep.subr.mxu0 0.0
    %1409 = vmatpush2.msra.mxu0 0.0
    %1410 = vmatprep.subr.mxu0 0.0
    %1411 = vmatpush2.msra.mxu0 0.0
    %1412 = vmatprep.subr.mxu0 0.0
    %1413 = vmatpush2.msra.mxu0 0.0
    %1414 = vmatprep.subr.mxu0 0.0
    %1415 = vmatpush2.msra.mxu0 0.0
    %1416 = vmatprep.subr.mxu0 0.0
    %1417 = vmatpush2.msra.mxu0 0.0
    %1418 = vmatprep.subr.mxu0 0.0
    %1419 = vmatpush2.msra.mxu0 0.0
    %1420 = vmatprep.subr.mxu0 0.0
    %1421 = vmatpush2.msra.mxu0 0.0
    %1422 = vmatprep.subr.mxu0 0.0
    %1423 = vmatpush2.msra.mxu0 0.0
    %1424 = vmatprep.subr.mxu0 0.0
    %1425 = vmatpush2.msra.mxu0 0.0
    %1426 = vmatprep.mubr.f32.mxu0 0.0
    %1427 = vmatmul.mubr.f32.gmra.mxu0 %v1231
    %v1428 = vpop.f32.mrf.mxu0
    %v1429 = vadd.f32 0.0, %v1428
    %v1430 = vpop.f32.mrf.mxu0
    %v1431 = vadd.f32 0.0, %v1430
    %1432 = vdwg.mxu0
    %v1433 = vadd.f32 %v1287, %v1358
    %v1434 = vadd.f32 %v1288, %v1360
    %v1435 = vadd.f32 %v1289, %v1429
    %v1436 = vadd.f32 %v1290, %v1431
    %v1437 = vsub.f32 0.0, %v1433
    %v1438 = vsub.f32 0.0, %v1434
    %v1439 = vsub.f32 0.0, %v1435
    %v1440 = vmul.f32 %v1437, 1.442695
    %v1441 = vpow.pop %v1440
    %v1442 = vmul.f32 %v1438, 1.442695
    %v1443 = vpow.pop %v1442
    %v1444 = vmul.f32 %v1439, 1.442695
    %v1445 = vpow.pop %v1444
    %v1446 = vadd.f32 %v1441, 1.0
    %v1447 = vadd.f32 %v1443, 1.0
    %v1448 = vadd.f32 %v1445, 1.0
    %v1449 = vrcp.pop %v1446
    %v1450 = vmul.f32 1.0, %v1449
    %v1451 = vrcp.pop %v1447
    %v1452 = vmul.f32 1.0, %v1451
    %v1453 = vrcp.pop %v1448
    %v1454 = vmul.f32 1.0, %v1453
    %v1455 = vtanh.pop %v1436
    %v1456 = vmul.f32 %v1452, %v1229
    %v1457 = vmul.f32 %v1450, %v1455
    %v1458 = vadd.f32 %v1456, %v1457
    %v1459 = vtanh.pop %v1458
    %v1460 = vmul.f32 %v1454, %v1459
    %1461 = vst [vmem:[#allocation3 + $0x18] sm:$0xff] %v1460
    %v1462 = vld [vmem:[#allocation2 + $0x80] sm:$0xff]
    %v1463 = vld [vmem:[#allocation2 + $0x88] sm:$0xff]
    %v1464 = vld [vmem:[#allocation2 + $0x90] sm:$0xff]
    %v1465 = vld [vmem:[#allocation2 + $0x98] sm:$0xff]
    %s1466 = scalar_lea.vmem %s1, 16
    %v1467 = vld [vmem:[%s1466] sm:$0xf]
    %v1469 = vlaneseq
    %v1470 = vshrl.u32 %v1469, 7
    %v1471 = vsub.s32 0, %v1470
    %v1472 = vrot.slane %v1467, %v1471
    %v1473 = vlaneseq
    %v1474 = vshrl.u32 %v1473, 7
    %v1475 = vsub.s32 1, %v1474
    %v1476 = vrot.slane %v1467, %v1475
    %v1477 = vlaneseq
    %v1478 = vshrl.u32 %v1477, 7
    %v1479 = vsub.s32 2, %v1478
    %v1480 = vrot.slane %v1467, %v1479
    %v1481 = vlaneseq
    %v1482 = vshrl.u32 %v1481, 7
    %v1483 = vsub.s32 3, %v1482
    %v1484 = vrot.slane %v1467, %v1483
    %v1489 = vmul.f32 %v1462, %v1472
    %v1490 = vmul.f32 %v1463, %v1476
    %v1491 = vmul.f32 %v1464, %v1480
    %v1492 = vmul.f32 %v1465, %v1484
    %s1493 = scalar_lea.vmem %s4, 16
    %v1494 = vld [vmem:[%s1493] sm:$0xf]
    %v1496 = vlaneseq
    %v1497 = vshrl.u32 %v1496, 7
    %v1498 = vsub.s32 0, %v1497
    %v1499 = vrot.slane %v1494, %v1498
    %v1500 = vlaneseq
    %v1501 = vshrl.u32 %v1500, 7
    %v1502 = vsub.s32 1, %v1501
    %v1503 = vrot.slane %v1494, %v1502
    %v1504 = vlaneseq
    %v1505 = vshrl.u32 %v1504, 7
    %v1506 = vsub.s32 2, %v1505
    %v1507 = vrot.slane %v1494, %v1506
    %v1508 = vlaneseq
    %v1509 = vshrl.u32 %v1508, 7
    %v1510 = vsub.s32 3, %v1509
    %v1511 = vrot.slane %v1494, %v1510
    %v1516 = vadd.f32 %v1489, %v1499
    %v1517 = vadd.f32 %v1490, %v1503
    %v1518 = vadd.f32 %v1491, %v1507
    %v1519 = vadd.f32 %v1492, %v1511
    %1520 = vmatprep.subr.mxu0 %v545
    %1521 = vmatpush1.msra.mxu0 %v544
    %1522 = vmatprep.subr.mxu0 %v541
    %1523 = vmatpush1.msra.mxu0 %v540
    %1524 = vmatprep.subr.mxu0 %v537
    %1525 = vmatpush1.msra.mxu0 %v536
    %1526 = vmatprep.subr.mxu0 %v533
    %1527 = vmatpush1.msra.mxu0 %v532
    %1528 = vmatprep.subr.mxu0 %v529
    %1529 = vmatpush1.msra.mxu0 %v528
    %1530 = vmatprep.subr.mxu0 %v525
    %1531 = vmatpush1.msra.mxu0 %v524
    %1532 = vmatprep.subr.mxu0 %v521
    %1533 = vmatpush1.msra.mxu0 %v520
    %1534 = vmatprep.subr.mxu0 %v517
    %1535 = vmatpush1.msra.mxu0 %v516
    %1536 = vmatprep.subr.mxu0 %v513
    %1537 = vmatpush1.msra.mxu0 %v512
    %1538 = vmatprep.subr.mxu0 %v509
    %1539 = vmatpush1.msra.mxu0 %v508
    %1540 = vmatprep.subr.mxu0 %v505
    %1541 = vmatpush1.msra.mxu0 %v504
    %1542 = vmatprep.subr.mxu0 %v501
    %1543 = vmatpush1.msra.mxu0 %v500
    %1544 = vmatprep.subr.mxu0 %v497
    %1545 = vmatpush1.msra.mxu0 %v496
    %1546 = vmatprep.subr.mxu0 %v493
    %1547 = vmatpush1.msra.mxu0 %v492
    %1548 = vmatprep.subr.mxu0 %v489
    %1549 = vmatpush1.msra.mxu0 %v488
    %1550 = vmatprep.subr.mxu0 %v485
    %1551 = vmatpush1.msra.mxu0 %v484
    %1552 = vmatprep.subr.mxu0 0.0
    %1553 = vmatpush2.msra.mxu0 0.0
    %1554 = vmatprep.subr.mxu0 0.0
    %1555 = vmatpush2.msra.mxu0 0.0
    %1556 = vmatprep.subr.mxu0 0.0
    %1557 = vmatpush2.msra.mxu0 0.0
    %1558 = vmatprep.subr.mxu0 0.0
    %1559 = vmatpush2.msra.mxu0 0.0
    %1560 = vmatprep.subr.mxu0 0.0
    %1561 = vmatpush2.msra.mxu0 0.0
    %1562 = vmatprep.subr.mxu0 0.0
    %1563 = vmatpush2.msra.mxu0 0.0
    %1564 = vmatprep.subr.mxu0 0.0
    %1565 = vmatpush2.msra.mxu0 0.0
    %1566 = vmatprep.subr.mxu0 0.0
    %1567 = vmatpush2.msra.mxu0 0.0
    %1568 = vmatprep.subr.mxu0 0.0
    %1569 = vmatpush2.msra.mxu0 0.0
    %1570 = vmatprep.subr.mxu0 0.0
    %1571 = vmatpush2.msra.mxu0 0.0
    %1572 = vmatprep.subr.mxu0 0.0
    %1573 = vmatpush2.msra.mxu0 0.0
    %1574 = vmatprep.subr.mxu0 0.0
    %1575 = vmatpush2.msra.mxu0 0.0
    %1576 = vmatprep.subr.mxu0 0.0
    %1577 = vmatpush2.msra.mxu0 0.0
    %1578 = vmatprep.subr.mxu0 0.0
    %1579 = vmatpush2.msra.mxu0 0.0
    %1580 = vmatprep.subr.mxu0 0.0
    %1581 = vmatpush2.msra.mxu0 0.0
    %1582 = vmatprep.subr.mxu0 0.0
    %1583 = vmatpush2.msra.mxu0 0.0
    %1584 = vmatprep.mubr.f32.mxu0 0.0
    %1585 = vmatmul.mubr.f32.gmra.mxu0 %v1460
    %v1586 = vpop.f32.mrf.mxu0
    %v1587 = vadd.f32 0.0, %v1586
    %v1588 = vpop.f32.mrf.mxu0
    %v1589 = vadd.f32 0.0, %v1588
    %1590 = vdwg.mxu0
    %1591 = vmatprep.subr.mxu0 %v547
    %1592 = vmatpush1.msra.mxu0 %v546
    %1593 = vmatprep.subr.mxu0 %v543
    %1594 = vmatpush1.msra.mxu0 %v542
    %1595 = vmatprep.subr.mxu0 %v539
    %1596 = vmatpush1.msra.mxu0 %v538
    %1597 = vmatprep.subr.mxu0 %v535
    %1598 = vmatpush1.msra.mxu0 %v534
    %1599 = vmatprep.subr.mxu0 %v531
    %1600 = vmatpush1.msra.mxu0 %v530
    %1601 = vmatprep.subr.mxu0 %v527
    %1602 = vmatpush1.msra.mxu0 %v526
    %1603 = vmatprep.subr.mxu0 %v523
    %1604 = vmatpush1.msra.mxu0 %v522
    %1605 = vmatprep.subr.mxu0 %v519
    %1606 = vmatpush1.msra.mxu0 %v518
    %1607 = vmatprep.subr.mxu0 %v515
    %1608 = vmatpush1.msra.mxu0 %v514
    %1609 = vmatprep.subr.mxu0 %v511
    %1610 = vmatpush1.msra.mxu0 %v510
    %1611 = vmatprep.subr.mxu0 %v507
    %1612 = vmatpush1.msra.mxu0 %v506
    %1613 = vmatprep.subr.mxu0 %v503
    %1614 = vmatpush1.msra.mxu0 %v502
    %1615 = vmatprep.subr.mxu0 %v499
    %1616 = vmatpush1.msra.mxu0 %v498
    %1617 = vmatprep.subr.mxu0 %v495
    %1618 = vmatpush1.msra.mxu0 %v494
    %1619 = vmatprep.subr.mxu0 %v491
    %1620 = vmatpush1.msra.mxu0 %v490
    %1621 = vmatprep.subr.mxu0 %v487
    %1622 = vmatpush1.msra.mxu0 %v486
    %1623 = vmatprep.subr.mxu0 0.0
    %1624 = vmatpush2.msra.mxu0 0.0
    %1625 = vmatprep.subr.mxu0 0.0
    %1626 = vmatpush2.msra.mxu0 0.0
    %1627 = vmatprep.subr.mxu0 0.0
    %1628 = vmatpush2.msra.mxu0 0.0
    %1629 = vmatprep.subr.mxu0 0.0
    %1630 = vmatpush2.msra.mxu0 0.0
    %1631 = vmatprep.subr.mxu0 0.0
    %1632 = vmatpush2.msra.mxu0 0.0
    %1633 = vmatprep.subr.mxu0 0.0
    %1634 = vmatpush2.msra.mxu0 0.0
    %1635 = vmatprep.subr.mxu0 0.0
    %1636 = vmatpush2.msra.mxu0 0.0
    %1637 = vmatprep.subr.mxu0 0.0
    %1638 = vmatpush2.msra.mxu0 0.0
    %1639 = vmatprep.subr.mxu0 0.0
    %1640 = vmatpush2.msra.mxu0 0.0
    %1641 = vmatprep.subr.mxu0 0.0
    %1642 = vmatpush2.msra.mxu0 0.0
    %1643 = vmatprep.subr.mxu0 0.0
    %1644 = vmatpush2.msra.mxu0 0.0
    %1645 = vmatprep.subr.mxu0 0.0
    %1646 = vmatpush2.msra.mxu0 0.0
    %1647 = vmatprep.subr.mxu0 0.0
    %1648 = vmatpush2.msra.mxu0 0.0
    %1649 = vmatprep.subr.mxu0 0.0
    %1650 = vmatpush2.msra.mxu0 0.0
    %1651 = vmatprep.subr.mxu0 0.0
    %1652 = vmatpush2.msra.mxu0 0.0
    %1653 = vmatprep.subr.mxu0 0.0
    %1654 = vmatpush2.msra.mxu0 0.0
    %1655 = vmatprep.mubr.f32.mxu0 0.0
    %1656 = vmatmul.mubr.f32.gmra.mxu0 %v1460
    %v1657 = vpop.f32.mrf.mxu0
    %v1658 = vadd.f32 0.0, %v1657
    %v1659 = vpop.f32.mrf.mxu0
    %v1660 = vadd.f32 0.0, %v1659
    %1661 = vdwg.mxu0
    %v1662 = vadd.f32 %v1516, %v1587
    %v1663 = vadd.f32 %v1517, %v1589
    %v1664 = vadd.f32 %v1518, %v1658
    %v1665 = vadd.f32 %v1519, %v1660
    %v1666 = vsub.f32 0.0, %v1662
    %v1667 = vsub.f32 0.0, %v1663
    %v1668 = vsub.f32 0.0, %v1664
    %v1669 = vmul.f32 %v1666, 1.442695
    %v1670 = vpow.pop %v1669
    %v1671 = vmul.f32 %v1667, 1.442695
    %v1672 = vpow.pop %v1671
    %v1673 = vmul.f32 %v1668, 1.442695
    %v1674 = vpow.pop %v1673
    %v1675 = vadd.f32 %v1670, 1.0
    %v1676 = vadd.f32 %v1672, 1.0
    %v1677 = vadd.f32 %v1674, 1.0
    %v1678 = vrcp.pop %v1675
    %v1679 = vmul.f32 1.0, %v1678
    %v1680 = vrcp.pop %v1676
    %v1681 = vmul.f32 1.0, %v1680
    %v1682 = vrcp.pop %v1677
    %v1683 = vmul.f32 1.0, %v1682
    %v1684 = vtanh.pop %v1665
    %v1685 = vmul.f32 %v1681, %v1458
    %v1686 = vmul.f32 %v1679, %v1684
    %v1687 = vadd.f32 %v1685, %v1686
    %v1688 = vtanh.pop %v1687
    %v1689 = vmul.f32 %v1683, %v1688
    %1690 = vst [vmem:[#allocation3 + $0x20] sm:$0xff] %v1689
    %v1691 = vld [vmem:[#allocation2 + $0xa0] sm:$0xff]
    %v1692 = vld [vmem:[#allocation2 + $0xa8] sm:$0xff]
    %v1693 = vld [vmem:[#allocation2 + $0xb0] sm:$0xff]
    %v1694 = vld [vmem:[#allocation2 + $0xb8] sm:$0xff]
    %s1695 = scalar_lea.vmem %s1, 20
    %v1696 = vld [vmem:[%s1695] sm:$0xf]
    %v1698 = vlaneseq
    %v1699 = vshrl.u32 %v1698, 7
    %v1700 = vsub.s32 0, %v1699
    %v1701 = vrot.slane %v1696, %v1700
    %v1702 = vlaneseq
    %v1703 = vshrl.u32 %v1702, 7
    %v1704 = vsub.s32 1, %v1703
    %v1705 = vrot.slane %v1696, %v1704
    %v1706 = vlaneseq
    %v1707 = vshrl.u32 %v1706, 7
    %v1708 = vsub.s32 2, %v1707
    %v1709 = vrot.slane %v1696, %v1708
    %v1710 = vlaneseq
    %v1711 = vshrl.u32 %v1710, 7
    %v1712 = vsub.s32 3, %v1711
    %v1713 = vrot.slane %v1696, %v1712
    %v1718 = vmul.f32 %v1691, %v1701
    %v1719 = vmul.f32 %v1692, %v1705
    %v1720 = vmul.f32 %v1693, %v1709
    %v1721 = vmul.f32 %v1694, %v1713
    %s1722 = scalar_lea.vmem %s4, 20
    %v1723 = vld [vmem:[%s1722] sm:$0xf]
    %v1725 = vlaneseq
    %v1726 = vshrl.u32 %v1725, 7
    %v1727 = vsub.s32 0, %v1726
    %v1728 = vrot.slane %v1723, %v1727
    %v1729 = vlaneseq
    %v1730 = vshrl.u32 %v1729, 7
    %v1731 = vsub.s32 1, %v1730
    %v1732 = vrot.slane %v1723, %v1731
    %v1733 = vlaneseq
    %v1734 = vshrl.u32 %v1733, 7
    %v1735 = vsub.s32 2, %v1734
    %v1736 = vrot.slane %v1723, %v1735
    %v1737 = vlaneseq
    %v1738 = vshrl.u32 %v1737, 7
    %v1739 = vsub.s32 3, %v1738
    %v1740 = vrot.slane %v1723, %v1739
    %v1745 = vadd.f32 %v1718, %v1728
    %v1746 = vadd.f32 %v1719, %v1732
    %v1747 = vadd.f32 %v1720, %v1736
    %v1748 = vadd.f32 %v1721, %v1740
    %1749 = vmatprep.subr.mxu0 %v545
    %1750 = vmatpush1.msra.mxu0 %v544
    %1751 = vmatprep.subr.mxu0 %v541
    %1752 = vmatpush1.msra.mxu0 %v540
    %1753 = vmatprep.subr.mxu0 %v537
    %1754 = vmatpush1.msra.mxu0 %v536
    %1755 = vmatprep.subr.mxu0 %v533
    %1756 = vmatpush1.msra.mxu0 %v532
    %1757 = vmatprep.subr.mxu0 %v529
    %1758 = vmatpush1.msra.mxu0 %v528
    %1759 = vmatprep.subr.mxu0 %v525
    %1760 = vmatpush1.msra.mxu0 %v524
    %1761 = vmatprep.subr.mxu0 %v521
    %1762 = vmatpush1.msra.mxu0 %v520
    %1763 = vmatprep.subr.mxu0 %v517
    %1764 = vmatpush1.msra.mxu0 %v516
    %1765 = vmatprep.subr.mxu0 %v513
    %1766 = vmatpush1.msra.mxu0 %v512
    %1767 = vmatprep.subr.mxu0 %v509
    %1768 = vmatpush1.msra.mxu0 %v508
    %1769 = vmatprep.subr.mxu0 %v505
    %1770 = vmatpush1.msra.mxu0 %v504
    %1771 = vmatprep.subr.mxu0 %v501
    %1772 = vmatpush1.msra.mxu0 %v500
    %1773 = vmatprep.subr.mxu0 %v497
    %1774 = vmatpush1.msra.mxu0 %v496
    %1775 = vmatprep.subr.mxu0 %v493
    %1776 = vmatpush1.msra.mxu0 %v492
    %1777 = vmatprep.subr.mxu0 %v489
    %1778 = vmatpush1.msra.mxu0 %v488
    %1779 = vmatprep.subr.mxu0 %v485
    %1780 = vmatpush1.msra.mxu0 %v484
    %1781 = vmatprep.subr.mxu0 0.0
    %1782 = vmatpush2.msra.mxu0 0.0
    %1783 = vmatprep.subr.mxu0 0.0
    %1784 = vmatpush2.msra.mxu0 0.0
    %1785 = vmatprep.subr.mxu0 0.0
    %1786 = vmatpush2.msra.mxu0 0.0
    %1787 = vmatprep.subr.mxu0 0.0
    %1788 = vmatpush2.msra.mxu0 0.0
    %1789 = vmatprep.subr.mxu0 0.0
    %1790 = vmatpush2.msra.mxu0 0.0
    %1791 = vmatprep.subr.mxu0 0.0
    %1792 = vmatpush2.msra.mxu0 0.0
    %1793 = vmatprep.subr.mxu0 0.0
    %1794 = vmatpush2.msra.mxu0 0.0
    %1795 = vmatprep.subr.mxu0 0.0
    %1796 = vmatpush2.msra.mxu0 0.0
    %1797 = vmatprep.subr.mxu0 0.0
    %1798 = vmatpush2.msra.mxu0 0.0
    %1799 = vmatprep.subr.mxu0 0.0
    %1800 = vmatpush2.msra.mxu0 0.0
    %1801 = vmatprep.subr.mxu0 0.0
    %1802 = vmatpush2.msra.mxu0 0.0
    %1803 = vmatprep.subr.mxu0 0.0
    %1804 = vmatpush2.msra.mxu0 0.0
    %1805 = vmatprep.subr.mxu0 0.0
    %1806 = vmatpush2.msra.mxu0 0.0
    %1807 = vmatprep.subr.mxu0 0.0
    %1808 = vmatpush2.msra.mxu0 0.0
    %1809 = vmatprep.subr.mxu0 0.0
    %1810 = vmatpush2.msra.mxu0 0.0
    %1811 = vmatprep.subr.mxu0 0.0
    %1812 = vmatpush2.msra.mxu0 0.0
    %1813 = vmatprep.mubr.f32.mxu0 0.0
    %1814 = vmatmul.mubr.f32.gmra.mxu0 %v1689
    %v1815 = vpop.f32.mrf.mxu0
    %v1816 = vadd.f32 0.0, %v1815
    %v1817 = vpop.f32.mrf.mxu0
    %v1818 = vadd.f32 0.0, %v1817
    %1819 = vdwg.mxu0
    %1820 = vmatprep.subr.mxu0 %v547
    %1821 = vmatpush1.msra.mxu0 %v546
    %1822 = vmatprep.subr.mxu0 %v543
    %1823 = vmatpush1.msra.mxu0 %v542
    %1824 = vmatprep.subr.mxu0 %v539
    %1825 = vmatpush1.msra.mxu0 %v538
    %1826 = vmatprep.subr.mxu0 %v535
    %1827 = vmatpush1.msra.mxu0 %v534
    %1828 = vmatprep.subr.mxu0 %v531
    %1829 = vmatpush1.msra.mxu0 %v530
    %1830 = vmatprep.subr.mxu0 %v527
    %1831 = vmatpush1.msra.mxu0 %v526
    %1832 = vmatprep.subr.mxu0 %v523
    %1833 = vmatpush1.msra.mxu0 %v522
    %1834 = vmatprep.subr.mxu0 %v519
    %1835 = vmatpush1.msra.mxu0 %v518
    %1836 = vmatprep.subr.mxu0 %v515
    %1837 = vmatpush1.msra.mxu0 %v514
    %1838 = vmatprep.subr.mxu0 %v511
    %1839 = vmatpush1.msra.mxu0 %v510
    %1840 = vmatprep.subr.mxu0 %v507
    %1841 = vmatpush1.msra.mxu0 %v506
    %1842 = vmatprep.subr.mxu0 %v503
    %1843 = vmatpush1.msra.mxu0 %v502
    %1844 = vmatprep.subr.mxu0 %v499
    %1845 = vmatpush1.msra.mxu0 %v498
    %1846 = vmatprep.subr.mxu0 %v495
    %1847 = vmatpush1.msra.mxu0 %v494
    %1848 = vmatprep.subr.mxu0 %v491
    %1849 = vmatpush1.msra.mxu0 %v490
    %1850 = vmatprep.subr.mxu0 %v487
    %1851 = vmatpush1.msra.mxu0 %v486
    %1852 = vmatprep.subr.mxu0 0.0
    %1853 = vmatpush2.msra.mxu0 0.0
    %1854 = vmatprep.subr.mxu0 0.0
    %1855 = vmatpush2.msra.mxu0 0.0
    %1856 = vmatprep.subr.mxu0 0.0
    %1857 = vmatpush2.msra.mxu0 0.0
    %1858 = vmatprep.subr.mxu0 0.0
    %1859 = vmatpush2.msra.mxu0 0.0
    %1860 = vmatprep.subr.mxu0 0.0
    %1861 = vmatpush2.msra.mxu0 0.0
    %1862 = vmatprep.subr.mxu0 0.0
    %1863 = vmatpush2.msra.mxu0 0.0
    %1864 = vmatprep.subr.mxu0 0.0
    %1865 = vmatpush2.msra.mxu0 0.0
    %1866 = vmatprep.subr.mxu0 0.0
    %1867 = vmatpush2.msra.mxu0 0.0
    %1868 = vmatprep.subr.mxu0 0.0
    %1869 = vmatpush2.msra.mxu0 0.0
    %1870 = vmatprep.subr.mxu0 0.0
    %1871 = vmatpush2.msra.mxu0 0.0
    %1872 = vmatprep.subr.mxu0 0.0
    %1873 = vmatpush2.msra.mxu0 0.0
    %1874 = vmatprep.subr.mxu0 0.0
    %1875 = vmatpush2.msra.mxu0 0.0
    %1876 = vmatprep.subr.mxu0 0.0
    %1877 = vmatpush2.msra.mxu0 0.0
    %1878 = vmatprep.subr.mxu0 0.0
    %1879 = vmatpush2.msra.mxu0 0.0
    %1880 = vmatprep.subr.mxu0 0.0
    %1881 = vmatpush2.msra.mxu0 0.0
    %1882 = vmatprep.subr.mxu0 0.0
    %1883 = vmatpush2.msra.mxu0 0.0
    %1884 = vmatprep.mubr.f32.mxu0 0.0
    %1885 = vmatmul.mubr.f32.gmra.mxu0 %v1689
    %v1886 = vpop.f32.mrf.mxu0
    %v1887 = vadd.f32 0.0, %v1886
    %v1888 = vpop.f32.mrf.mxu0
    %v1889 = vadd.f32 0.0, %v1888
    %1890 = vdwg.mxu0
    %v1891 = vadd.f32 %v1745, %v1816
    %v1892 = vadd.f32 %v1746, %v1818
    %v1893 = vadd.f32 %v1747, %v1887
    %v1894 = vadd.f32 %v1748, %v1889
    %v1895 = vsub.f32 0.0, %v1891
    %v1896 = vsub.f32 0.0, %v1892
    %v1897 = vsub.f32 0.0, %v1893
    %v1898 = vmul.f32 %v1895, 1.442695
    %v1899 = vpow.pop %v1898
    %v1900 = vmul.f32 %v1896, 1.442695
    %v1901 = vpow.pop %v1900
    %v1902 = vmul.f32 %v1897, 1.442695
    %v1903 = vpow.pop %v1902
    %v1904 = vadd.f32 %v1899, 1.0
    %v1905 = vadd.f32 %v1901, 1.0
    %v1906 = vadd.f32 %v1903, 1.0
    %v1907 = vrcp.pop %v1904
    %v1908 = vmul.f32 1.0, %v1907
    %v1909 = vrcp.pop %v1905
    %v1910 = vmul.f32 1.0, %v1909
    %v1911 = vrcp.pop %v1906
    %v1912 = vmul.f32 1.0, %v1911
    %v1913 = vtanh.pop %v1894
    %v1914 = vmul.f32 %v1910, %v1687
    %v1915 = vmul.f32 %v1908, %v1913
    %v1916 = vadd.f32 %v1914, %v1915
    %v1917 = vtanh.pop %v1916
    %v1918 = vmul.f32 %v1912, %v1917
    %1919 = vst [vmem:[#allocation3 + $0x28] sm:$0xff] %v1918
    %v1920 = vld [vmem:[#allocation2 + $0xc0] sm:$0xff]
    %v1921 = vld [vmem:[#allocation2 + $0xc8] sm:$0xff]
    %v1922 = vld [vmem:[#allocation2 + $0xd0] sm:$0xff]
    %v1923 = vld [vmem:[#allocation2 + $0xd8] sm:$0xff]
    %s1924 = scalar_lea.vmem %s1, 24
    %v1925 = vld [vmem:[%s1924] sm:$0xf]
    %v1927 = vlaneseq
    %v1928 = vshrl.u32 %v1927, 7
    %v1929 = vsub.s32 0, %v1928
    %v1930 = vrot.slane %v1925, %v1929
    %v1931 = vlaneseq
    %v1932 = vshrl.u32 %v1931, 7
    %v1933 = vsub.s32 1, %v1932
    %v1934 = vrot.slane %v1925, %v1933
    %v1935 = vlaneseq
    %v1936 = vshrl.u32 %v1935, 7
    %v1937 = vsub.s32 2, %v1936
    %v1938 = vrot.slane %v1925, %v1937
    %v1939 = vlaneseq
    %v1940 = vshrl.u32 %v1939, 7
    %v1941 = vsub.s32 3, %v1940
    %v1942 = vrot.slane %v1925, %v1941
    %v1947 = vmul.f32 %v1920, %v1930
    %v1948 = vmul.f32 %v1921, %v1934
    %v1949 = vmul.f32 %v1922, %v1938
    %v1950 = vmul.f32 %v1923, %v1942
    %s1951 = scalar_lea.vmem %s4, 24
    %v1952 = vld [vmem:[%s1951] sm:$0xf]
    %v1954 = vlaneseq
    %v1955 = vshrl.u32 %v1954, 7
    %v1956 = vsub.s32 0, %v1955
    %v1957 = vrot.slane %v1952, %v1956
    %v1958 = vlaneseq
    %v1959 = vshrl.u32 %v1958, 7
    %v1960 = vsub.s32 1, %v1959
    %v1961 = vrot.slane %v1952, %v1960
    %v1962 = vlaneseq
    %v1963 = vshrl.u32 %v1962, 7
    %v1964 = vsub.s32 2, %v1963
    %v1965 = vrot.slane %v1952, %v1964
    %v1966 = vlaneseq
    %v1967 = vshrl.u32 %v1966, 7
    %v1968 = vsub.s32 3, %v1967
    %v1969 = vrot.slane %v1952, %v1968
    %v1974 = vadd.f32 %v1947, %v1957
    %v1975 = vadd.f32 %v1948, %v1961
    %v1976 = vadd.f32 %v1949, %v1965
    %v1977 = vadd.f32 %v1950, %v1969
    %1978 = vmatprep.subr.mxu0 %v545
    %1979 = vmatpush1.msra.mxu0 %v544
    %1980 = vmatprep.subr.mxu0 %v541
    %1981 = vmatpush1.msra.mxu0 %v540
    %1982 = vmatprep.subr.mxu0 %v537
    %1983 = vmatpush1.msra.mxu0 %v536
    %1984 = vmatprep.subr.mxu0 %v533
    %1985 = vmatpush1.msra.mxu0 %v532
    %1986 = vmatprep.subr.mxu0 %v529
    %1987 = vmatpush1.msra.mxu0 %v528
    %1988 = vmatprep.subr.mxu0 %v525
    %1989 = vmatpush1.msra.mxu0 %v524
    %1990 = vmatprep.subr.mxu0 %v521
    %1991 = vmatpush1.msra.mxu0 %v520
    %1992 = vmatprep.subr.mxu0 %v517
    %1993 = vmatpush1.msra.mxu0 %v516
    %1994 = vmatprep.subr.mxu0 %v513
    %1995 = vmatpush1.msra.mxu0 %v512
    %1996 = vmatprep.subr.mxu0 %v509
    %1997 = vmatpush1.msra.mxu0 %v508
    %1998 = vmatprep.subr.mxu0 %v505
    %1999 = vmatpush1.msra.mxu0 %v504
    %2000 = vmatprep.subr.mxu0 %v501
    %2001 = vmatpush1.msra.mxu0 %v500
    %2002 = vmatprep.subr.mxu0 %v497
    %2003 = vmatpush1.msra.mxu0 %v496
    %2004 = vmatprep.subr.mxu0 %v493
    %2005 = vmatpush1.msra.mxu0 %v492
    %2006 = vmatprep.subr.mxu0 %v489
    %2007 = vmatpush1.msra.mxu0 %v488
    %2008 = vmatprep.subr.mxu0 %v485
    %2009 = vmatpush1.msra.mxu0 %v484
    %2010 = vmatprep.subr.mxu0 0.0
    %2011 = vmatpush2.msra.mxu0 0.0
    %2012 = vmatprep.subr.mxu0 0.0
    %2013 = vmatpush2.msra.mxu0 0.0
    %2014 = vmatprep.subr.mxu0 0.0
    %2015 = vmatpush2.msra.mxu0 0.0
    %2016 = vmatprep.subr.mxu0 0.0
    %2017 = vmatpush2.msra.mxu0 0.0
    %2018 = vmatprep.subr.mxu0 0.0
    %2019 = vmatpush2.msra.mxu0 0.0
    %2020 = vmatprep.subr.mxu0 0.0
    %2021 = vmatpush2.msra.mxu0 0.0
    %2022 = vmatprep.subr.mxu0 0.0
    %2023 = vmatpush2.msra.mxu0 0.0
    %2024 = vmatprep.subr.mxu0 0.0
    %2025 = vmatpush2.msra.mxu0 0.0
    %2026 = vmatprep.subr.mxu0 0.0
    %2027 = vmatpush2.msra.mxu0 0.0
    %2028 = vmatprep.subr.mxu0 0.0
    %2029 = vmatpush2.msra.mxu0 0.0
    %2030 = vmatprep.subr.mxu0 0.0
    %2031 = vmatpush2.msra.mxu0 0.0
    %2032 = vmatprep.subr.mxu0 0.0
    %2033 = vmatpush2.msra.mxu0 0.0
    %2034 = vmatprep.subr.mxu0 0.0
    %2035 = vmatpush2.msra.mxu0 0.0
    %2036 = vmatprep.subr.mxu0 0.0
    %2037 = vmatpush2.msra.mxu0 0.0
    %2038 = vmatprep.subr.mxu0 0.0
    %2039 = vmatpush2.msra.mxu0 0.0
    %2040 = vmatprep.subr.mxu0 0.0
    %2041 = vmatpush2.msra.mxu0 0.0
    %2042 = vmatprep.mubr.f32.mxu0 0.0
    %2043 = vmatmul.mubr.f32.gmra.mxu0 %v1918
    %v2044 = vpop.f32.mrf.mxu0
    %v2045 = vadd.f32 0.0, %v2044
    %v2046 = vpop.f32.mrf.mxu0
    %v2047 = vadd.f32 0.0, %v2046
    %2048 = vdwg.mxu0
    %2049 = vmatprep.subr.mxu0 %v547
    %2050 = vmatpush1.msra.mxu0 %v546
    %2051 = vmatprep.subr.mxu0 %v543
    %2052 = vmatpush1.msra.mxu0 %v542
    %2053 = vmatprep.subr.mxu0 %v539
    %2054 = vmatpush1.msra.mxu0 %v538
    %2055 = vmatprep.subr.mxu0 %v535
    %2056 = vmatpush1.msra.mxu0 %v534
    %2057 = vmatprep.subr.mxu0 %v531
    %2058 = vmatpush1.msra.mxu0 %v530
    %2059 = vmatprep.subr.mxu0 %v527
    %2060 = vmatpush1.msra.mxu0 %v526
    %2061 = vmatprep.subr.mxu0 %v523
    %2062 = vmatpush1.msra.mxu0 %v522
    %2063 = vmatprep.subr.mxu0 %v519
    %2064 = vmatpush1.msra.mxu0 %v518
    %2065 = vmatprep.subr.mxu0 %v515
    %2066 = vmatpush1.msra.mxu0 %v514
    %2067 = vmatprep.subr.mxu0 %v511
    %2068 = vmatpush1.msra.mxu0 %v510
    %2069 = vmatprep.subr.mxu0 %v507
    %2070 = vmatpush1.msra.mxu0 %v506
    %2071 = vmatprep.subr.mxu0 %v503
    %2072 = vmatpush1.msra.mxu0 %v502
    %2073 = vmatprep.subr.mxu0 %v499
    %2074 = vmatpush1.msra.mxu0 %v498
    %2075 = vmatprep.subr.mxu0 %v495
    %2076 = vmatpush1.msra.mxu0 %v494
    %2077 = vmatprep.subr.mxu0 %v491
    %2078 = vmatpush1.msra.mxu0 %v490
    %2079 = vmatprep.subr.mxu0 %v487
    %2080 = vmatpush1.msra.mxu0 %v486
    %2081 = vmatprep.subr.mxu0 0.0
    %2082 = vmatpush2.msra.mxu0 0.0
    %2083 = vmatprep.subr.mxu0 0.0
    %2084 = vmatpush2.msra.mxu0 0.0
    %2085 = vmatprep.subr.mxu0 0.0
    %2086 = vmatpush2.msra.mxu0 0.0
    %2087 = vmatprep.subr.mxu0 0.0
    %2088 = vmatpush2.msra.mxu0 0.0
    %2089 = vmatprep.subr.mxu0 0.0
    %2090 = vmatpush2.msra.mxu0 0.0
    %2091 = vmatprep.subr.mxu0 0.0
    %2092 = vmatpush2.msra.mxu0 0.0
    %2093 = vmatprep.subr.mxu0 0.0
    %2094 = vmatpush2.msra.mxu0 0.0
    %2095 = vmatprep.subr.mxu0 0.0
    %2096 = vmatpush2.msra.mxu0 0.0
    %2097 = vmatprep.subr.mxu0 0.0
    %2098 = vmatpush2.msra.mxu0 0.0
    %2099 = vmatprep.subr.mxu0 0.0
    %2100 = vmatpush2.msra.mxu0 0.0
    %2101 = vmatprep.subr.mxu0 0.0
    %2102 = vmatpush2.msra.mxu0 0.0
    %2103 = vmatprep.subr.mxu0 0.0
    %2104 = vmatpush2.msra.mxu0 0.0
    %2105 = vmatprep.subr.mxu0 0.0
    %2106 = vmatpush2.msra.mxu0 0.0
    %2107 = vmatprep.subr.mxu0 0.0
    %2108 = vmatpush2.msra.mxu0 0.0
    %2109 = vmatprep.subr.mxu0 0.0
    %2110 = vmatpush2.msra.mxu0 0.0
    %2111 = vmatprep.subr.mxu0 0.0
    %2112 = vmatpush2.msra.mxu0 0.0
    %2113 = vmatprep.mubr.f32.mxu0 0.0
    %2114 = vmatmul.mubr.f32.gmra.mxu0 %v1918
    %v2115 = vpop.f32.mrf.mxu0
    %v2116 = vadd.f32 0.0, %v2115
    %v2117 = vpop.f32.mrf.mxu0
    %v2118 = vadd.f32 0.0, %v2117
    %2119 = vdwg.mxu0
    %v2120 = vadd.f32 %v1974, %v2045
    %v2121 = vadd.f32 %v1975, %v2047
    %v2122 = vadd.f32 %v1976, %v2116
    %v2123 = vadd.f32 %v1977, %v2118
    %v2124 = vsub.f32 0.0, %v2120
    %v2125 = vsub.f32 0.0, %v2121
    %v2126 = vsub.f32 0.0, %v2122
    %v2127 = vmul.f32 %v2124, 1.442695
    %v2128 = vpow.pop %v2127
    %v2129 = vmul.f32 %v2125, 1.442695
    %v2130 = vpow.pop %v2129
    %v2131 = vmul.f32 %v2126, 1.442695
    %v2132 = vpow.pop %v2131
    %v2133 = vadd.f32 %v2128, 1.0
    %v2134 = vadd.f32 %v2130, 1.0
    %v2135 = vadd.f32 %v2132, 1.0
    %v2136 = vrcp.pop %v2133
    %v2137 = vmul.f32 1.0, %v2136
    %v2138 = vrcp.pop %v2134
    %v2139 = vmul.f32 1.0, %v2138
    %v2140 = vrcp.pop %v2135
    %v2141 = vmul.f32 1.0, %v2140
    %v2142 = vtanh.pop %v2123
    %v2143 = vmul.f32 %v2139, %v1916
    %v2144 = vmul.f32 %v2137, %v2142
    %v2145 = vadd.f32 %v2143, %v2144
    %v2146 = vtanh.pop %v2145
    %v2147 = vmul.f32 %v2141, %v2146
    %2148 = vst [vmem:[#allocation3 + $0x30] sm:$0xff] %v2147
    %v2149 = vld [vmem:[#allocation2 + $0xe0] sm:$0xff]
    %v2150 = vld [vmem:[#allocation2 + $0xe8] sm:$0xff]
    %v2151 = vld [vmem:[#allocation2 + $0xf0] sm:$0xff]
    %v2152 = vld [vmem:[#allocation2 + $0xf8] sm:$0xff]
    %s2153 = scalar_lea.vmem %s1, 28
    %v2154 = vld [vmem:[%s2153] sm:$0xf]
    %v2156 = vlaneseq
    %v2157 = vshrl.u32 %v2156, 7
    %v2158 = vsub.s32 0, %v2157
    %v2159 = vrot.slane %v2154, %v2158
    %v2160 = vlaneseq
    %v2161 = vshrl.u32 %v2160, 7
    %v2162 = vsub.s32 1, %v2161
    %v2163 = vrot.slane %v2154, %v2162
    %v2164 = vlaneseq
    %v2165 = vshrl.u32 %v2164, 7
    %v2166 = vsub.s32 2, %v2165
    %v2167 = vrot.slane %v2154, %v2166
    %v2168 = vlaneseq
    %v2169 = vshrl.u32 %v2168, 7
    %v2170 = vsub.s32 3, %v2169
    %v2171 = vrot.slane %v2154, %v2170
    %v2176 = vmul.f32 %v2149, %v2159
    %v2177 = vmul.f32 %v2150, %v2163
    %v2178 = vmul.f32 %v2151, %v2167
    %v2179 = vmul.f32 %v2152, %v2171
    %s2180 = scalar_lea.vmem %s4, 28
    %v2181 = vld [vmem:[%s2180] sm:$0xf]
    %v2183 = vlaneseq
    %v2184 = vshrl.u32 %v2183, 7
    %v2185 = vsub.s32 0, %v2184
    %v2186 = vrot.slane %v2181, %v2185
    %v2187 = vlaneseq
    %v2188 = vshrl.u32 %v2187, 7
    %v2189 = vsub.s32 1, %v2188
    %v2190 = vrot.slane %v2181, %v2189
    %v2191 = vlaneseq
    %v2192 = vshrl.u32 %v2191, 7
    %v2193 = vsub.s32 2, %v2192
    %v2194 = vrot.slane %v2181, %v2193
    %v2195 = vlaneseq
    %v2196 = vshrl.u32 %v2195, 7
    %v2197 = vsub.s32 3, %v2196
    %v2198 = vrot.slane %v2181, %v2197
    %v2203 = vadd.f32 %v2176, %v2186
    %v2204 = vadd.f32 %v2177, %v2190
    %v2205 = vadd.f32 %v2178, %v2194
    %v2206 = vadd.f32 %v2179, %v2198
    %2207 = vmatprep.subr.mxu0 %v545
    %2208 = vmatpush1.msra.mxu0 %v544
    %2209 = vmatprep.subr.mxu0 %v541
    %2210 = vmatpush1.msra.mxu0 %v540
    %2211 = vmatprep.subr.mxu0 %v537
    %2212 = vmatpush1.msra.mxu0 %v536
    %2213 = vmatprep.subr.mxu0 %v533
    %2214 = vmatpush1.msra.mxu0 %v532
    %2215 = vmatprep.subr.mxu0 %v529
    %2216 = vmatpush1.msra.mxu0 %v528
    %2217 = vmatprep.subr.mxu0 %v525
    %2218 = vmatpush1.msra.mxu0 %v524
    %2219 = vmatprep.subr.mxu0 %v521
    %2220 = vmatpush1.msra.mxu0 %v520
    %2221 = vmatprep.subr.mxu0 %v517
    %2222 = vmatpush1.msra.mxu0 %v516
    %2223 = vmatprep.subr.mxu0 %v513
    %2224 = vmatpush1.msra.mxu0 %v512
    %2225 = vmatprep.subr.mxu0 %v509
    %2226 = vmatpush1.msra.mxu0 %v508
    %2227 = vmatprep.subr.mxu0 %v505
    %2228 = vmatpush1.msra.mxu0 %v504
    %2229 = vmatprep.subr.mxu0 %v501
    %2230 = vmatpush1.msra.mxu0 %v500
    %2231 = vmatprep.subr.mxu0 %v497
    %2232 = vmatpush1.msra.mxu0 %v496
    %2233 = vmatprep.subr.mxu0 %v493
    %2234 = vmatpush1.msra.mxu0 %v492
    %2235 = vmatprep.subr.mxu0 %v489
    %2236 = vmatpush1.msra.mxu0 %v488
    %2237 = vmatprep.subr.mxu0 %v485
    %2238 = vmatpush1.msra.mxu0 %v484
    %2239 = vmatprep.subr.mxu0 0.0
    %2240 = vmatpush2.msra.mxu0 0.0
    %2241 = vmatprep.subr.mxu0 0.0
    %2242 = vmatpush2.msra.mxu0 0.0
    %2243 = vmatprep.subr.mxu0 0.0
    %2244 = vmatpush2.msra.mxu0 0.0
    %2245 = vmatprep.subr.mxu0 0.0
    %2246 = vmatpush2.msra.mxu0 0.0
    %2247 = vmatprep.subr.mxu0 0.0
    %2248 = vmatpush2.msra.mxu0 0.0
    %2249 = vmatprep.subr.mxu0 0.0
    %2250 = vmatpush2.msra.mxu0 0.0
    %2251 = vmatprep.subr.mxu0 0.0
    %2252 = vmatpush2.msra.mxu0 0.0
    %2253 = vmatprep.subr.mxu0 0.0
    %2254 = vmatpush2.msra.mxu0 0.0
    %2255 = vmatprep.subr.mxu0 0.0
    %2256 = vmatpush2.msra.mxu0 0.0
    %2257 = vmatprep.subr.mxu0 0.0
    %2258 = vmatpush2.msra.mxu0 0.0
    %2259 = vmatprep.subr.mxu0 0.0
    %2260 = vmatpush2.msra.mxu0 0.0
    %2261 = vmatprep.subr.mxu0 0.0
    %2262 = vmatpush2.msra.mxu0 0.0
    %2263 = vmatprep.subr.mxu0 0.0
    %2264 = vmatpush2.msra.mxu0 0.0
    %2265 = vmatprep.subr.mxu0 0.0
    %2266 = vmatpush2.msra.mxu0 0.0
    %2267 = vmatprep.subr.mxu0 0.0
    %2268 = vmatpush2.msra.mxu0 0.0
    %2269 = vmatprep.subr.mxu0 0.0
    %2270 = vmatpush2.msra.mxu0 0.0
    %2271 = vmatprep.mubr.f32.mxu0 0.0
    %2272 = vmatmul.mubr.f32.gmra.mxu0 %v2147
    %v2273 = vpop.f32.mrf.mxu0
    %v2274 = vadd.f32 0.0, %v2273
    %v2275 = vpop.f32.mrf.mxu0
    %v2276 = vadd.f32 0.0, %v2275
    %2277 = vdwg.mxu0
    %2278 = vmatprep.subr.mxu0 %v547
    %2279 = vmatpush1.msra.mxu0 %v546
    %2280 = vmatprep.subr.mxu0 %v543
    %2281 = vmatpush1.msra.mxu0 %v542
    %2282 = vmatprep.subr.mxu0 %v539
    %2283 = vmatpush1.msra.mxu0 %v538
    %2284 = vmatprep.subr.mxu0 %v535
    %2285 = vmatpush1.msra.mxu0 %v534
    %2286 = vmatprep.subr.mxu0 %v531
    %2287 = vmatpush1.msra.mxu0 %v530
    %2288 = vmatprep.subr.mxu0 %v527
    %2289 = vmatpush1.msra.mxu0 %v526
    %2290 = vmatprep.subr.mxu0 %v523
    %2291 = vmatpush1.msra.mxu0 %v522
    %2292 = vmatprep.subr.mxu0 %v519
    %2293 = vmatpush1.msra.mxu0 %v518
    %2294 = vmatprep.subr.mxu0 %v515
    %2295 = vmatpush1.msra.mxu0 %v514
    %2296 = vmatprep.subr.mxu0 %v511
    %2297 = vmatpush1.msra.mxu0 %v510
    %2298 = vmatprep.subr.mxu0 %v507
    %2299 = vmatpush1.msra.mxu0 %v506
    %2300 = vmatprep.subr.mxu0 %v503
    %2301 = vmatpush1.msra.mxu0 %v502
    %2302 = vmatprep.subr.mxu0 %v499
    %2303 = vmatpush1.msra.mxu0 %v498
    %2304 = vmatprep.subr.mxu0 %v495
    %2305 = vmatpush1.msra.mxu0 %v494
    %2306 = vmatprep.subr.mxu0 %v491
    %2307 = vmatpush1.msra.mxu0 %v490
    %2308 = vmatprep.subr.mxu0 %v487
    %2309 = vmatpush1.msra.mxu0 %v486
    %2310 = vmatprep.subr.mxu0 0.0
    %2311 = vmatpush2.msra.mxu0 0.0
    %2312 = vmatprep.subr.mxu0 0.0
    %2313 = vmatpush2.msra.mxu0 0.0
    %2314 = vmatprep.subr.mxu0 0.0
    %2315 = vmatpush2.msra.mxu0 0.0
    %2316 = vmatprep.subr.mxu0 0.0
    %2317 = vmatpush2.msra.mxu0 0.0
    %2318 = vmatprep.subr.mxu0 0.0
    %2319 = vmatpush2.msra.mxu0 0.0
    %2320 = vmatprep.subr.mxu0 0.0
    %2321 = vmatpush2.msra.mxu0 0.0
    %2322 = vmatprep.subr.mxu0 0.0
    %2323 = vmatpush2.msra.mxu0 0.0
    %2324 = vmatprep.subr.mxu0 0.0
    %2325 = vmatpush2.msra.mxu0 0.0
    %2326 = vmatprep.subr.mxu0 0.0
    %2327 = vmatpush2.msra.mxu0 0.0
    %2328 = vmatprep.subr.mxu0 0.0
    %2329 = vmatpush2.msra.mxu0 0.0
    %2330 = vmatprep.subr.mxu0 0.0
    %2331 = vmatpush2.msra.mxu0 0.0
    %2332 = vmatprep.subr.mxu0 0.0
    %2333 = vmatpush2.msra.mxu0 0.0
    %2334 = vmatprep.subr.mxu0 0.0
    %2335 = vmatpush2.msra.mxu0 0.0
    %2336 = vmatprep.subr.mxu0 0.0
    %2337 = vmatpush2.msra.mxu0 0.0
    %2338 = vmatprep.subr.mxu0 0.0
    %2339 = vmatpush2.msra.mxu0 0.0
    %2340 = vmatprep.subr.mxu0 0.0
    %2341 = vmatpush2.msra.mxu0 0.0
    %2342 = vmatprep.mubr.f32.mxu0 0.0
    %2343 = vmatmul.mubr.f32.gmra.mxu0 %v2147
    %v2344 = vpop.f32.mrf.mxu0
    %v2345 = vadd.f32 0.0, %v2344
    %v2346 = vpop.f32.mrf.mxu0
    %v2347 = vadd.f32 0.0, %v2346
    %2348 = vdwg.mxu0
    %v2349 = vadd.f32 %v2203, %v2274
    %v2350 = vadd.f32 %v2204, %v2276
    %v2351 = vadd.f32 %v2205, %v2345
    %v2352 = vadd.f32 %v2206, %v2347
    %v2353 = vsub.f32 0.0, %v2349
    %v2354 = vsub.f32 0.0, %v2350
    %v2355 = vsub.f32 0.0, %v2351
    %v2356 = vmul.f32 %v2353, 1.442695
    %v2357 = vpow.pop %v2356
    %v2358 = vmul.f32 %v2354, 1.442695
    %v2359 = vpow.pop %v2358
    %v2360 = vmul.f32 %v2355, 1.442695
    %v2361 = vpow.pop %v2360
    %v2362 = vadd.f32 %v2357, 1.0
    %v2363 = vadd.f32 %v2359, 1.0
    %v2364 = vadd.f32 %v2361, 1.0
    %v2365 = vrcp.pop %v2362
    %v2366 = vmul.f32 1.0, %v2365
    %v2367 = vrcp.pop %v2363
    %v2368 = vmul.f32 1.0, %v2367
    %v2369 = vrcp.pop %v2364
    %v2370 = vmul.f32 1.0, %v2369
    %v2371 = vtanh.pop %v2352
    %v2372 = vmul.f32 %v2368, %v2145
    %v2373 = vmul.f32 %v2366, %v2371
    %v2374 = vadd.f32 %v2372, %v2373
    %v2375 = vtanh.pop %v2374
    %v2376 = vmul.f32 %v2370, %v2375
    %2377 = vst [vmem:[#allocation3 + $0x38] sm:$0xff] %v2376
    %v2378 = vld [vmem:[#allocation2 + $0x100] sm:$0xff]
    %v2379 = vld [vmem:[#allocation2 + $0x108] sm:$0xff]
    %v2380 = vld [vmem:[#allocation2 + $0x110] sm:$0xff]
    %v2381 = vld [vmem:[#allocation2 + $0x118] sm:$0xff]
    %s2382 = scalar_lea.vmem %s1, 32
    %v2383 = vld [vmem:[%s2382] sm:$0xf]
    %v2385 = vlaneseq
    %v2386 = vshrl.u32 %v2385, 7
    %v2387 = vsub.s32 0, %v2386
    %v2388 = vrot.slane %v2383, %v2387
    %v2389 = vlaneseq
    %v2390 = vshrl.u32 %v2389, 7
    %v2391 = vsub.s32 1, %v2390
    %v2392 = vrot.slane %v2383, %v2391
    %v2393 = vlaneseq
    %v2394 = vshrl.u32 %v2393, 7
    %v2395 = vsub.s32 2, %v2394
    %v2396 = vrot.slane %v2383, %v2395
    %v2397 = vlaneseq
    %v2398 = vshrl.u32 %v2397, 7
    %v2399 = vsub.s32 3, %v2398
    %v2400 = vrot.slane %v2383, %v2399
    %v2405 = vmul.f32 %v2378, %v2388
    %v2406 = vmul.f32 %v2379, %v2392
    %v2407 = vmul.f32 %v2380, %v2396
    %v2408 = vmul.f32 %v2381, %v2400
    %s2409 = scalar_lea.vmem %s4, 32
    %v2410 = vld [vmem:[%s2409] sm:$0xf]
    %v2412 = vlaneseq
    %v2413 = vshrl.u32 %v2412, 7
    %v2414 = vsub.s32 0, %v2413
    %v2415 = vrot.slane %v2410, %v2414
    %v2416 = vlaneseq
    %v2417 = vshrl.u32 %v2416, 7
    %v2418 = vsub.s32 1, %v2417
    %v2419 = vrot.slane %v2410, %v2418
    %v2420 = vlaneseq
    %v2421 = vshrl.u32 %v2420, 7
    %v2422 = vsub.s32 2, %v2421
    %v2423 = vrot.slane %v2410, %v2422
    %v2424 = vlaneseq
    %v2425 = vshrl.u32 %v2424, 7
    %v2426 = vsub.s32 3, %v2425
    %v2427 = vrot.slane %v2410, %v2426
    %v2432 = vadd.f32 %v2405, %v2415
    %v2433 = vadd.f32 %v2406, %v2419
    %v2434 = vadd.f32 %v2407, %v2423
    %v2435 = vadd.f32 %v2408, %v2427
    %2436 = vmatprep.subr.mxu0 %v545
    %2437 = vmatpush1.msra.mxu0 %v544
    %2438 = vmatprep.subr.mxu0 %v541
    %2439 = vmatpush1.msra.mxu0 %v540
    %2440 = vmatprep.subr.mxu0 %v537
    %2441 = vmatpush1.msra.mxu0 %v536
    %2442 = vmatprep.subr.mxu0 %v533
    %2443 = vmatpush1.msra.mxu0 %v532
    %2444 = vmatprep.subr.mxu0 %v529
    %2445 = vmatpush1.msra.mxu0 %v528
    %2446 = vmatprep.subr.mxu0 %v525
    %2447 = vmatpush1.msra.mxu0 %v524
    %2448 = vmatprep.subr.mxu0 %v521
    %2449 = vmatpush1.msra.mxu0 %v520
    %2450 = vmatprep.subr.mxu0 %v517
    %2451 = vmatpush1.msra.mxu0 %v516
    %2452 = vmatprep.subr.mxu0 %v513
    %2453 = vmatpush1.msra.mxu0 %v512
    %2454 = vmatprep.subr.mxu0 %v509
    %2455 = vmatpush1.msra.mxu0 %v508
    %2456 = vmatprep.subr.mxu0 %v505
    %2457 = vmatpush1.msra.mxu0 %v504
    %2458 = vmatprep.subr.mxu0 %v501
    %2459 = vmatpush1.msra.mxu0 %v500
    %2460 = vmatprep.subr.mxu0 %v497
    %2461 = vmatpush1.msra.mxu0 %v496
    %2462 = vmatprep.subr.mxu0 %v493
    %2463 = vmatpush1.msra.mxu0 %v492
    %2464 = vmatprep.subr.mxu0 %v489
    %2465 = vmatpush1.msra.mxu0 %v488
    %2466 = vmatprep.subr.mxu0 %v485
    %2467 = vmatpush1.msra.mxu0 %v484
    %2468 = vmatprep.subr.mxu0 0.0
    %2469 = vmatpush2.msra.mxu0 0.0
    %2470 = vmatprep.subr.mxu0 0.0
    %2471 = vmatpush2.msra.mxu0 0.0
    %2472 = vmatprep.subr.mxu0 0.0
    %2473 = vmatpush2.msra.mxu0 0.0
    %2474 = vmatprep.subr.mxu0 0.0
    %2475 = vmatpush2.msra.mxu0 0.0
    %2476 = vmatprep.subr.mxu0 0.0
    %2477 = vmatpush2.msra.mxu0 0.0
    %2478 = vmatprep.subr.mxu0 0.0
    %2479 = vmatpush2.msra.mxu0 0.0
    %2480 = vmatprep.subr.mxu0 0.0
    %2481 = vmatpush2.msra.mxu0 0.0
    %2482 = vmatprep.subr.mxu0 0.0
    %2483 = vmatpush2.msra.mxu0 0.0
    %2484 = vmatprep.subr.mxu0 0.0
    %2485 = vmatpush2.msra.mxu0 0.0
    %2486 = vmatprep.subr.mxu0 0.0
    %2487 = vmatpush2.msra.mxu0 0.0
    %2488 = vmatprep.subr.mxu0 0.0
    %2489 = vmatpush2.msra.mxu0 0.0
    %2490 = vmatprep.subr.mxu0 0.0
    %2491 = vmatpush2.msra.mxu0 0.0
    %2492 = vmatprep.subr.mxu0 0.0
    %2493 = vmatpush2.msra.mxu0 0.0
    %2494 = vmatprep.subr.mxu0 0.0
    %2495 = vmatpush2.msra.mxu0 0.0
    %2496 = vmatprep.subr.mxu0 0.0
    %2497 = vmatpush2.msra.mxu0 0.0
    %2498 = vmatprep.subr.mxu0 0.0
    %2499 = vmatpush2.msra.mxu0 0.0
    %2500 = vmatprep.mubr.f32.mxu0 0.0
    %2501 = vmatmul.mubr.f32.gmra.mxu0 %v2376
    %v2502 = vpop.f32.mrf.mxu0
    %v2503 = vadd.f32 0.0, %v2502
    %v2504 = vpop.f32.mrf.mxu0
    %v2505 = vadd.f32 0.0, %v2504
    %2506 = vdwg.mxu0
    %2507 = vmatprep.subr.mxu0 %v547
    %2508 = vmatpush1.msra.mxu0 %v546
    %2509 = vmatprep.subr.mxu0 %v543
    %2510 = vmatpush1.msra.mxu0 %v542
    %2511 = vmatprep.subr.mxu0 %v539
    %2512 = vmatpush1.msra.mxu0 %v538
    %2513 = vmatprep.subr.mxu0 %v535
    %2514 = vmatpush1.msra.mxu0 %v534
    %2515 = vmatprep.subr.mxu0 %v531
    %2516 = vmatpush1.msra.mxu0 %v530
    %2517 = vmatprep.subr.mxu0 %v527
    %2518 = vmatpush1.msra.mxu0 %v526
    %2519 = vmatprep.subr.mxu0 %v523
    %2520 = vmatpush1.msra.mxu0 %v522
    %2521 = vmatprep.subr.mxu0 %v519
    %2522 = vmatpush1.msra.mxu0 %v518
    %2523 = vmatprep.subr.mxu0 %v515
    %2524 = vmatpush1.msra.mxu0 %v514
    %2525 = vmatprep.subr.mxu0 %v511
    %2526 = vmatpush1.msra.mxu0 %v510
    %2527 = vmatprep.subr.mxu0 %v507
    %2528 = vmatpush1.msra.mxu0 %v506
    %2529 = vmatprep.subr.mxu0 %v503
    %2530 = vmatpush1.msra.mxu0 %v502
    %2531 = vmatprep.subr.mxu0 %v499
    %2532 = vmatpush1.msra.mxu0 %v498
    %2533 = vmatprep.subr.mxu0 %v495
    %2534 = vmatpush1.msra.mxu0 %v494
    %2535 = vmatprep.subr.mxu0 %v491
    %2536 = vmatpush1.msra.mxu0 %v490
    %2537 = vmatprep.subr.mxu0 %v487
    %2538 = vmatpush1.msra.mxu0 %v486
    %2539 = vmatprep.subr.mxu0 0.0
    %2540 = vmatpush2.msra.mxu0 0.0
    %2541 = vmatprep.subr.mxu0 0.0
    %2542 = vmatpush2.msra.mxu0 0.0
    %2543 = vmatprep.subr.mxu0 0.0
    %2544 = vmatpush2.msra.mxu0 0.0
    %2545 = vmatprep.subr.mxu0 0.0
    %2546 = vmatpush2.msra.mxu0 0.0
    %2547 = vmatprep.subr.mxu0 0.0
    %2548 = vmatpush2.msra.mxu0 0.0
    %2549 = vmatprep.subr.mxu0 0.0
    %2550 = vmatpush2.msra.mxu0 0.0
    %2551 = vmatprep.subr.mxu0 0.0
    %2552 = vmatpush2.msra.mxu0 0.0
    %2553 = vmatprep.subr.mxu0 0.0
    %2554 = vmatpush2.msra.mxu0 0.0
    %2555 = vmatprep.subr.mxu0 0.0
    %2556 = vmatpush2.msra.mxu0 0.0
    %2557 = vmatprep.subr.mxu0 0.0
    %2558 = vmatpush2.msra.mxu0 0.0
    %2559 = vmatprep.subr.mxu0 0.0
    %2560 = vmatpush2.msra.mxu0 0.0
    %2561 = vmatprep.subr.mxu0 0.0
    %2562 = vmatpush2.msra.mxu0 0.0
    %2563 = vmatprep.subr.mxu0 0.0
    %2564 = vmatpush2.msra.mxu0 0.0
    %2565 = vmatprep.subr.mxu0 0.0
    %2566 = vmatpush2.msra.mxu0 0.0
    %2567 = vmatprep.subr.mxu0 0.0
    %2568 = vmatpush2.msra.mxu0 0.0
    %2569 = vmatprep.subr.mxu0 0.0
    %2570 = vmatpush2.msra.mxu0 0.0
    %2571 = vmatprep.mubr.f32.mxu0 0.0
    %2572 = vmatmul.mubr.f32.gmra.mxu0 %v2376
    %v2573 = vpop.f32.mrf.mxu0
    %v2574 = vadd.f32 0.0, %v2573
    %v2575 = vpop.f32.mrf.mxu0
    %v2576 = vadd.f32 0.0, %v2575
    %2577 = vdwg.mxu0
    %v2578 = vadd.f32 %v2432, %v2503
    %v2579 = vadd.f32 %v2433, %v2505
    %v2580 = vadd.f32 %v2434, %v2574
    %v2581 = vadd.f32 %v2435, %v2576
    %v2582 = vsub.f32 0.0, %v2578
    %v2583 = vsub.f32 0.0, %v2579
    %v2584 = vsub.f32 0.0, %v2580
    %v2585 = vmul.f32 %v2582, 1.442695
    %v2586 = vpow.pop %v2585
    %v2587 = vmul.f32 %v2583, 1.442695
    %v2588 = vpow.pop %v2587
    %v2589 = vmul.f32 %v2584, 1.442695
    %v2590 = vpow.pop %v2589
    %v2591 = vadd.f32 %v2586, 1.0
    %v2592 = vadd.f32 %v2588, 1.0
    %v2593 = vadd.f32 %v2590, 1.0
    %v2594 = vrcp.pop %v2591
    %v2595 = vmul.f32 1.0, %v2594
    %v2596 = vrcp.pop %v2592
    %v2597 = vmul.f32 1.0, %v2596
    %v2598 = vrcp.pop %v2593
    %v2599 = vmul.f32 1.0, %v2598
    %v2600 = vtanh.pop %v2581
    %v2601 = vmul.f32 %v2597, %v2374
    %v2602 = vmul.f32 %v2595, %v2600
    %v2603 = vadd.f32 %v2601, %v2602
    %v2604 = vtanh.pop %v2603
    %v2605 = vmul.f32 %v2599, %v2604
    %2606 = vst [vmem:[#allocation3 + $0x40] sm:$0xff] %v2605
    %v2607 = vld [vmem:[#allocation2 + $0x120] sm:$0xff]
    %v2608 = vld [vmem:[#allocation2 + $0x128] sm:$0xff]
    %v2609 = vld [vmem:[#allocation2 + $0x130] sm:$0xff]
    %v2610 = vld [vmem:[#allocation2 + $0x138] sm:$0xff]
    %s2611 = scalar_lea.vmem %s1, 36
    %v2612 = vld [vmem:[%s2611] sm:$0xf]
    %v2614 = vlaneseq
    %v2615 = vshrl.u32 %v2614, 7
    %v2616 = vsub.s32 0, %v2615
    %v2617 = vrot.slane %v2612, %v2616
    %v2618 = vlaneseq
    %v2619 = vshrl.u32 %v2618, 7
    %v2620 = vsub.s32 1, %v2619
    %v2621 = vrot.slane %v2612, %v2620
    %v2622 = vlaneseq
    %v2623 = vshrl.u32 %v2622, 7
    %v2624 = vsub.s32 2, %v2623
    %v2625 = vrot.slane %v2612, %v2624
    %v2626 = vlaneseq
    %v2627 = vshrl.u32 %v2626, 7
    %v2628 = vsub.s32 3, %v2627
    %v2629 = vrot.slane %v2612, %v2628
    %v2634 = vmul.f32 %v2607, %v2617
    %v2635 = vmul.f32 %v2608, %v2621
    %v2636 = vmul.f32 %v2609, %v2625
    %v2637 = vmul.f32 %v2610, %v2629
    %s2638 = scalar_lea.vmem %s4, 36
    %v2639 = vld [vmem:[%s2638] sm:$0xf]
    %v2641 = vlaneseq
    %v2642 = vshrl.u32 %v2641, 7
    %v2643 = vsub.s32 0, %v2642
    %v2644 = vrot.slane %v2639, %v2643
    %v2645 = vlaneseq
    %v2646 = vshrl.u32 %v2645, 7
    %v2647 = vsub.s32 1, %v2646
    %v2648 = vrot.slane %v2639, %v2647
    %v2649 = vlaneseq
    %v2650 = vshrl.u32 %v2649, 7
    %v2651 = vsub.s32 2, %v2650
    %v2652 = vrot.slane %v2639, %v2651
    %v2653 = vlaneseq
    %v2654 = vshrl.u32 %v2653, 7
    %v2655 = vsub.s32 3, %v2654
    %v2656 = vrot.slane %v2639, %v2655
    %v2661 = vadd.f32 %v2634, %v2644
    %v2662 = vadd.f32 %v2635, %v2648
    %v2663 = vadd.f32 %v2636, %v2652
    %v2664 = vadd.f32 %v2637, %v2656
    %2665 = vmatprep.subr.mxu0 %v545
    %2666 = vmatpush1.msra.mxu0 %v544
    %2667 = vmatprep.subr.mxu0 %v541
    %2668 = vmatpush1.msra.mxu0 %v540
    %2669 = vmatprep.subr.mxu0 %v537
    %2670 = vmatpush1.msra.mxu0 %v536
    %2671 = vmatprep.subr.mxu0 %v533
    %2672 = vmatpush1.msra.mxu0 %v532
    %2673 = vmatprep.subr.mxu0 %v529
    %2674 = vmatpush1.msra.mxu0 %v528
    %2675 = vmatprep.subr.mxu0 %v525
    %2676 = vmatpush1.msra.mxu0 %v524
    %2677 = vmatprep.subr.mxu0 %v521
    %2678 = vmatpush1.msra.mxu0 %v520
    %2679 = vmatprep.subr.mxu0 %v517
    %2680 = vmatpush1.msra.mxu0 %v516
    %2681 = vmatprep.subr.mxu0 %v513
    %2682 = vmatpush1.msra.mxu0 %v512
    %2683 = vmatprep.subr.mxu0 %v509
    %2684 = vmatpush1.msra.mxu0 %v508
    %2685 = vmatprep.subr.mxu0 %v505
    %2686 = vmatpush1.msra.mxu0 %v504
    %2687 = vmatprep.subr.mxu0 %v501
    %2688 = vmatpush1.msra.mxu0 %v500
    %2689 = vmatprep.subr.mxu0 %v497
    %2690 = vmatpush1.msra.mxu0 %v496
    %2691 = vmatprep.subr.mxu0 %v493
    %2692 = vmatpush1.msra.mxu0 %v492
    %2693 = vmatprep.subr.mxu0 %v489
    %2694 = vmatpush1.msra.mxu0 %v488
    %2695 = vmatprep.subr.mxu0 %v485
    %2696 = vmatpush1.msra.mxu0 %v484
    %2697 = vmatprep.subr.mxu0 0.0
    %2698 = vmatpush2.msra.mxu0 0.0
    %2699 = vmatprep.subr.mxu0 0.0
    %2700 = vmatpush2.msra.mxu0 0.0
    %2701 = vmatprep.subr.mxu0 0.0
    %2702 = vmatpush2.msra.mxu0 0.0
    %2703 = vmatprep.subr.mxu0 0.0
    %2704 = vmatpush2.msra.mxu0 0.0
    %2705 = vmatprep.subr.mxu0 0.0
    %2706 = vmatpush2.msra.mxu0 0.0
    %2707 = vmatprep.subr.mxu0 0.0
    %2708 = vmatpush2.msra.mxu0 0.0
    %2709 = vmatprep.subr.mxu0 0.0
    %2710 = vmatpush2.msra.mxu0 0.0
    %2711 = vmatprep.subr.mxu0 0.0
    %2712 = vmatpush2.msra.mxu0 0.0
    %2713 = vmatprep.subr.mxu0 0.0
    %2714 = vmatpush2.msra.mxu0 0.0
    %2715 = vmatprep.subr.mxu0 0.0
    %2716 = vmatpush2.msra.mxu0 0.0
    %2717 = vmatprep.subr.mxu0 0.0
    %2718 = vmatpush2.msra.mxu0 0.0
    %2719 = vmatprep.subr.mxu0 0.0
    %2720 = vmatpush2.msra.mxu0 0.0
    %2721 = vmatprep.subr.mxu0 0.0
    %2722 = vmatpush2.msra.mxu0 0.0
    %2723 = vmatprep.subr.mxu0 0.0
    %2724 = vmatpush2.msra.mxu0 0.0
    %2725 = vmatprep.subr.mxu0 0.0
    %2726 = vmatpush2.msra.mxu0 0.0
    %2727 = vmatprep.subr.mxu0 0.0
    %2728 = vmatpush2.msra.mxu0 0.0
    %2729 = vmatprep.mubr.f32.mxu0 0.0
    %2730 = vmatmul.mubr.f32.gmra.mxu0 %v2605
    %v2731 = vpop.f32.mrf.mxu0
    %v2732 = vadd.f32 0.0, %v2731
    %v2733 = vpop.f32.mrf.mxu0
    %v2734 = vadd.f32 0.0, %v2733
    %2735 = vdwg.mxu0
    %2736 = vmatprep.subr.mxu0 %v547
    %2737 = vmatpush1.msra.mxu0 %v546
    %2738 = vmatprep.subr.mxu0 %v543
    %2739 = vmatpush1.msra.mxu0 %v542
    %2740 = vmatprep.subr.mxu0 %v539
    %2741 = vmatpush1.msra.mxu0 %v538
    %2742 = vmatprep.subr.mxu0 %v535
    %2743 = vmatpush1.msra.mxu0 %v534
    %2744 = vmatprep.subr.mxu0 %v531
    %2745 = vmatpush1.msra.mxu0 %v530
    %2746 = vmatprep.subr.mxu0 %v527
    %2747 = vmatpush1.msra.mxu0 %v526
    %2748 = vmatprep.subr.mxu0 %v523
    %2749 = vmatpush1.msra.mxu0 %v522
    %2750 = vmatprep.subr.mxu0 %v519
    %2751 = vmatpush1.msra.mxu0 %v518
    %2752 = vmatprep.subr.mxu0 %v515
    %2753 = vmatpush1.msra.mxu0 %v514
    %2754 = vmatprep.subr.mxu0 %v511
    %2755 = vmatpush1.msra.mxu0 %v510
    %2756 = vmatprep.subr.mxu0 %v507
    %2757 = vmatpush1.msra.mxu0 %v506
    %2758 = vmatprep.subr.mxu0 %v503
    %2759 = vmatpush1.msra.mxu0 %v502
    %2760 = vmatprep.subr.mxu0 %v499
    %2761 = vmatpush1.msra.mxu0 %v498
    %2762 = vmatprep.subr.mxu0 %v495
    %2763 = vmatpush1.msra.mxu0 %v494
    %2764 = vmatprep.subr.mxu0 %v491
    %2765 = vmatpush1.msra.mxu0 %v490
    %2766 = vmatprep.subr.mxu0 %v487
    %2767 = vmatpush1.msra.mxu0 %v486
    %2768 = vmatprep.subr.mxu0 0.0
    %2769 = vmatpush2.msra.mxu0 0.0
    %2770 = vmatprep.subr.mxu0 0.0
    %2771 = vmatpush2.msra.mxu0 0.0
    %2772 = vmatprep.subr.mxu0 0.0
    %2773 = vmatpush2.msra.mxu0 0.0
    %2774 = vmatprep.subr.mxu0 0.0
    %2775 = vmatpush2.msra.mxu0 0.0
    %2776 = vmatprep.subr.mxu0 0.0
    %2777 = vmatpush2.msra.mxu0 0.0
    %2778 = vmatprep.subr.mxu0 0.0
    %2779 = vmatpush2.msra.mxu0 0.0
    %2780 = vmatprep.subr.mxu0 0.0
    %2781 = vmatpush2.msra.mxu0 0.0
    %2782 = vmatprep.subr.mxu0 0.0
    %2783 = vmatpush2.msra.mxu0 0.0
    %2784 = vmatprep.subr.mxu0 0.0
    %2785 = vmatpush2.msra.mxu0 0.0
    %2786 = vmatprep.subr.mxu0 0.0
    %2787 = vmatpush2.msra.mxu0 0.0
    %2788 = vmatprep.subr.mxu0 0.0
    %2789 = vmatpush2.msra.mxu0 0.0
    %2790 = vmatprep.subr.mxu0 0.0
    %2791 = vmatpush2.msra.mxu0 0.0
    %2792 = vmatprep.subr.mxu0 0.0
    %2793 = vmatpush2.msra.mxu0 0.0
    %2794 = vmatprep.subr.mxu0 0.0
    %2795 = vmatpush2.msra.mxu0 0.0
    %2796 = vmatprep.subr.mxu0 0.0
    %2797 = vmatpush2.msra.mxu0 0.0
    %2798 = vmatprep.subr.mxu0 0.0
    %2799 = vmatpush2.msra.mxu0 0.0
    %2800 = vmatprep.mubr.f32.mxu0 0.0
    %2801 = vmatmul.mubr.f32.gmra.mxu0 %v2605
    %v2802 = vpop.f32.mrf.mxu0
    %v2803 = vadd.f32 0.0, %v2802
    %v2804 = vpop.f32.mrf.mxu0
    %v2805 = vadd.f32 0.0, %v2804
    %2806 = vdwg.mxu0
    %v2807 = vadd.f32 %v2661, %v2732
    %v2808 = vadd.f32 %v2662, %v2734
    %v2809 = vadd.f32 %v2663, %v2803
    %v2810 = vadd.f32 %v2664, %v2805
    %v2811 = vsub.f32 0.0, %v2807
    %v2812 = vsub.f32 0.0, %v2808
    %v2813 = vsub.f32 0.0, %v2809
    %v2814 = vmul.f32 %v2811, 1.442695
    %v2815 = vpow.pop %v2814
    %v2816 = vmul.f32 %v2812, 1.442695
    %v2817 = vpow.pop %v2816
    %v2818 = vmul.f32 %v2813, 1.442695
    %v2819 = vpow.pop %v2818
    %v2820 = vadd.f32 %v2815, 1.0
    %v2821 = vadd.f32 %v2817, 1.0
    %v2822 = vadd.f32 %v2819, 1.0
    %v2823 = vrcp.pop %v2820
    %v2824 = vmul.f32 1.0, %v2823
    %v2825 = vrcp.pop %v2821
    %v2826 = vmul.f32 1.0, %v2825
    %v2827 = vrcp.pop %v2822
    %v2828 = vmul.f32 1.0, %v2827
    %v2829 = vtanh.pop %v2810
    %v2830 = vmul.f32 %v2826, %v2603
    %v2831 = vmul.f32 %v2824, %v2829
    %v2832 = vadd.f32 %v2830, %v2831
    %v2833 = vtanh.pop %v2832
    %v2834 = vmul.f32 %v2828, %v2833
    %2835 = vst [vmem:[#allocation3 + $0x48] sm:$0xff] %v2834
    %v2836 = vld [vmem:[#allocation2 + $0x140] sm:$0xff]
    %v2837 = vld [vmem:[#allocation2 + $0x148] sm:$0xff]
    %v2838 = vld [vmem:[#allocation2 + $0x150] sm:$0xff]
    %v2839 = vld [vmem:[#allocation2 + $0x158] sm:$0xff]
    %s2840 = scalar_lea.vmem %s1, 40
    %v2841 = vld [vmem:[%s2840] sm:$0xf]
    %v2843 = vlaneseq
    %v2844 = vshrl.u32 %v2843, 7
    %v2845 = vsub.s32 0, %v2844
    %v2846 = vrot.slane %v2841, %v2845
    %v2847 = vlaneseq
    %v2848 = vshrl.u32 %v2847, 7
    %v2849 = vsub.s32 1, %v2848
    %v2850 = vrot.slane %v2841, %v2849
    %v2851 = vlaneseq
    %v2852 = vshrl.u32 %v2851, 7
    %v2853 = vsub.s32 2, %v2852
    %v2854 = vrot.slane %v2841, %v2853
    %v2855 = vlaneseq
    %v2856 = vshrl.u32 %v2855, 7
    %v2857 = vsub.s32 3, %v2856
    %v2858 = vrot.slane %v2841, %v2857
    %v2863 = vmul.f32 %v2836, %v2846
    %v2864 = vmul.f32 %v2837, %v2850
    %v2865 = vmul.f32 %v2838, %v2854
    %v2866 = vmul.f32 %v2839, %v2858
    %s2867 = scalar_lea.vmem %s4, 40
    %v2868 = vld [vmem:[%s2867] sm:$0xf]
    %v2870 = vlaneseq
    %v2871 = vshrl.u32 %v2870, 7
    %v2872 = vsub.s32 0, %v2871
    %v2873 = vrot.slane %v2868, %v2872
    %v2874 = vlaneseq
    %v2875 = vshrl.u32 %v2874, 7
    %v2876 = vsub.s32 1, %v2875
    %v2877 = vrot.slane %v2868, %v2876
    %v2878 = vlaneseq
    %v2879 = vshrl.u32 %v2878, 7
    %v2880 = vsub.s32 2, %v2879
    %v2881 = vrot.slane %v2868, %v2880
    %v2882 = vlaneseq
    %v2883 = vshrl.u32 %v2882, 7
    %v2884 = vsub.s32 3, %v2883
    %v2885 = vrot.slane %v2868, %v2884
    %v2890 = vadd.f32 %v2863, %v2873
    %v2891 = vadd.f32 %v2864, %v2877
    %v2892 = vadd.f32 %v2865, %v2881
    %v2893 = vadd.f32 %v2866, %v2885
    %2894 = vmatprep.subr.mxu0 %v545
    %2895 = vmatpush1.msra.mxu0 %v544
    %2896 = vmatprep.subr.mxu0 %v541
    %2897 = vmatpush1.msra.mxu0 %v540
    %2898 = vmatprep.subr.mxu0 %v537
    %2899 = vmatpush1.msra.mxu0 %v536
    %2900 = vmatprep.subr.mxu0 %v533
    %2901 = vmatpush1.msra.mxu0 %v532
    %2902 = vmatprep.subr.mxu0 %v529
    %2903 = vmatpush1.msra.mxu0 %v528
    %2904 = vmatprep.subr.mxu0 %v525
    %2905 = vmatpush1.msra.mxu0 %v524
    %2906 = vmatprep.subr.mxu0 %v521
    %2907 = vmatpush1.msra.mxu0 %v520
    %2908 = vmatprep.subr.mxu0 %v517
    %2909 = vmatpush1.msra.mxu0 %v516
    %2910 = vmatprep.subr.mxu0 %v513
    %2911 = vmatpush1.msra.mxu0 %v512
    %2912 = vmatprep.subr.mxu0 %v509
    %2913 = vmatpush1.msra.mxu0 %v508
    %2914 = vmatprep.subr.mxu0 %v505
    %2915 = vmatpush1.msra.mxu0 %v504
    %2916 = vmatprep.subr.mxu0 %v501
    %2917 = vmatpush1.msra.mxu0 %v500
    %2918 = vmatprep.subr.mxu0 %v497
    %2919 = vmatpush1.msra.mxu0 %v496
    %2920 = vmatprep.subr.mxu0 %v493
    %2921 = vmatpush1.msra.mxu0 %v492
    %2922 = vmatprep.subr.mxu0 %v489
    %2923 = vmatpush1.msra.mxu0 %v488
    %2924 = vmatprep.subr.mxu0 %v485
    %2925 = vmatpush1.msra.mxu0 %v484
    %2926 = vmatprep.subr.mxu0 0.0
    %2927 = vmatpush2.msra.mxu0 0.0
    %2928 = vmatprep.subr.mxu0 0.0
    %2929 = vmatpush2.msra.mxu0 0.0
    %2930 = vmatprep.subr.mxu0 0.0
    %2931 = vmatpush2.msra.mxu0 0.0
    %2932 = vmatprep.subr.mxu0 0.0
    %2933 = vmatpush2.msra.mxu0 0.0
    %2934 = vmatprep.subr.mxu0 0.0
    %2935 = vmatpush2.msra.mxu0 0.0
    %2936 = vmatprep.subr.mxu0 0.0
    %2937 = vmatpush2.msra.mxu0 0.0
    %2938 = vmatprep.subr.mxu0 0.0
    %2939 = vmatpush2.msra.mxu0 0.0
    %2940 = vmatprep.subr.mxu0 0.0
    %2941 = vmatpush2.msra.mxu0 0.0
    %2942 = vmatprep.subr.mxu0 0.0
    %2943 = vmatpush2.msra.mxu0 0.0
    %2944 = vmatprep.subr.mxu0 0.0
    %2945 = vmatpush2.msra.mxu0 0.0
    %2946 = vmatprep.subr.mxu0 0.0
    %2947 = vmatpush2.msra.mxu0 0.0
    %2948 = vmatprep.subr.mxu0 0.0
    %2949 = vmatpush2.msra.mxu0 0.0
    %2950 = vmatprep.subr.mxu0 0.0
    %2951 = vmatpush2.msra.mxu0 0.0
    %2952 = vmatprep.subr.mxu0 0.0
    %2953 = vmatpush2.msra.mxu0 0.0
    %2954 = vmatprep.subr.mxu0 0.0
    %2955 = vmatpush2.msra.mxu0 0.0
    %2956 = vmatprep.subr.mxu0 0.0
    %2957 = vmatpush2.msra.mxu0 0.0
    %2958 = vmatprep.mubr.f32.mxu0 0.0
    %2959 = vmatmul.mubr.f32.gmra.mxu0 %v2834
    %v2960 = vpop.f32.mrf.mxu0
    %v2961 = vadd.f32 0.0, %v2960
    %v2962 = vpop.f32.mrf.mxu0
    %v2963 = vadd.f32 0.0, %v2962
    %2964 = vdwg.mxu0
    %2965 = vmatprep.subr.mxu0 %v547
    %2966 = vmatpush1.msra.mxu0 %v546
    %2967 = vmatprep.subr.mxu0 %v543
    %2968 = vmatpush1.msra.mxu0 %v542
    %2969 = vmatprep.subr.mxu0 %v539
    %2970 = vmatpush1.msra.mxu0 %v538
    %2971 = vmatprep.subr.mxu0 %v535
    %2972 = vmatpush1.msra.mxu0 %v534
    %2973 = vmatprep.subr.mxu0 %v531
    %2974 = vmatpush1.msra.mxu0 %v530
    %2975 = vmatprep.subr.mxu0 %v527
    %2976 = vmatpush1.msra.mxu0 %v526
    %2977 = vmatprep.subr.mxu0 %v523
    %2978 = vmatpush1.msra.mxu0 %v522
    %2979 = vmatprep.subr.mxu0 %v519
    %2980 = vmatpush1.msra.mxu0 %v518
    %2981 = vmatprep.subr.mxu0 %v515
    %2982 = vmatpush1.msra.mxu0 %v514
    %2983 = vmatprep.subr.mxu0 %v511
    %2984 = vmatpush1.msra.mxu0 %v510
    %2985 = vmatprep.subr.mxu0 %v507
    %2986 = vmatpush1.msra.mxu0 %v506
    %2987 = vmatprep.subr.mxu0 %v503
    %2988 = vmatpush1.msra.mxu0 %v502
    %2989 = vmatprep.subr.mxu0 %v499
    %2990 = vmatpush1.msra.mxu0 %v498
    %2991 = vmatprep.subr.mxu0 %v495
    %2992 = vmatpush1.msra.mxu0 %v494
    %2993 = vmatprep.subr.mxu0 %v491
    %2994 = vmatpush1.msra.mxu0 %v490
    %2995 = vmatprep.subr.mxu0 %v487
    %2996 = vmatpush1.msra.mxu0 %v486
    %2997 = vmatprep.subr.mxu0 0.0
    %2998 = vmatpush2.msra.mxu0 0.0
    %2999 = vmatprep.subr.mxu0 0.0
    %3000 = vmatpush2.msra.mxu0 0.0
    %3001 = vmatprep.subr.mxu0 0.0
    %3002 = vmatpush2.msra.mxu0 0.0
    %3003 = vmatprep.subr.mxu0 0.0
    %3004 = vmatpush2.msra.mxu0 0.0
    %3005 = vmatprep.subr.mxu0 0.0
    %3006 = vmatpush2.msra.mxu0 0.0
    %3007 = vmatprep.subr.mxu0 0.0
    %3008 = vmatpush2.msra.mxu0 0.0
    %3009 = vmatprep.subr.mxu0 0.0
    %3010 = vmatpush2.msra.mxu0 0.0
    %3011 = vmatprep.subr.mxu0 0.0
    %3012 = vmatpush2.msra.mxu0 0.0
    %3013 = vmatprep.subr.mxu0 0.0
    %3014 = vmatpush2.msra.mxu0 0.0
    %3015 = vmatprep.subr.mxu0 0.0
    %3016 = vmatpush2.msra.mxu0 0.0
    %3017 = vmatprep.subr.mxu0 0.0
    %3018 = vmatpush2.msra.mxu0 0.0
    %3019 = vmatprep.subr.mxu0 0.0
    %3020 = vmatpush2.msra.mxu0 0.0
    %3021 = vmatprep.subr.mxu0 0.0
    %3022 = vmatpush2.msra.mxu0 0.0
    %3023 = vmatprep.subr.mxu0 0.0
    %3024 = vmatpush2.msra.mxu0 0.0
    %3025 = vmatprep.subr.mxu0 0.0
    %3026 = vmatpush2.msra.mxu0 0.0
    %3027 = vmatprep.subr.mxu0 0.0
    %3028 = vmatpush2.msra.mxu0 0.0
    %3029 = vmatprep.mubr.f32.mxu0 0.0
    %3030 = vmatmul.mubr.f32.gmra.mxu0 %v2834
    %v3031 = vpop.f32.mrf.mxu0
    %v3032 = vadd.f32 0.0, %v3031
    %v3033 = vpop.f32.mrf.mxu0
    %v3034 = vadd.f32 0.0, %v3033
    %3035 = vdwg.mxu0
    %v3036 = vadd.f32 %v2890, %v2961
    %v3037 = vadd.f32 %v2891, %v2963
    %v3038 = vadd.f32 %v2892, %v3032
    %v3039 = vadd.f32 %v2893, %v3034
    %v3040 = vsub.f32 0.0, %v3036
    %v3041 = vsub.f32 0.0, %v3037
    %v3042 = vsub.f32 0.0, %v3038
    %v3043 = vmul.f32 %v3040, 1.442695
    %v3044 = vpow.pop %v3043
    %v3045 = vmul.f32 %v3041, 1.442695
    %v3046 = vpow.pop %v3045
    %v3047 = vmul.f32 %v3042, 1.442695
    %v3048 = vpow.pop %v3047
    %v3049 = vadd.f32 %v3044, 1.0
    %v3050 = vadd.f32 %v3046, 1.0
    %v3051 = vadd.f32 %v3048, 1.0
    %v3052 = vrcp.pop %v3049
    %v3053 = vmul.f32 1.0, %v3052
    %v3054 = vrcp.pop %v3050
    %v3055 = vmul.f32 1.0, %v3054
    %v3056 = vrcp.pop %v3051
    %v3057 = vmul.f32 1.0, %v3056
    %v3058 = vtanh.pop %v3039
    %v3059 = vmul.f32 %v3055, %v2832
    %v3060 = vmul.f32 %v3053, %v3058
    %v3061 = vadd.f32 %v3059, %v3060
    %v3062 = vtanh.pop %v3061
    %v3063 = vmul.f32 %v3057, %v3062
    %3064 = vst [vmem:[#allocation3 + $0x50] sm:$0xff] %v3063
    %v3065 = vld [vmem:[#allocation2 + $0x160] sm:$0xff]
    %v3066 = vld [vmem:[#allocation2 + $0x168] sm:$0xff]
    %v3067 = vld [vmem:[#allocation2 + $0x170] sm:$0xff]
    %v3068 = vld [vmem:[#allocation2 + $0x178] sm:$0xff]
    %s3069 = scalar_lea.vmem %s1, 44
    %v3070 = vld [vmem:[%s3069] sm:$0xf]
    %v3072 = vlaneseq
    %v3073 = vshrl.u32 %v3072, 7
    %v3074 = vsub.s32 0, %v3073
    %v3075 = vrot.slane %v3070, %v3074
    %v3076 = vlaneseq
    %v3077 = vshrl.u32 %v3076, 7
    %v3078 = vsub.s32 1, %v3077
    %v3079 = vrot.slane %v3070, %v3078
    %v3080 = vlaneseq
    %v3081 = vshrl.u32 %v3080, 7
    %v3082 = vsub.s32 2, %v3081
    %v3083 = vrot.slane %v3070, %v3082
    %v3084 = vlaneseq
    %v3085 = vshrl.u32 %v3084, 7
    %v3086 = vsub.s32 3, %v3085
    %v3087 = vrot.slane %v3070, %v3086
    %v3092 = vmul.f32 %v3065, %v3075
    %v3093 = vmul.f32 %v3066, %v3079
    %v3094 = vmul.f32 %v3067, %v3083
    %v3095 = vmul.f32 %v3068, %v3087
    %s3096 = scalar_lea.vmem %s4, 44
    %v3097 = vld [vmem:[%s3096] sm:$0xf]
    %v3099 = vlaneseq
    %v3100 = vshrl.u32 %v3099, 7
    %v3101 = vsub.s32 0, %v3100
    %v3102 = vrot.slane %v3097, %v3101
    %v3103 = vlaneseq
    %v3104 = vshrl.u32 %v3103, 7
    %v3105 = vsub.s32 1, %v3104
    %v3106 = vrot.slane %v3097, %v3105
    %v3107 = vlaneseq
    %v3108 = vshrl.u32 %v3107, 7
    %v3109 = vsub.s32 2, %v3108
    %v3110 = vrot.slane %v3097, %v3109
    %v3111 = vlaneseq
    %v3112 = vshrl.u32 %v3111, 7
    %v3113 = vsub.s32 3, %v3112
    %v3114 = vrot.slane %v3097, %v3113
    %v3119 = vadd.f32 %v3092, %v3102
    %v3120 = vadd.f32 %v3093, %v3106
    %v3121 = vadd.f32 %v3094, %v3110
    %v3122 = vadd.f32 %v3095, %v3114
    %3123 = vmatprep.subr.mxu0 %v545
    %3124 = vmatpush1.msra.mxu0 %v544
    %3125 = vmatprep.subr.mxu0 %v541
    %3126 = vmatpush1.msra.mxu0 %v540
    %3127 = vmatprep.subr.mxu0 %v537
    %3128 = vmatpush1.msra.mxu0 %v536
    %3129 = vmatprep.subr.mxu0 %v533
    %3130 = vmatpush1.msra.mxu0 %v532
    %3131 = vmatprep.subr.mxu0 %v529
    %3132 = vmatpush1.msra.mxu0 %v528
    %3133 = vmatprep.subr.mxu0 %v525
    %3134 = vmatpush1.msra.mxu0 %v524
    %3135 = vmatprep.subr.mxu0 %v521
    %3136 = vmatpush1.msra.mxu0 %v520
    %3137 = vmatprep.subr.mxu0 %v517
    %3138 = vmatpush1.msra.mxu0 %v516
    %3139 = vmatprep.subr.mxu0 %v513
    %3140 = vmatpush1.msra.mxu0 %v512
    %3141 = vmatprep.subr.mxu0 %v509
    %3142 = vmatpush1.msra.mxu0 %v508
    %3143 = vmatprep.subr.mxu0 %v505
    %3144 = vmatpush1.msra.mxu0 %v504
    %3145 = vmatprep.subr.mxu0 %v501
    %3146 = vmatpush1.msra.mxu0 %v500
    %3147 = vmatprep.subr.mxu0 %v497
    %3148 = vmatpush1.msra.mxu0 %v496
    %3149 = vmatprep.subr.mxu0 %v493
    %3150 = vmatpush1.msra.mxu0 %v492
    %3151 = vmatprep.subr.mxu0 %v489
    %3152 = vmatpush1.msra.mxu0 %v488
    %3153 = vmatprep.subr.mxu0 %v485
    %3154 = vmatpush1.msra.mxu0 %v484
    %3155 = vmatprep.subr.mxu0 0.0
    %3156 = vmatpush2.msra.mxu0 0.0
    %3157 = vmatprep.subr.mxu0 0.0
    %3158 = vmatpush2.msra.mxu0 0.0
    %3159 = vmatprep.subr.mxu0 0.0
    %3160 = vmatpush2.msra.mxu0 0.0
    %3161 = vmatprep.subr.mxu0 0.0
    %3162 = vmatpush2.msra.mxu0 0.0
    %3163 = vmatprep.subr.mxu0 0.0
    %3164 = vmatpush2.msra.mxu0 0.0
    %3165 = vmatprep.subr.mxu0 0.0
    %3166 = vmatpush2.msra.mxu0 0.0
    %3167 = vmatprep.subr.mxu0 0.0
    %3168 = vmatpush2.msra.mxu0 0.0
    %3169 = vmatprep.subr.mxu0 0.0
    %3170 = vmatpush2.msra.mxu0 0.0
    %3171 = vmatprep.subr.mxu0 0.0
    %3172 = vmatpush2.msra.mxu0 0.0
    %3173 = vmatprep.subr.mxu0 0.0
    %3174 = vmatpush2.msra.mxu0 0.0
    %3175 = vmatprep.subr.mxu0 0.0
    %3176 = vmatpush2.msra.mxu0 0.0
    %3177 = vmatprep.subr.mxu0 0.0
    %3178 = vmatpush2.msra.mxu0 0.0
    %3179 = vmatprep.subr.mxu0 0.0
    %3180 = vmatpush2.msra.mxu0 0.0
    %3181 = vmatprep.subr.mxu0 0.0
    %3182 = vmatpush2.msra.mxu0 0.0
    %3183 = vmatprep.subr.mxu0 0.0
    %3184 = vmatpush2.msra.mxu0 0.0
    %3185 = vmatprep.subr.mxu0 0.0
    %3186 = vmatpush2.msra.mxu0 0.0
    %3187 = vmatprep.mubr.f32.mxu0 0.0
    %3188 = vmatmul.mubr.f32.gmra.mxu0 %v3063
    %v3189 = vpop.f32.mrf.mxu0
    %v3190 = vadd.f32 0.0, %v3189
    %v3191 = vpop.f32.mrf.mxu0
    %v3192 = vadd.f32 0.0, %v3191
    %3193 = vdwg.mxu0
    %3194 = vmatprep.subr.mxu0 %v547
    %3195 = vmatpush1.msra.mxu0 %v546
    %3196 = vmatprep.subr.mxu0 %v543
    %3197 = vmatpush1.msra.mxu0 %v542
    %3198 = vmatprep.subr.mxu0 %v539
    %3199 = vmatpush1.msra.mxu0 %v538
    %3200 = vmatprep.subr.mxu0 %v535
    %3201 = vmatpush1.msra.mxu0 %v534
    %3202 = vmatprep.subr.mxu0 %v531
    %3203 = vmatpush1.msra.mxu0 %v530
    %3204 = vmatprep.subr.mxu0 %v527
    %3205 = vmatpush1.msra.mxu0 %v526
    %3206 = vmatprep.subr.mxu0 %v523
    %3207 = vmatpush1.msra.mxu0 %v522
    %3208 = vmatprep.subr.mxu0 %v519
    %3209 = vmatpush1.msra.mxu0 %v518
    %3210 = vmatprep.subr.mxu0 %v515
    %3211 = vmatpush1.msra.mxu0 %v514
    %3212 = vmatprep.subr.mxu0 %v511
    %3213 = vmatpush1.msra.mxu0 %v510
    %3214 = vmatprep.subr.mxu0 %v507
    %3215 = vmatpush1.msra.mxu0 %v506
    %3216 = vmatprep.subr.mxu0 %v503
    %3217 = vmatpush1.msra.mxu0 %v502
    %3218 = vmatprep.subr.mxu0 %v499
    %3219 = vmatpush1.msra.mxu0 %v498
    %3220 = vmatprep.subr.mxu0 %v495
    %3221 = vmatpush1.msra.mxu0 %v494
    %3222 = vmatprep.subr.mxu0 %v491
    %3223 = vmatpush1.msra.mxu0 %v490
    %3224 = vmatprep.subr.mxu0 %v487
    %3225 = vmatpush1.msra.mxu0 %v486
    %3226 = vmatprep.subr.mxu0 0.0
    %3227 = vmatpush2.msra.mxu0 0.0
    %3228 = vmatprep.subr.mxu0 0.0
    %3229 = vmatpush2.msra.mxu0 0.0
    %3230 = vmatprep.subr.mxu0 0.0
    %3231 = vmatpush2.msra.mxu0 0.0
    %3232 = vmatprep.subr.mxu0 0.0
    %3233 = vmatpush2.msra.mxu0 0.0
    %3234 = vmatprep.subr.mxu0 0.0
    %3235 = vmatpush2.msra.mxu0 0.0
    %3236 = vmatprep.subr.mxu0 0.0
    %3237 = vmatpush2.msra.mxu0 0.0
    %3238 = vmatprep.subr.mxu0 0.0
    %3239 = vmatpush2.msra.mxu0 0.0
    %3240 = vmatprep.subr.mxu0 0.0
    %3241 = vmatpush2.msra.mxu0 0.0
    %3242 = vmatprep.subr.mxu0 0.0
    %3243 = vmatpush2.msra.mxu0 0.0
    %3244 = vmatprep.subr.mxu0 0.0
    %3245 = vmatpush2.msra.mxu0 0.0
    %3246 = vmatprep.subr.mxu0 0.0
    %3247 = vmatpush2.msra.mxu0 0.0
    %3248 = vmatprep.subr.mxu0 0.0
    %3249 = vmatpush2.msra.mxu0 0.0
    %3250 = vmatprep.subr.mxu0 0.0
    %3251 = vmatpush2.msra.mxu0 0.0
    %3252 = vmatprep.subr.mxu0 0.0
    %3253 = vmatpush2.msra.mxu0 0.0
    %3254 = vmatprep.subr.mxu0 0.0
    %3255 = vmatpush2.msra.mxu0 0.0
    %3256 = vmatprep.subr.mxu0 0.0
    %3257 = vmatpush2.msra.mxu0 0.0
    %3258 = vmatprep.mubr.f32.mxu0 0.0
    %3259 = vmatmul.mubr.f32.gmra.mxu0 %v3063
    %v3260 = vpop.f32.mrf.mxu0
    %v3261 = vadd.f32 0.0, %v3260
    %v3262 = vpop.f32.mrf.mxu0
    %v3263 = vadd.f32 0.0, %v3262
    %3264 = vdwg.mxu0
    %v3265 = vadd.f32 %v3119, %v3190
    %v3266 = vadd.f32 %v3120, %v3192
    %v3267 = vadd.f32 %v3121, %v3261
    %v3268 = vadd.f32 %v3122, %v3263
    %v3269 = vsub.f32 0.0, %v3265
    %v3270 = vsub.f32 0.0, %v3266
    %v3271 = vsub.f32 0.0, %v3267
    %v3272 = vmul.f32 %v3269, 1.442695
    %v3273 = vpow.pop %v3272
    %v3274 = vmul.f32 %v3270, 1.442695
    %v3275 = vpow.pop %v3274
    %v3276 = vmul.f32 %v3271, 1.442695
    %v3277 = vpow.pop %v3276
    %v3278 = vadd.f32 %v3273, 1.0
    %v3279 = vadd.f32 %v3275, 1.0
    %v3280 = vadd.f32 %v3277, 1.0
    %v3281 = vrcp.pop %v3278
    %v3282 = vmul.f32 1.0, %v3281
    %v3283 = vrcp.pop %v3279
    %v3284 = vmul.f32 1.0, %v3283
    %v3285 = vrcp.pop %v3280
    %v3286 = vmul.f32 1.0, %v3285
    %v3287 = vtanh.pop %v3268
    %v3288 = vmul.f32 %v3284, %v3061
    %v3289 = vmul.f32 %v3282, %v3287
    %v3290 = vadd.f32 %v3288, %v3289
    %v3291 = vtanh.pop %v3290
    %v3292 = vmul.f32 %v3286, %v3291
    %3293 = vst [vmem:[#allocation3 + $0x58] sm:$0xff] %v3292
    %v3294 = vld [vmem:[#allocation2 + $0x180] sm:$0xff]
    %v3295 = vld [vmem:[#allocation2 + $0x188] sm:$0xff]
    %v3296 = vld [vmem:[#allocation2 + $0x190] sm:$0xff]
    %v3297 = vld [vmem:[#allocation2 + $0x198] sm:$0xff]
    %s3298 = scalar_lea.vmem %s1, 48
    %v3299 = vld [vmem:[%s3298] sm:$0xf]
    %v3301 = vlaneseq
    %v3302 = vshrl.u32 %v3301, 7
    %v3303 = vsub.s32 0, %v3302
    %v3304 = vrot.slane %v3299, %v3303
    %v3305 = vlaneseq
    %v3306 = vshrl.u32 %v3305, 7
    %v3307 = vsub.s32 1, %v3306
    %v3308 = vrot.slane %v3299, %v3307
    %v3309 = vlaneseq
    %v3310 = vshrl.u32 %v3309, 7
    %v3311 = vsub.s32 2, %v3310
    %v3312 = vrot.slane %v3299, %v3311
    %v3313 = vlaneseq
    %v3314 = vshrl.u32 %v3313, 7
    %v3315 = vsub.s32 3, %v3314
    %v3316 = vrot.slane %v3299, %v3315
    %v3321 = vmul.f32 %v3294, %v3304
    %v3322 = vmul.f32 %v3295, %v3308
    %v3323 = vmul.f32 %v3296, %v3312
    %v3324 = vmul.f32 %v3297, %v3316
    %s3325 = scalar_lea.vmem %s4, 48
    %v3326 = vld [vmem:[%s3325] sm:$0xf]
    %v3328 = vlaneseq
    %v3329 = vshrl.u32 %v3328, 7
    %v3330 = vsub.s32 0, %v3329
    %v3331 = vrot.slane %v3326, %v3330
    %v3332 = vlaneseq
    %v3333 = vshrl.u32 %v3332, 7
    %v3334 = vsub.s32 1, %v3333
    %v3335 = vrot.slane %v3326, %v3334
    %v3336 = vlaneseq
    %v3337 = vshrl.u32 %v3336, 7
    %v3338 = vsub.s32 2, %v3337
    %v3339 = vrot.slane %v3326, %v3338
    %v3340 = vlaneseq
    %v3341 = vshrl.u32 %v3340, 7
    %v3342 = vsub.s32 3, %v3341
    %v3343 = vrot.slane %v3326, %v3342
    %v3348 = vadd.f32 %v3321, %v3331
    %v3349 = vadd.f32 %v3322, %v3335
    %v3350 = vadd.f32 %v3323, %v3339
    %v3351 = vadd.f32 %v3324, %v3343
    %3352 = vmatprep.subr.mxu0 %v545
    %3353 = vmatpush1.msra.mxu0 %v544
    %3354 = vmatprep.subr.mxu0 %v541
    %3355 = vmatpush1.msra.mxu0 %v540
    %3356 = vmatprep.subr.mxu0 %v537
    %3357 = vmatpush1.msra.mxu0 %v536
    %3358 = vmatprep.subr.mxu0 %v533
    %3359 = vmatpush1.msra.mxu0 %v532
    %3360 = vmatprep.subr.mxu0 %v529
    %3361 = vmatpush1.msra.mxu0 %v528
    %3362 = vmatprep.subr.mxu0 %v525
    %3363 = vmatpush1.msra.mxu0 %v524
    %3364 = vmatprep.subr.mxu0 %v521
    %3365 = vmatpush1.msra.mxu0 %v520
    %3366 = vmatprep.subr.mxu0 %v517
    %3367 = vmatpush1.msra.mxu0 %v516
    %3368 = vmatprep.subr.mxu0 %v513
    %3369 = vmatpush1.msra.mxu0 %v512
    %3370 = vmatprep.subr.mxu0 %v509
    %3371 = vmatpush1.msra.mxu0 %v508
    %3372 = vmatprep.subr.mxu0 %v505
    %3373 = vmatpush1.msra.mxu0 %v504
    %3374 = vmatprep.subr.mxu0 %v501
    %3375 = vmatpush1.msra.mxu0 %v500
    %3376 = vmatprep.subr.mxu0 %v497
    %3377 = vmatpush1.msra.mxu0 %v496
    %3378 = vmatprep.subr.mxu0 %v493
    %3379 = vmatpush1.msra.mxu0 %v492
    %3380 = vmatprep.subr.mxu0 %v489
    %3381 = vmatpush1.msra.mxu0 %v488
    %3382 = vmatprep.subr.mxu0 %v485
    %3383 = vmatpush1.msra.mxu0 %v484
    %3384 = vmatprep.subr.mxu0 0.0
    %3385 = vmatpush2.msra.mxu0 0.0
    %3386 = vmatprep.subr.mxu0 0.0
    %3387 = vmatpush2.msra.mxu0 0.0
    %3388 = vmatprep.subr.mxu0 0.0
    %3389 = vmatpush2.msra.mxu0 0.0
    %3390 = vmatprep.subr.mxu0 0.0
    %3391 = vmatpush2.msra.mxu0 0.0
    %3392 = vmatprep.subr.mxu0 0.0
    %3393 = vmatpush2.msra.mxu0 0.0
    %3394 = vmatprep.subr.mxu0 0.0
    %3395 = vmatpush2.msra.mxu0 0.0
    %3396 = vmatprep.subr.mxu0 0.0
    %3397 = vmatpush2.msra.mxu0 0.0
    %3398 = vmatprep.subr.mxu0 0.0
    %3399 = vmatpush2.msra.mxu0 0.0
    %3400 = vmatprep.subr.mxu0 0.0
    %3401 = vmatpush2.msra.mxu0 0.0
    %3402 = vmatprep.subr.mxu0 0.0
    %3403 = vmatpush2.msra.mxu0 0.0
    %3404 = vmatprep.subr.mxu0 0.0
    %3405 = vmatpush2.msra.mxu0 0.0
    %3406 = vmatprep.subr.mxu0 0.0
    %3407 = vmatpush2.msra.mxu0 0.0
    %3408 = vmatprep.subr.mxu0 0.0
    %3409 = vmatpush2.msra.mxu0 0.0
    %3410 = vmatprep.subr.mxu0 0.0
    %3411 = vmatpush2.msra.mxu0 0.0
    %3412 = vmatprep.subr.mxu0 0.0
    %3413 = vmatpush2.msra.mxu0 0.0
    %3414 = vmatprep.subr.mxu0 0.0
    %3415 = vmatpush2.msra.mxu0 0.0
    %3416 = vmatprep.mubr.f32.mxu0 0.0
    %3417 = vmatmul.mubr.f32.gmra.mxu0 %v3292
    %v3418 = vpop.f32.mrf.mxu0
    %v3419 = vadd.f32 0.0, %v3418
    %v3420 = vpop.f32.mrf.mxu0
    %v3421 = vadd.f32 0.0, %v3420
    %3422 = vdwg.mxu0
    %3423 = vmatprep.subr.mxu0 %v547
    %3424 = vmatpush1.msra.mxu0 %v546
    %3425 = vmatprep.subr.mxu0 %v543
    %3426 = vmatpush1.msra.mxu0 %v542
    %3427 = vmatprep.subr.mxu0 %v539
    %3428 = vmatpush1.msra.mxu0 %v538
    %3429 = vmatprep.subr.mxu0 %v535
    %3430 = vmatpush1.msra.mxu0 %v534
    %3431 = vmatprep.subr.mxu0 %v531
    %3432 = vmatpush1.msra.mxu0 %v530
    %3433 = vmatprep.subr.mxu0 %v527
    %3434 = vmatpush1.msra.mxu0 %v526
    %3435 = vmatprep.subr.mxu0 %v523
    %3436 = vmatpush1.msra.mxu0 %v522
    %3437 = vmatprep.subr.mxu0 %v519
    %3438 = vmatpush1.msra.mxu0 %v518
    %3439 = vmatprep.subr.mxu0 %v515
    %3440 = vmatpush1.msra.mxu0 %v514
    %3441 = vmatprep.subr.mxu0 %v511
    %3442 = vmatpush1.msra.mxu0 %v510
    %3443 = vmatprep.subr.mxu0 %v507
    %3444 = vmatpush1.msra.mxu0 %v506
    %3445 = vmatprep.subr.mxu0 %v503
    %3446 = vmatpush1.msra.mxu0 %v502
    %3447 = vmatprep.subr.mxu0 %v499
    %3448 = vmatpush1.msra.mxu0 %v498
    %3449 = vmatprep.subr.mxu0 %v495
    %3450 = vmatpush1.msra.mxu0 %v494
    %3451 = vmatprep.subr.mxu0 %v491
    %3452 = vmatpush1.msra.mxu0 %v490
    %3453 = vmatprep.subr.mxu0 %v487
    %3454 = vmatpush1.msra.mxu0 %v486
    %3455 = vmatprep.subr.mxu0 0.0
    %3456 = vmatpush2.msra.mxu0 0.0
    %3457 = vmatprep.subr.mxu0 0.0
    %3458 = vmatpush2.msra.mxu0 0.0
    %3459 = vmatprep.subr.mxu0 0.0
    %3460 = vmatpush2.msra.mxu0 0.0
    %3461 = vmatprep.subr.mxu0 0.0
    %3462 = vmatpush2.msra.mxu0 0.0
    %3463 = vmatprep.subr.mxu0 0.0
    %3464 = vmatpush2.msra.mxu0 0.0
    %3465 = vmatprep.subr.mxu0 0.0
    %3466 = vmatpush2.msra.mxu0 0.0
    %3467 = vmatprep.subr.mxu0 0.0
    %3468 = vmatpush2.msra.mxu0 0.0
    %3469 = vmatprep.subr.mxu0 0.0
    %3470 = vmatpush2.msra.mxu0 0.0
    %3471 = vmatprep.subr.mxu0 0.0
    %3472 = vmatpush2.msra.mxu0 0.0
    %3473 = vmatprep.subr.mxu0 0.0
    %3474 = vmatpush2.msra.mxu0 0.0
    %3475 = vmatprep.subr.mxu0 0.0
    %3476 = vmatpush2.msra.mxu0 0.0
    %3477 = vmatprep.subr.mxu0 0.0
    %3478 = vmatpush2.msra.mxu0 0.0
    %3479 = vmatprep.subr.mxu0 0.0
    %3480 = vmatpush2.msra.mxu0 0.0
    %3481 = vmatprep.subr.mxu0 0.0
    %3482 = vmatpush2.msra.mxu0 0.0
    %3483 = vmatprep.subr.mxu0 0.0
    %3484 = vmatpush2.msra.mxu0 0.0
    %3485 = vmatprep.subr.mxu0 0.0
    %3486 = vmatpush2.msra.mxu0 0.0
    %3487 = vmatprep.mubr.f32.mxu0 0.0
    %3488 = vmatmul.mubr.f32.gmra.mxu0 %v3292
    %v3489 = vpop.f32.mrf.mxu0
    %v3490 = vadd.f32 0.0, %v3489
    %v3491 = vpop.f32.mrf.mxu0
    %v3492 = vadd.f32 0.0, %v3491
    %3493 = vdwg.mxu0
    %v3494 = vadd.f32 %v3348, %v3419
    %v3495 = vadd.f32 %v3349, %v3421
    %v3496 = vadd.f32 %v3350, %v3490
    %v3497 = vadd.f32 %v3351, %v3492
    %v3498 = vsub.f32 0.0, %v3494
    %v3499 = vsub.f32 0.0, %v3495
    %v3500 = vsub.f32 0.0, %v3496
    %v3501 = vmul.f32 %v3498, 1.442695
    %v3502 = vpow.pop %v3501
    %v3503 = vmul.f32 %v3499, 1.442695
    %v3504 = vpow.pop %v3503
    %v3505 = vmul.f32 %v3500, 1.442695
    %v3506 = vpow.pop %v3505
    %v3507 = vadd.f32 %v3502, 1.0
    %v3508 = vadd.f32 %v3504, 1.0
    %v3509 = vadd.f32 %v3506, 1.0
    %v3510 = vrcp.pop %v3507
    %v3511 = vmul.f32 1.0, %v3510
    %v3512 = vrcp.pop %v3508
    %v3513 = vmul.f32 1.0, %v3512
    %v3514 = vrcp.pop %v3509
    %v3515 = vmul.f32 1.0, %v3514
    %v3516 = vtanh.pop %v3497
    %v3517 = vmul.f32 %v3513, %v3290
    %v3518 = vmul.f32 %v3511, %v3516
    %v3519 = vadd.f32 %v3517, %v3518
    %v3520 = vtanh.pop %v3519
    %v3521 = vmul.f32 %v3515, %v3520
    %3522 = vst [vmem:[#allocation3 + $0x60] sm:$0xff] %v3521
    %v3523 = vld [vmem:[#allocation2 + $0x1a0] sm:$0xff]
    %v3524 = vld [vmem:[#allocation2 + $0x1a8] sm:$0xff]
    %v3525 = vld [vmem:[#allocation2 + $0x1b0] sm:$0xff]
    %v3526 = vld [vmem:[#allocation2 + $0x1b8] sm:$0xff]
    %s3527 = scalar_lea.vmem %s1, 52
    %v3528 = vld [vmem:[%s3527] sm:$0xf]
    %v3530 = vlaneseq
    %v3531 = vshrl.u32 %v3530, 7
    %v3532 = vsub.s32 0, %v3531
    %v3533 = vrot.slane %v3528, %v3532
    %v3534 = vlaneseq
    %v3535 = vshrl.u32 %v3534, 7
    %v3536 = vsub.s32 1, %v3535
    %v3537 = vrot.slane %v3528, %v3536
    %v3538 = vlaneseq
    %v3539 = vshrl.u32 %v3538, 7
    %v3540 = vsub.s32 2, %v3539
    %v3541 = vrot.slane %v3528, %v3540
    %v3542 = vlaneseq
    %v3543 = vshrl.u32 %v3542, 7
    %v3544 = vsub.s32 3, %v3543
    %v3545 = vrot.slane %v3528, %v3544
    %v3550 = vmul.f32 %v3523, %v3533
    %v3551 = vmul.f32 %v3524, %v3537
    %v3552 = vmul.f32 %v3525, %v3541
    %v3553 = vmul.f32 %v3526, %v3545
    %s3554 = scalar_lea.vmem %s4, 52
    %v3555 = vld [vmem:[%s3554] sm:$0xf]
    %v3557 = vlaneseq
    %v3558 = vshrl.u32 %v3557, 7
    %v3559 = vsub.s32 0, %v3558
    %v3560 = vrot.slane %v3555, %v3559
    %v3561 = vlaneseq
    %v3562 = vshrl.u32 %v3561, 7
    %v3563 = vsub.s32 1, %v3562
    %v3564 = vrot.slane %v3555, %v3563
    %v3565 = vlaneseq
    %v3566 = vshrl.u32 %v3565, 7
    %v3567 = vsub.s32 2, %v3566
    %v3568 = vrot.slane %v3555, %v3567
    %v3569 = vlaneseq
    %v3570 = vshrl.u32 %v3569, 7
    %v3571 = vsub.s32 3, %v3570
    %v3572 = vrot.slane %v3555, %v3571
    %v3577 = vadd.f32 %v3550, %v3560
    %v3578 = vadd.f32 %v3551, %v3564
    %v3579 = vadd.f32 %v3552, %v3568
    %v3580 = vadd.f32 %v3553, %v3572
    %3581 = vmatprep.subr.mxu0 %v545
    %3582 = vmatpush1.msra.mxu0 %v544
    %3583 = vmatprep.subr.mxu0 %v541
    %3584 = vmatpush1.msra.mxu0 %v540
    %3585 = vmatprep.subr.mxu0 %v537
    %3586 = vmatpush1.msra.mxu0 %v536
    %3587 = vmatprep.subr.mxu0 %v533
    %3588 = vmatpush1.msra.mxu0 %v532
    %3589 = vmatprep.subr.mxu0 %v529
    %3590 = vmatpush1.msra.mxu0 %v528
    %3591 = vmatprep.subr.mxu0 %v525
    %3592 = vmatpush1.msra.mxu0 %v524
    %3593 = vmatprep.subr.mxu0 %v521
    %3594 = vmatpush1.msra.mxu0 %v520
    %3595 = vmatprep.subr.mxu0 %v517
    %3596 = vmatpush1.msra.mxu0 %v516
    %3597 = vmatprep.subr.mxu0 %v513
    %3598 = vmatpush1.msra.mxu0 %v512
    %3599 = vmatprep.subr.mxu0 %v509
    %3600 = vmatpush1.msra.mxu0 %v508
    %3601 = vmatprep.subr.mxu0 %v505
    %3602 = vmatpush1.msra.mxu0 %v504
    %3603 = vmatprep.subr.mxu0 %v501
    %3604 = vmatpush1.msra.mxu0 %v500
    %3605 = vmatprep.subr.mxu0 %v497
    %3606 = vmatpush1.msra.mxu0 %v496
    %3607 = vmatprep.subr.mxu0 %v493
    %3608 = vmatpush1.msra.mxu0 %v492
    %3609 = vmatprep.subr.mxu0 %v489
    %3610 = vmatpush1.msra.mxu0 %v488
    %3611 = vmatprep.subr.mxu0 %v485
    %3612 = vmatpush1.msra.mxu0 %v484
    %3613 = vmatprep.subr.mxu0 0.0
    %3614 = vmatpush2.msra.mxu0 0.0
    %3615 = vmatprep.subr.mxu0 0.0
    %3616 = vmatpush2.msra.mxu0 0.0
    %3617 = vmatprep.subr.mxu0 0.0
    %3618 = vmatpush2.msra.mxu0 0.0
    %3619 = vmatprep.subr.mxu0 0.0
    %3620 = vmatpush2.msra.mxu0 0.0
    %3621 = vmatprep.subr.mxu0 0.0
    %3622 = vmatpush2.msra.mxu0 0.0
    %3623 = vmatprep.subr.mxu0 0.0
    %3624 = vmatpush2.msra.mxu0 0.0
    %3625 = vmatprep.subr.mxu0 0.0
    %3626 = vmatpush2.msra.mxu0 0.0
    %3627 = vmatprep.subr.mxu0 0.0
    %3628 = vmatpush2.msra.mxu0 0.0
    %3629 = vmatprep.subr.mxu0 0.0
    %3630 = vmatpush2.msra.mxu0 0.0
    %3631 = vmatprep.subr.mxu0 0.0
    %3632 = vmatpush2.msra.mxu0 0.0
    %3633 = vmatprep.subr.mxu0 0.0
    %3634 = vmatpush2.msra.mxu0 0.0
    %3635 = vmatprep.subr.mxu0 0.0
    %3636 = vmatpush2.msra.mxu0 0.0
    %3637 = vmatprep.subr.mxu0 0.0
    %3638 = vmatpush2.msra.mxu0 0.0
    %3639 = vmatprep.subr.mxu0 0.0
    %3640 = vmatpush2.msra.mxu0 0.0
    %3641 = vmatprep.subr.mxu0 0.0
    %3642 = vmatpush2.msra.mxu0 0.0
    %3643 = vmatprep.subr.mxu0 0.0
    %3644 = vmatpush2.msra.mxu0 0.0
    %3645 = vmatprep.mubr.f32.mxu0 0.0
    %3646 = vmatmul.mubr.f32.gmra.mxu0 %v3521
    %v3647 = vpop.f32.mrf.mxu0
    %v3648 = vadd.f32 0.0, %v3647
    %v3649 = vpop.f32.mrf.mxu0
    %v3650 = vadd.f32 0.0, %v3649
    %3651 = vdwg.mxu0
    %3652 = vmatprep.subr.mxu0 %v547
    %3653 = vmatpush1.msra.mxu0 %v546
    %3654 = vmatprep.subr.mxu0 %v543
    %3655 = vmatpush1.msra.mxu0 %v542
    %3656 = vmatprep.subr.mxu0 %v539
    %3657 = vmatpush1.msra.mxu0 %v538
    %3658 = vmatprep.subr.mxu0 %v535
    %3659 = vmatpush1.msra.mxu0 %v534
    %3660 = vmatprep.subr.mxu0 %v531
    %3661 = vmatpush1.msra.mxu0 %v530
    %3662 = vmatprep.subr.mxu0 %v527
    %3663 = vmatpush1.msra.mxu0 %v526
    %3664 = vmatprep.subr.mxu0 %v523
    %3665 = vmatpush1.msra.mxu0 %v522
    %3666 = vmatprep.subr.mxu0 %v519
    %3667 = vmatpush1.msra.mxu0 %v518
    %3668 = vmatprep.subr.mxu0 %v515
    %3669 = vmatpush1.msra.mxu0 %v514
    %3670 = vmatprep.subr.mxu0 %v511
    %3671 = vmatpush1.msra.mxu0 %v510
    %3672 = vmatprep.subr.mxu0 %v507
    %3673 = vmatpush1.msra.mxu0 %v506
    %3674 = vmatprep.subr.mxu0 %v503
    %3675 = vmatpush1.msra.mxu0 %v502
    %3676 = vmatprep.subr.mxu0 %v499
    %3677 = vmatpush1.msra.mxu0 %v498
    %3678 = vmatprep.subr.mxu0 %v495
    %3679 = vmatpush1.msra.mxu0 %v494
    %3680 = vmatprep.subr.mxu0 %v491
    %3681 = vmatpush1.msra.mxu0 %v490
    %3682 = vmatprep.subr.mxu0 %v487
    %3683 = vmatpush1.msra.mxu0 %v486
    %3684 = vmatprep.subr.mxu0 0.0
    %3685 = vmatpush2.msra.mxu0 0.0
    %3686 = vmatprep.subr.mxu0 0.0
    %3687 = vmatpush2.msra.mxu0 0.0
    %3688 = vmatprep.subr.mxu0 0.0
    %3689 = vmatpush2.msra.mxu0 0.0
    %3690 = vmatprep.subr.mxu0 0.0
    %3691 = vmatpush2.msra.mxu0 0.0
    %3692 = vmatprep.subr.mxu0 0.0
    %3693 = vmatpush2.msra.mxu0 0.0
    %3694 = vmatprep.subr.mxu0 0.0
    %3695 = vmatpush2.msra.mxu0 0.0
    %3696 = vmatprep.subr.mxu0 0.0
    %3697 = vmatpush2.msra.mxu0 0.0
    %3698 = vmatprep.subr.mxu0 0.0
    %3699 = vmatpush2.msra.mxu0 0.0
    %3700 = vmatprep.subr.mxu0 0.0
    %3701 = vmatpush2.msra.mxu0 0.0
    %3702 = vmatprep.subr.mxu0 0.0
    %3703 = vmatpush2.msra.mxu0 0.0
    %3704 = vmatprep.subr.mxu0 0.0
    %3705 = vmatpush2.msra.mxu0 0.0
    %3706 = vmatprep.subr.mxu0 0.0
    %3707 = vmatpush2.msra.mxu0 0.0
    %3708 = vmatprep.subr.mxu0 0.0
    %3709 = vmatpush2.msra.mxu0 0.0
    %3710 = vmatprep.subr.mxu0 0.0
    %3711 = vmatpush2.msra.mxu0 0.0
    %3712 = vmatprep.subr.mxu0 0.0
    %3713 = vmatpush2.msra.mxu0 0.0
    %3714 = vmatprep.subr.mxu0 0.0
    %3715 = vmatpush2.msra.mxu0 0.0
    %3716 = vmatprep.mubr.f32.mxu0 0.0
    %3717 = vmatmul.mubr.f32.gmra.mxu0 %v3521
    %v3718 = vpop.f32.mrf.mxu0
    %v3719 = vadd.f32 0.0, %v3718
    %v3720 = vpop.f32.mrf.mxu0
    %v3721 = vadd.f32 0.0, %v3720
    %3722 = vdwg.mxu0
    %v3723 = vadd.f32 %v3577, %v3648
    %v3724 = vadd.f32 %v3578, %v3650
    %v3725 = vadd.f32 %v3579, %v3719
    %v3726 = vadd.f32 %v3580, %v3721
    %v3727 = vsub.f32 0.0, %v3723
    %v3728 = vsub.f32 0.0, %v3724
    %v3729 = vsub.f32 0.0, %v3725
    %v3730 = vmul.f32 %v3727, 1.442695
    %v3731 = vpow.pop %v3730
    %v3732 = vmul.f32 %v3728, 1.442695
    %v3733 = vpow.pop %v3732
    %v3734 = vmul.f32 %v3729, 1.442695
    %v3735 = vpow.pop %v3734
    %v3736 = vadd.f32 %v3731, 1.0
    %v3737 = vadd.f32 %v3733, 1.0
    %v3738 = vadd.f32 %v3735, 1.0
    %v3739 = vrcp.pop %v3736
    %v3740 = vmul.f32 1.0, %v3739
    %v3741 = vrcp.pop %v3737
    %v3742 = vmul.f32 1.0, %v3741
    %v3743 = vrcp.pop %v3738
    %v3744 = vmul.f32 1.0, %v3743
    %v3745 = vtanh.pop %v3726
    %v3746 = vmul.f32 %v3742, %v3519
    %v3747 = vmul.f32 %v3740, %v3745
    %v3748 = vadd.f32 %v3746, %v3747
    %v3749 = vtanh.pop %v3748
    %v3750 = vmul.f32 %v3744, %v3749
    %3751 = vst [vmem:[#allocation3 + $0x68] sm:$0xff] %v3750
    %v3752 = vld [vmem:[#allocation2 + $0x1c0] sm:$0xff]
    %v3753 = vld [vmem:[#allocation2 + $0x1c8] sm:$0xff]
    %v3754 = vld [vmem:[#allocation2 + $0x1d0] sm:$0xff]
    %v3755 = vld [vmem:[#allocation2 + $0x1d8] sm:$0xff]
    %s3756 = scalar_lea.vmem %s1, 56
    %v3757 = vld [vmem:[%s3756] sm:$0xf]
    %v3759 = vlaneseq
    %v3760 = vshrl.u32 %v3759, 7
    %v3761 = vsub.s32 0, %v3760
    %v3762 = vrot.slane %v3757, %v3761
    %v3763 = vlaneseq
    %v3764 = vshrl.u32 %v3763, 7
    %v3765 = vsub.s32 1, %v3764
    %v3766 = vrot.slane %v3757, %v3765
    %v3767 = vlaneseq
    %v3768 = vshrl.u32 %v3767, 7
    %v3769 = vsub.s32 2, %v3768
    %v3770 = vrot.slane %v3757, %v3769
    %v3771 = vlaneseq
    %v3772 = vshrl.u32 %v3771, 7
    %v3773 = vsub.s32 3, %v3772
    %v3774 = vrot.slane %v3757, %v3773
    %v3779 = vmul.f32 %v3752, %v3762
    %v3780 = vmul.f32 %v3753, %v3766
    %v3781 = vmul.f32 %v3754, %v3770
    %v3782 = vmul.f32 %v3755, %v3774
    %s3783 = scalar_lea.vmem %s4, 56
    %v3784 = vld [vmem:[%s3783] sm:$0xf]
    %v3786 = vlaneseq
    %v3787 = vshrl.u32 %v3786, 7
    %v3788 = vsub.s32 0, %v3787
    %v3789 = vrot.slane %v3784, %v3788
    %v3790 = vlaneseq
    %v3791 = vshrl.u32 %v3790, 7
    %v3792 = vsub.s32 1, %v3791
    %v3793 = vrot.slane %v3784, %v3792
    %v3794 = vlaneseq
    %v3795 = vshrl.u32 %v3794, 7
    %v3796 = vsub.s32 2, %v3795
    %v3797 = vrot.slane %v3784, %v3796
    %v3798 = vlaneseq
    %v3799 = vshrl.u32 %v3798, 7
    %v3800 = vsub.s32 3, %v3799
    %v3801 = vrot.slane %v3784, %v3800
    %v3806 = vadd.f32 %v3779, %v3789
    %v3807 = vadd.f32 %v3780, %v3793
    %v3808 = vadd.f32 %v3781, %v3797
    %v3809 = vadd.f32 %v3782, %v3801
    %3810 = vmatprep.subr.mxu0 %v545
    %3811 = vmatpush1.msra.mxu0 %v544
    %3812 = vmatprep.subr.mxu0 %v541
    %3813 = vmatpush1.msra.mxu0 %v540
    %3814 = vmatprep.subr.mxu0 %v537
    %3815 = vmatpush1.msra.mxu0 %v536
    %3816 = vmatprep.subr.mxu0 %v533
    %3817 = vmatpush1.msra.mxu0 %v532
    %3818 = vmatprep.subr.mxu0 %v529
    %3819 = vmatpush1.msra.mxu0 %v528
    %3820 = vmatprep.subr.mxu0 %v525
    %3821 = vmatpush1.msra.mxu0 %v524
    %3822 = vmatprep.subr.mxu0 %v521
    %3823 = vmatpush1.msra.mxu0 %v520
    %3824 = vmatprep.subr.mxu0 %v517
    %3825 = vmatpush1.msra.mxu0 %v516
    %3826 = vmatprep.subr.mxu0 %v513
    %3827 = vmatpush1.msra.mxu0 %v512
    %3828 = vmatprep.subr.mxu0 %v509
    %3829 = vmatpush1.msra.mxu0 %v508
    %3830 = vmatprep.subr.mxu0 %v505
    %3831 = vmatpush1.msra.mxu0 %v504
    %3832 = vmatprep.subr.mxu0 %v501
    %3833 = vmatpush1.msra.mxu0 %v500
    %3834 = vmatprep.subr.mxu0 %v497
    %3835 = vmatpush1.msra.mxu0 %v496
    %3836 = vmatprep.subr.mxu0 %v493
    %3837 = vmatpush1.msra.mxu0 %v492
    %3838 = vmatprep.subr.mxu0 %v489
    %3839 = vmatpush1.msra.mxu0 %v488
    %3840 = vmatprep.subr.mxu0 %v485
    %3841 = vmatpush1.msra.mxu0 %v484
    %3842 = vmatprep.subr.mxu0 0.0
    %3843 = vmatpush2.msra.mxu0 0.0
    %3844 = vmatprep.subr.mxu0 0.0
    %3845 = vmatpush2.msra.mxu0 0.0
    %3846 = vmatprep.subr.mxu0 0.0
    %3847 = vmatpush2.msra.mxu0 0.0
    %3848 = vmatprep.subr.mxu0 0.0
    %3849 = vmatpush2.msra.mxu0 0.0
    %3850 = vmatprep.subr.mxu0 0.0
    %3851 = vmatpush2.msra.mxu0 0.0
    %3852 = vmatprep.subr.mxu0 0.0
    %3853 = vmatpush2.msra.mxu0 0.0
    %3854 = vmatprep.subr.mxu0 0.0
    %3855 = vmatpush2.msra.mxu0 0.0
    %3856 = vmatprep.subr.mxu0 0.0
    %3857 = vmatpush2.msra.mxu0 0.0
    %3858 = vmatprep.subr.mxu0 0.0
    %3859 = vmatpush2.msra.mxu0 0.0
    %3860 = vmatprep.subr.mxu0 0.0
    %3861 = vmatpush2.msra.mxu0 0.0
    %3862 = vmatprep.subr.mxu0 0.0
    %3863 = vmatpush2.msra.mxu0 0.0
    %3864 = vmatprep.subr.mxu0 0.0
    %3865 = vmatpush2.msra.mxu0 0.0
    %3866 = vmatprep.subr.mxu0 0.0
    %3867 = vmatpush2.msra.mxu0 0.0
    %3868 = vmatprep.subr.mxu0 0.0
    %3869 = vmatpush2.msra.mxu0 0.0
    %3870 = vmatprep.subr.mxu0 0.0
    %3871 = vmatpush2.msra.mxu0 0.0
    %3872 = vmatprep.subr.mxu0 0.0
    %3873 = vmatpush2.msra.mxu0 0.0
    %3874 = vmatprep.mubr.f32.mxu0 0.0
    %3875 = vmatmul.mubr.f32.gmra.mxu0 %v3750
    %v3876 = vpop.f32.mrf.mxu0
    %v3877 = vadd.f32 0.0, %v3876
    %v3878 = vpop.f32.mrf.mxu0
    %v3879 = vadd.f32 0.0, %v3878
    %3880 = vdwg.mxu0
    %3881 = vmatprep.subr.mxu0 %v547
    %3882 = vmatpush1.msra.mxu0 %v546
    %3883 = vmatprep.subr.mxu0 %v543
    %3884 = vmatpush1.msra.mxu0 %v542
    %3885 = vmatprep.subr.mxu0 %v539
    %3886 = vmatpush1.msra.mxu0 %v538
    %3887 = vmatprep.subr.mxu0 %v535
    %3888 = vmatpush1.msra.mxu0 %v534
    %3889 = vmatprep.subr.mxu0 %v531
    %3890 = vmatpush1.msra.mxu0 %v530
    %3891 = vmatprep.subr.mxu0 %v527
    %3892 = vmatpush1.msra.mxu0 %v526
    %3893 = vmatprep.subr.mxu0 %v523
    %3894 = vmatpush1.msra.mxu0 %v522
    %3895 = vmatprep.subr.mxu0 %v519
    %3896 = vmatpush1.msra.mxu0 %v518
    %3897 = vmatprep.subr.mxu0 %v515
    %3898 = vmatpush1.msra.mxu0 %v514
    %3899 = vmatprep.subr.mxu0 %v511
    %3900 = vmatpush1.msra.mxu0 %v510
    %3901 = vmatprep.subr.mxu0 %v507
    %3902 = vmatpush1.msra.mxu0 %v506
    %3903 = vmatprep.subr.mxu0 %v503
    %3904 = vmatpush1.msra.mxu0 %v502
    %3905 = vmatprep.subr.mxu0 %v499
    %3906 = vmatpush1.msra.mxu0 %v498
    %3907 = vmatprep.subr.mxu0 %v495
    %3908 = vmatpush1.msra.mxu0 %v494
    %3909 = vmatprep.subr.mxu0 %v491
    %3910 = vmatpush1.msra.mxu0 %v490
    %3911 = vmatprep.subr.mxu0 %v487
    %3912 = vmatpush1.msra.mxu0 %v486
    %3913 = vmatprep.subr.mxu0 0.0
    %3914 = vmatpush2.msra.mxu0 0.0
    %3915 = vmatprep.subr.mxu0 0.0
    %3916 = vmatpush2.msra.mxu0 0.0
    %3917 = vmatprep.subr.mxu0 0.0
    %3918 = vmatpush2.msra.mxu0 0.0
    %3919 = vmatprep.subr.mxu0 0.0
    %3920 = vmatpush2.msra.mxu0 0.0
    %3921 = vmatprep.subr.mxu0 0.0
    %3922 = vmatpush2.msra.mxu0 0.0
    %3923 = vmatprep.subr.mxu0 0.0
    %3924 = vmatpush2.msra.mxu0 0.0
    %3925 = vmatprep.subr.mxu0 0.0
    %3926 = vmatpush2.msra.mxu0 0.0
    %3927 = vmatprep.subr.mxu0 0.0
    %3928 = vmatpush2.msra.mxu0 0.0
    %3929 = vmatprep.subr.mxu0 0.0
    %3930 = vmatpush2.msra.mxu0 0.0
    %3931 = vmatprep.subr.mxu0 0.0
    %3932 = vmatpush2.msra.mxu0 0.0
    %3933 = vmatprep.subr.mxu0 0.0
    %3934 = vmatpush2.msra.mxu0 0.0
    %3935 = vmatprep.subr.mxu0 0.0
    %3936 = vmatpush2.msra.mxu0 0.0
    %3937 = vmatprep.subr.mxu0 0.0
    %3938 = vmatpush2.msra.mxu0 0.0
    %3939 = vmatprep.subr.mxu0 0.0
    %3940 = vmatpush2.msra.mxu0 0.0
    %3941 = vmatprep.subr.mxu0 0.0
    %3942 = vmatpush2.msra.mxu0 0.0
    %3943 = vmatprep.subr.mxu0 0.0
    %3944 = vmatpush2.msra.mxu0 0.0
    %3945 = vmatprep.mubr.f32.mxu0 0.0
    %3946 = vmatmul.mubr.f32.gmra.mxu0 %v3750
    %v3947 = vpop.f32.mrf.mxu0
    %v3948 = vadd.f32 0.0, %v3947
    %v3949 = vpop.f32.mrf.mxu0
    %v3950 = vadd.f32 0.0, %v3949
    %3951 = vdwg.mxu0
    %v3952 = vadd.f32 %v3806, %v3877
    %v3953 = vadd.f32 %v3807, %v3879
    %v3954 = vadd.f32 %v3808, %v3948
    %v3955 = vadd.f32 %v3809, %v3950
    %v3956 = vsub.f32 0.0, %v3952
    %v3957 = vsub.f32 0.0, %v3953
    %v3958 = vsub.f32 0.0, %v3954
    %v3959 = vmul.f32 %v3956, 1.442695
    %v3960 = vpow.pop %v3959
    %v3961 = vmul.f32 %v3957, 1.442695
    %v3962 = vpow.pop %v3961
    %v3963 = vmul.f32 %v3958, 1.442695
    %v3964 = vpow.pop %v3963
    %v3965 = vadd.f32 %v3960, 1.0
    %v3966 = vadd.f32 %v3962, 1.0
    %v3967 = vadd.f32 %v3964, 1.0
    %v3968 = vrcp.pop %v3965
    %v3969 = vmul.f32 1.0, %v3968
    %v3970 = vrcp.pop %v3966
    %v3971 = vmul.f32 1.0, %v3970
    %v3972 = vrcp.pop %v3967
    %v3973 = vmul.f32 1.0, %v3972
    %v3974 = vtanh.pop %v3955
    %v3975 = vmul.f32 %v3971, %v3748
    %v3976 = vmul.f32 %v3969, %v3974
    %v3977 = vadd.f32 %v3975, %v3976
    %v3978 = vtanh.pop %v3977
    %v3979 = vmul.f32 %v3973, %v3978
    %3980 = vst [vmem:[#allocation3 + $0x70] sm:$0xff] %v3979
    %v3981 = vld [vmem:[%s5] sm:$0x1]
    %v3982 = vld [vmem:[%s6] sm:$0x1]
    %v3983 = vld [vmem:[#allocation3 + $0x50] sm:$0xff]
    %v3984 = vld [vmem:[#allocation3 + $0x58] sm:$0xff]
    %v3985 = vld [vmem:[#allocation3 + $0x60] sm:$0xff]
    %v3986 = vld [vmem:[#allocation3 + $0x68] sm:$0xff]
    %v3987 = vld [vmem:[#allocation3 + $0x70] sm:$0xff]
    %v3989 = vlaneseq
    %v3990 = vshrl.u32 %v3989, 7
    %v3991 = vsub.s32 0, %v3990
    %v3992 = vrot.slane %v3981, %v3991
    %v3994 = vmul.f32 %v3983, %v3992
    %vm3995 = vcmask 261120
    %v3996 = vsel %vm3995, %v3994, 0.0
    %3997 = vadd.xlane.f32.xlu0 %v3996
    %v3998 = vpop.xlane.xlu0 %3997
    %v3999 = vmul.f32 %v3984, %v3992
    %v4000 = vsel %vm3995, %v3999, 0.0
    %4001 = vadd.xlane.f32.xlu0 %v4000
    %v4002 = vpop.xlane.xlu0 %4001
    %v4003 = vmul.f32 %v3985, %v3992
    %v4004 = vsel %vm3995, %v4003, 0.0
    %4005 = vadd.xlane.f32.xlu0 %v4004
    %v4006 = vpop.xlane.xlu0 %4005
    %v4007 = vmul.f32 %v3986, %v3992
    %v4008 = vsel %vm3995, %v4007, 0.0
    %4009 = vadd.xlane.f32.xlu0 %v4008
    %v4010 = vpop.xlane.xlu0 %4009
    %v4011 = vmul.f32 %v3987, %v3992
    %v4012 = vsel %vm3995, %v4011, 0.0
    %4013 = vadd.xlane.f32.xlu0 %v4012
    %v4014 = vpop.xlane.xlu0 %4013
    %vm4015 = vcmask 7168
    %v4016 = vsel %vm4015, %v3998, %v4002
    %vm4017 = vcmask 15360
    %v4018 = vsel %vm4017, %v4016, %v4006
    %vm4019 = vcmask 23552
    %v4020 = vsel %vm4019, %v4018, %v4010
    %vm4021 = vcmask 31744
    %v4022 = vsel %vm4021, %v4020, %v4014
    %v4024 = vlaneseq
    %v4025 = vshrl.u32 %v4024, 7
    %v4026 = vsub.s32 0, %v4025
    %v4027 = vrot.slane %v3982, %v4026
    %4028 = vset.pattern.permute.xlu0 0
    %4029 = vperm.xlu0 %4028, %v4027
    %v4030 = vpop.permute.xlu0 %4029
    %v4032 = vadd.f32 %v4022, %v4030
    %vm4033 = vcmask 39936
    %v4034 = vsel %vm4033, %v4032, -inf
    %4035 = vmax.xlane.f32.xlu0 %v4034
    %v4036 = vpop.xlane.xlu0 %4035
    %v4037 = vsub.f32 %v4032, %v4036
    %v4038 = vmul.f32 %v4037, 1.442695
    %v4039 = vpow.pop %v4038
    %v4040 = vsel %vm4033, %v4039, 0.0
    %4041 = vadd.xlane.f32.xlu0 %v4040
    %v4042 = vpop.xlane.xlu0 %4041
    %v4043 = vrcp.pop %v4042
    %v4044 = vmul.f32 %v4039, %v4043
    %4046 = vset.pattern.permute.xlu0 0
    %4047 = vperm.xlu0 %4046, %v4044
    %v4048 = vpop.permute.xlu0 %4047
    %v4050 = vmul.f32 %v4048, %v3983
    %4051 = vset.pattern.permute.xlu0 1
    %4052 = vperm.xlu0 %4051, %v4044
    %v4053 = vpop.permute.xlu0 %4052
    %v4055 = vmul.f32 %v4053, %v3984
    %v4056 = vadd.f32 %v4050, %v4055
    %4057 = vset.pattern.permute.xlu0 2
    %4058 = vperm.xlu0 %4057, %v4044
    %v4059 = vpop.permute.xlu0 %4058
    %v4061 = vmul.f32 %v4059, %v3985
    %v4062 = vadd.f32 %v4056, %v4061
    %4063 = vset.pattern.permute.xlu0 3
    %4064 = vperm.xlu0 %4063, %v4044
    %v4065 = vpop.permute.xlu0 %4064
    %v4067 = vmul.f32 %v4065, %v3986
    %v4068 = vadd.f32 %v4062, %v4067
    %4069 = vset.pattern.permute.xlu0 4
    %4070 = vperm.xlu0 %4069, %v4044
    %v4071 = vpop.permute.xlu0 %4070
    %v4073 = vmul.f32 %v4071, %v3987
    %v4074 = vadd.f32 %v4068, %v4073
    %v4075 = vld [vmem:[%s7] sm:$0x1]
    %v4076 = vld [vmem:[%s8] sm:$0x1]
    %v4078 = vlaneseq
    %v4079 = vshrl.u32 %v4078, 7
    %v4080 = vsub.s32 0, %v4079
    %v4081 = vrot.slane %v4075, %v4080
    %v4083 = vmul.f32 %v4074, %v4081
    %v4084 = vsel %vm3995, %v4083, 0.0
    %4085 = vadd.xlane.f32.xlu0 %v4084
    %v4086 = vpop.xlane.xlu0 %4085
    %v4088 = vlaneseq
    %v4089 = vshrl.u32 %v4088, 7
    %v4090 = vsub.s32 0, %v4089
    %v4091 = vrot.slane %v4076, %v4090
    %v4093 = vadd.f32 %v4086, %v4091
    %s4094 = scalar_lea.vmem %s5, 1
    %v4095 = vld [vmem:[%s4094] sm:$0x1]
    %s4096 = scalar_lea.vmem %s6, 1
    %v4097 = vld [vmem:[%s4096] sm:$0x1]
    %v4098 = vld [vmem:[#allocation3 + $0x28] sm:$0xff]
    %v4099 = vld [vmem:[#allocation3 + $0x30] sm:$0xff]
    %v4100 = vld [vmem:[#allocation3 + $0x38] sm:$0xff]
    %v4101 = vld [vmem:[#allocation3 + $0x40] sm:$0xff]
    %v4102 = vld [vmem:[#allocation3 + $0x48] sm:$0xff]
    %v4104 = vlaneseq
    %v4105 = vshrl.u32 %v4104, 7
    %v4106 = vsub.s32 0, %v4105
    %v4107 = vrot.slane %v4095, %v4106
    %4108 = vrot.lane.b32.xlu0 %v4107, 32
    %v4109 = vpop.permute.xlu0 %4108
    %v4111 = vmul.f32 %v4098, %v4109
    %4113 = vrot.lane.b32.xlu0 %v4111, 96
    %v4114 = vpop.permute.xlu0 %4113
    %v4116 = vsel %vm3995, %v4114, 0.0
    %4117 = vadd.xlane.f32.xlu0 %v4116
    %v4118 = vpop.xlane.xlu0 %4117
    %v4119 = vmul.f32 %v4099, %v4109
    %4121 = vrot.lane.b32.xlu0 %v4119, 96
    %v4122 = vpop.permute.xlu0 %4121
    %v4124 = vsel %vm3995, %v4122, 0.0
    %4125 = vadd.xlane.f32.xlu0 %v4124
    %v4126 = vpop.xlane.xlu0 %4125
    %v4127 = vmul.f32 %v4100, %v4109
    %4129 = vrot.lane.b32.xlu0 %v4127, 96
    %v4130 = vpop.permute.xlu0 %4129
    %v4132 = vsel %vm3995, %v4130, 0.0
    %4133 = vadd.xlane.f32.xlu0 %v4132
    %v4134 = vpop.xlane.xlu0 %4133
    %v4135 = vmul.f32 %v4101, %v4109
    %4137 = vrot.lane.b32.xlu0 %v4135, 96
    %v4138 = vpop.permute.xlu0 %4137
    %v4140 = vsel %vm3995, %v4138, 0.0
    %4141 = vadd.xlane.f32.xlu0 %v4140
    %v4142 = vpop.xlane.xlu0 %4141
    %v4143 = vmul.f32 %v4102, %v4109
    %4145 = vrot.lane.b32.xlu0 %v4143, 96
    %v4146 = vpop.permute.xlu0 %4145
    %v4148 = vsel %vm3995, %v4146, 0.0
    %4149 = vadd.xlane.f32.xlu0 %v4148
    %v4150 = vpop.xlane.xlu0 %4149
    %v4151 = vmul.f32 %v3983, %v4109
    %4153 = vrot.lane.b32.xlu0 %v4151, 96
    %v4154 = vpop.permute.xlu0 %4153
    %v4156 = vsel %vm3995, %v4154, 0.0
    %4157 = vadd.xlane.f32.xlu0 %v4156
    %v4158 = vpop.xlane.xlu0 %4157
    %v4159 = vmul.f32 %v3984, %v4109
    %4161 = vrot.lane.b32.xlu0 %v4159, 96
    %v4162 = vpop.permute.xlu0 %4161
    %v4164 = vsel %vm3995, %v4162, 0.0
    %4165 = vadd.xlane.f32.xlu0 %v4164
    %v4166 = vpop.xlane.xlu0 %4165
    %v4167 = vmul.f32 %v3985, %v4109
    %4169 = vrot.lane.b32.xlu0 %v4167, 96
    %v4170 = vpop.permute.xlu0 %4169
    %v4172 = vsel %vm3995, %v4170, 0.0
    %4173 = vadd.xlane.f32.xlu0 %v4172
    %v4174 = vpop.xlane.xlu0 %4173
    %v4175 = vmul.f32 %v3986, %v4109
    %4177 = vrot.lane.b32.xlu0 %v4175, 96
    %v4178 = vpop.permute.xlu0 %4177
    %v4180 = vsel %vm3995, %v4178, 0.0
    %4181 = vadd.xlane.f32.xlu0 %v4180
    %v4182 = vpop.xlane.xlu0 %4181
    %v4183 = vmul.f32 %v3987, %v4109
    %4185 = vrot.lane.b32.xlu0 %v4183, 96
    %v4186 = vpop.permute.xlu0 %4185
    %v4188 = vsel %vm3995, %v4186, 0.0
    %4189 = vadd.xlane.f32.xlu0 %v4188
    %v4190 = vpop.xlane.xlu0 %4189
    %v4191 = vsel %vm4015, %v4118, %v4126
    %v4192 = vsel %vm4017, %v4191, %v4134
    %v4193 = vsel %vm4019, %v4192, %v4142
    %v4194 = vsel %vm4021, %v4193, %v4150
    %v4195 = vsel %vm4033, %v4194, %v4158
    %vm4196 = vcmask 48128
    %v4197 = vsel %vm4196, %v4195, %v4166
    %vm4198 = vcmask 56320
    %v4199 = vsel %vm4198, %v4197, %v4174
    %v4200 = vsel %vm68, %v4199, %v4182
    %vm4201 = vcmask 72704
    %v4202 = vsel %vm4201, %v4200, %v4190
    %v4204 = vlaneseq
    %v4205 = vshrl.u32 %v4204, 7
    %v4206 = vsub.s32 0, %v4205
    %v4207 = vrot.slane %v4097, %v4206
    %4208 = vset.pattern.permute.xlu0 0
    %4209 = vperm.xlu0 %4208, %v4207
    %v4210 = vpop.permute.xlu0 %4209
    %v4212 = vadd.f32 %v4202, %v4210
    %vm4213 = vcmask 80896
    %v4214 = vsel %vm4213, %v4212, -inf
    %4215 = vmax.xlane.f32.xlu0 %v4214
    %v4216 = vpop.xlane.xlu0 %4215
    %v4217 = vsub.f32 %v4212, %v4216
    %v4218 = vmul.f32 %v4217, 1.442695
    %v4219 = vpow.pop %v4218
    %v4220 = vsel %vm4213, %v4219, 0.0
    %4221 = vadd.xlane.f32.xlu0 %v4220
    %v4222 = vpop.xlane.xlu0 %4221
    %v4223 = vrcp.pop %v4222
    %v4224 = vmul.f32 %v4219, %v4223
    %4226 = vset.pattern.permute.xlu0 0
    %4227 = vperm.xlu0 %4226, %v4224
    %v4228 = vpop.permute.xlu0 %4227
    %v4230 = vmul.f32 %v4228, %v4098
    %4231 = vset.pattern.permute.xlu0 1
    %4232 = vperm.xlu0 %4231, %v4224
    %v4233 = vpop.permute.xlu0 %4232
    %v4235 = vmul.f32 %v4233, %v4099
    %v4236 = vadd.f32 %v4230, %v4235
    %4237 = vset.pattern.permute.xlu0 2
    %4238 = vperm.xlu0 %4237, %v4224
    %v4239 = vpop.permute.xlu0 %4238
    %v4241 = vmul.f32 %v4239, %v4100
    %v4242 = vadd.f32 %v4236, %v4241
    %4243 = vset.pattern.permute.xlu0 3
    %4244 = vperm.xlu0 %4243, %v4224
    %v4245 = vpop.permute.xlu0 %4244
    %v4247 = vmul.f32 %v4245, %v4101
    %v4248 = vadd.f32 %v4242, %v4247
    %4249 = vset.pattern.permute.xlu0 4
    %4250 = vperm.xlu0 %4249, %v4224
    %v4251 = vpop.permute.xlu0 %4250
    %v4253 = vmul.f32 %v4251, %v4102
    %v4254 = vadd.f32 %v4248, %v4253
    %4255 = vset.pattern.permute.xlu0 5
    %4256 = vperm.xlu0 %4255, %v4224
    %v4257 = vpop.permute.xlu0 %4256
    %v4259 = vmul.f32 %v4257, %v3983
    %v4260 = vadd.f32 %v4254, %v4259
    %4261 = vset.pattern.permute.xlu0 6
    %4262 = vperm.xlu0 %4261, %v4224
    %v4263 = vpop.permute.xlu0 %4262
    %v4265 = vmul.f32 %v4263, %v3984
    %v4266 = vadd.f32 %v4260, %v4265
    %4267 = vset.pattern.permute.xlu0 7
    %4268 = vperm.xlu0 %4267, %v4224
    %v4269 = vpop.permute.xlu0 %4268
    %v4271 = vmul.f32 %v4269, %v3985
    %v4272 = vadd.f32 %v4266, %v4271
    %4273 = vset.pattern.permute.xlu0 8
    %4274 = vperm.xlu0 %4273, %v4224
    %v4275 = vpop.permute.xlu0 %4274
    %v4277 = vmul.f32 %v4275, %v3986
    %v4278 = vadd.f32 %v4272, %v4277
    %4279 = vset.pattern.permute.xlu0 9
    %4280 = vperm.xlu0 %4279, %v4224
    %v4281 = vpop.permute.xlu0 %4280
    %v4283 = vmul.f32 %v4281, %v3987
    %v4284 = vadd.f32 %v4278, %v4283
    %s4285 = scalar_lea.vmem %s7, 1
    %v4286 = vld [vmem:[%s4285] sm:$0x1]
    %s4287 = scalar_lea.vmem %s8, 1
    %v4288 = vld [vmem:[%s4287] sm:$0x1]
    %v4290 = vlaneseq
    %v4291 = vshrl.u32 %v4290, 7
    %v4292 = vsub.s32 0, %v4291
    %v4293 = vrot.slane %v4286, %v4292
    %4294 = vrot.lane.b32.xlu0 %v4293, 32
    %v4295 = vpop.permute.xlu0 %4294
    %v4297 = vmul.f32 %v4284, %v4295
    %4299 = vrot.lane.b32.xlu0 %v4297, 96
    %v4300 = vpop.permute.xlu0 %4299
    %v4302 = vsel %vm3995, %v4300, 0.0
    %4303 = vadd.xlane.f32.xlu0 %v4302
    %v4304 = vpop.xlane.xlu0 %4303
    %v4306 = vlaneseq
    %v4307 = vshrl.u32 %v4306, 7
    %v4308 = vsub.s32 0, %v4307
    %v4309 = vrot.slane %v4288, %v4308
    %v4311 = vadd.f32 %v4304, %v4309
    %s4312 = scalar_lea.vmem %s5, 2
    %v4313 = vld [vmem:[%s4312] sm:$0x1]
    %s4314 = scalar_lea.vmem %s6, 2
    %v4315 = vld [vmem:[%s4314] sm:$0x1]
    %v4316 = vld [vmem:[#allocation3] sm:$0xff]
    %v4317 = vld [vmem:[#allocation3 + $0x8] sm:$0xff]
    %v4318 = vld [vmem:[#allocation3 + $0x10] sm:$0xff]
    %v4319 = vld [vmem:[#allocation3 + $0x18] sm:$0xff]
    %v4320 = vld [vmem:[#allocation3 + $0x20] sm:$0xff]
    %v4322 = vlaneseq
    %v4323 = vshrl.u32 %v4322, 7
    %v4324 = vsub.s32 0, %v4323
    %v4325 = vrot.slane %v4313, %v4324
    %4326 = vrot.lane.b32.xlu0 %v4325, 64
    %v4327 = vpop.permute.xlu0 %4326
    %v4329 = vmul.f32 %v4316, %v4327
    %4331 = vrot.lane.b32.xlu0 %v4329, 64
    %v4332 = vpop.permute.xlu0 %4331
    %v4334 = vsel %vm3995, %v4332, 0.0
    %4335 = vadd.xlane.f32.xlu0 %v4334
    %v4336 = vpop.xlane.xlu0 %4335
    %v4337 = vmul.f32 %v4317, %v4327
    %4339 = vrot.lane.b32.xlu0 %v4337, 64
    %v4340 = vpop.permute.xlu0 %4339
    %v4342 = vsel %vm3995, %v4340, 0.0
    %4343 = vadd.xlane.f32.xlu0 %v4342
    %v4344 = vpop.xlane.xlu0 %4343
    %v4345 = vmul.f32 %v4318, %v4327
    %4347 = vrot.lane.b32.xlu0 %v4345, 64
    %v4348 = vpop.permute.xlu0 %4347
    %v4350 = vsel %vm3995, %v4348, 0.0
    %4351 = vadd.xlane.f32.xlu0 %v4350
    %v4352 = vpop.xlane.xlu0 %4351
    %v4353 = vmul.f32 %v4319, %v4327
    %4355 = vrot.lane.b32.xlu0 %v4353, 64
    %v4356 = vpop.permute.xlu0 %4355
    %v4358 = vsel %vm3995, %v4356, 0.0
    %4359 = vadd.xlane.f32.xlu0 %v4358
    %v4360 = vpop.xlane.xlu0 %4359
    %v4361 = vmul.f32 %v4320, %v4327
    %4363 = vrot.lane.b32.xlu0 %v4361, 64
    %v4364 = vpop.permute.xlu0 %4363
    %v4366 = vsel %vm3995, %v4364, 0.0
    %4367 = vadd.xlane.f32.xlu0 %v4366
    %v4368 = vpop.xlane.xlu0 %4367
    %v4369 = vmul.f32 %v4098, %v4327
    %4371 = vrot.lane.b32.xlu0 %v4369, 64
    %v4372 = vpop.permute.xlu0 %4371
    %v4374 = vsel %vm3995, %v4372, 0.0
    %4375 = vadd.xlane.f32.xlu0 %v4374
    %v4376 = vpop.xlane.xlu0 %4375
    %v4377 = vmul.f32 %v4099, %v4327
    %4379 = vrot.lane.b32.xlu0 %v4377, 64
    %v4380 = vpop.permute.xlu0 %4379
    %v4382 = vsel %vm3995, %v4380, 0.0
    %4383 = vadd.xlane.f32.xlu0 %v4382
    %v4384 = vpop.xlane.xlu0 %4383
    %v4385 = vmul.f32 %v4100, %v4327
    %4387 = vrot.lane.b32.xlu0 %v4385, 64
    %v4388 = vpop.permute.xlu0 %4387
    %v4390 = vsel %vm3995, %v4388, 0.0
    %4391 = vadd.xlane.f32.xlu0 %v4390
    %v4392 = vpop.xlane.xlu0 %4391
    %v4393 = vmul.f32 %v4101, %v4327
    %4395 = vrot.lane.b32.xlu0 %v4393, 64
    %v4396 = vpop.permute.xlu0 %4395
    %v4398 = vsel %vm3995, %v4396, 0.0
    %4399 = vadd.xlane.f32.xlu0 %v4398
    %v4400 = vpop.xlane.xlu0 %4399
    %v4401 = vmul.f32 %v4102, %v4327
    %4403 = vrot.lane.b32.xlu0 %v4401, 64
    %v4404 = vpop.permute.xlu0 %4403
    %v4406 = vsel %vm3995, %v4404, 0.0
    %4407 = vadd.xlane.f32.xlu0 %v4406
    %v4408 = vpop.xlane.xlu0 %4407
    %v4409 = vmul.f32 %v3983, %v4327
    %4411 = vrot.lane.b32.xlu0 %v4409, 64
    %v4412 = vpop.permute.xlu0 %4411
    %v4414 = vsel %vm3995, %v4412, 0.0
    %4415 = vadd.xlane.f32.xlu0 %v4414
    %v4416 = vpop.xlane.xlu0 %4415
    %v4417 = vmul.f32 %v3984, %v4327
    %4419 = vrot.lane.b32.xlu0 %v4417, 64
    %v4420 = vpop.permute.xlu0 %4419
    %v4422 = vsel %vm3995, %v4420, 0.0
    %4423 = vadd.xlane.f32.xlu0 %v4422
    %v4424 = vpop.xlane.xlu0 %4423
    %v4425 = vmul.f32 %v3985, %v4327
    %4427 = vrot.lane.b32.xlu0 %v4425, 64
    %v4428 = vpop.permute.xlu0 %4427
    %v4430 = vsel %vm3995, %v4428, 0.0
    %4431 = vadd.xlane.f32.xlu0 %v4430
    %v4432 = vpop.xlane.xlu0 %4431
    %v4433 = vmul.f32 %v3986, %v4327
    %4435 = vrot.lane.b32.xlu0 %v4433, 64
    %v4436 = vpop.permute.xlu0 %4435
    %v4438 = vsel %vm3995, %v4436, 0.0
    %4439 = vadd.xlane.f32.xlu0 %v4438
    %v4440 = vpop.xlane.xlu0 %4439
    %v4441 = vmul.f32 %v3987, %v4327
    %4443 = vrot.lane.b32.xlu0 %v4441, 64
    %v4444 = vpop.permute.xlu0 %4443
    %v4446 = vsel %vm3995, %v4444, 0.0
    %4447 = vadd.xlane.f32.xlu0 %v4446
    %v4448 = vpop.xlane.xlu0 %4447
    %v4449 = vsel %vm4015, %v4336, %v4344
    %v4450 = vsel %vm4017, %v4449, %v4352
    %v4451 = vsel %vm4019, %v4450, %v4360
    %v4452 = vsel %vm4021, %v4451, %v4368
    %v4453 = vsel %vm4033, %v4452, %v4376
    %v4454 = vsel %vm4196, %v4453, %v4384
    %v4455 = vsel %vm4198, %v4454, %v4392
    %v4456 = vsel %vm68, %v4455, %v4400
    %v4457 = vsel %vm4201, %v4456, %v4408
    %v4458 = vsel %vm4213, %v4457, %v4416
    %vm4459 = vcmask 89088
    %v4460 = vsel %vm4459, %v4458, %v4424
    %vm4461 = vcmask 97280
    %v4462 = vsel %vm4461, %v4460, %v4432
    %vm4463 = vcmask 105472
    %v4464 = vsel %vm4463, %v4462, %v4440
    %vm4465 = vcmask 113664
    %v4466 = vsel %vm4465, %v4464, %v4448
    %v4468 = vlaneseq
    %v4469 = vshrl.u32 %v4468, 7
    %v4470 = vsub.s32 0, %v4469
    %v4471 = vrot.slane %v4315, %v4470
    %4472 = vset.pattern.permute.xlu0 0
    %4473 = vperm.xlu0 %4472, %v4471
    %v4474 = vpop.permute.xlu0 %4473
    %v4476 = vadd.f32 %v4466, %v4474
    %vm4477 = vcmask 121856
    %v4478 = vsel %vm4477, %v4476, -inf
    %4479 = vmax.xlane.f32.xlu0 %v4478
    %v4480 = vpop.xlane.xlu0 %4479
    %v4481 = vsub.f32 %v4476, %v4480
    %v4482 = vmul.f32 %v4481, 1.442695
    %v4483 = vpow.pop %v4482
    %v4484 = vsel %vm4477, %v4483, 0.0
    %4485 = vadd.xlane.f32.xlu0 %v4484
    %v4486 = vpop.xlane.xlu0 %4485
    %v4487 = vrcp.pop %v4486
    %v4488 = vmul.f32 %v4483, %v4487
    %4490 = vset.pattern.permute.xlu0 0
    %4491 = vperm.xlu0 %4490, %v4488
    %v4492 = vpop.permute.xlu0 %4491
    %v4494 = vmul.f32 %v4492, %v4316
    %4495 = vset.pattern.permute.xlu0 1
    %4496 = vperm.xlu0 %4495, %v4488
    %v4497 = vpop.permute.xlu0 %4496
    %v4499 = vmul.f32 %v4497, %v4317
    %v4500 = vadd.f32 %v4494, %v4499
    %4501 = vset.pattern.permute.xlu0 2
    %4502 = vperm.xlu0 %4501, %v4488
    %v4503 = vpop.permute.xlu0 %4502
    %v4505 = vmul.f32 %v4503, %v4318
    %v4506 = vadd.f32 %v4500, %v4505
    %4507 = vset.pattern.permute.xlu0 3
    %4508 = vperm.xlu0 %4507, %v4488
    %v4509 = vpop.permute.xlu0 %4508
    %v4511 = vmul.f32 %v4509, %v4319
    %v4512 = vadd.f32 %v4506, %v4511
    %4513 = vset.pattern.permute.xlu0 4
    %4514 = vperm.xlu0 %4513, %v4488
    %v4515 = vpop.permute.xlu0 %4514
    %v4517 = vmul.f32 %v4515, %v4320
    %v4518 = vadd.f32 %v4512, %v4517
    %4519 = vset.pattern.permute.xlu0 5
    %4520 = vperm.xlu0 %4519, %v4488
    %v4521 = vpop.permute.xlu0 %4520
    %v4523 = vmul.f32 %v4521, %v4098
    %v4524 = vadd.f32 %v4518, %v4523
    %4525 = vset.pattern.permute.xlu0 6
    %4526 = vperm.xlu0 %4525, %v4488
    %v4527 = vpop.permute.xlu0 %4526
    %v4529 = vmul.f32 %v4527, %v4099
    %v4530 = vadd.f32 %v4524, %v4529
    %4531 = vset.pattern.permute.xlu0 7
    %4532 = vperm.xlu0 %4531, %v4488
    %v4533 = vpop.permute.xlu0 %4532
    %v4535 = vmul.f32 %v4533, %v4100
    %v4536 = vadd.f32 %v4530, %v4535
    %4537 = vset.pattern.permute.xlu0 8
    %4538 = vperm.xlu0 %4537, %v4488
    %v4539 = vpop.permute.xlu0 %4538
    %v4541 = vmul.f32 %v4539, %v4101
    %v4542 = vadd.f32 %v4536, %v4541
    %4543 = vset.pattern.permute.xlu0 9
    %4544 = vperm.xlu0 %4543, %v4488
    %v4545 = vpop.permute.xlu0 %4544
    %v4547 = vmul.f32 %v4545, %v4102
    %v4548 = vadd.f32 %v4542, %v4547
    %4549 = vset.pattern.permute.xlu0 10
    %4550 = vperm.xlu0 %4549, %v4488
    %v4551 = vpop.permute.xlu0 %4550
    %v4553 = vmul.f32 %v4551, %v3983
    %v4554 = vadd.f32 %v4548, %v4553
    %4555 = vset.pattern.permute.xlu0 11
    %4556 = vperm.xlu0 %4555, %v4488
    %v4557 = vpop.permute.xlu0 %4556
    %v4559 = vmul.f32 %v4557, %v3984
    %v4560 = vadd.f32 %v4554, %v4559
    %4561 = vset.pattern.permute.xlu0 12
    %4562 = vperm.xlu0 %4561, %v4488
    %v4563 = vpop.permute.xlu0 %4562
    %v4565 = vmul.f32 %v4563, %v3985
    %v4566 = vadd.f32 %v4560, %v4565
    %4567 = vset.pattern.permute.xlu0 13
    %4568 = vperm.xlu0 %4567, %v4488
    %v4569 = vpop.permute.xlu0 %4568
    %v4571 = vmul.f32 %v4569, %v3986
    %v4572 = vadd.f32 %v4566, %v4571
    %4573 = vset.pattern.permute.xlu0 14
    %4574 = vperm.xlu0 %4573, %v4488
    %v4575 = vpop.permute.xlu0 %4574
    %v4577 = vmul.f32 %v4575, %v3987
    %v4578 = vadd.f32 %v4572, %v4577
    %s4579 = scalar_lea.vmem %s7, 2
    %v4580 = vld [vmem:[%s4579] sm:$0x1]
    %s4581 = scalar_lea.vmem %s8, 2
    %v4582 = vld [vmem:[%s4581] sm:$0x1]
    %v4584 = vlaneseq
    %v4585 = vshrl.u32 %v4584, 7
    %v4586 = vsub.s32 0, %v4585
    %v4587 = vrot.slane %v4580, %v4586
    %4588 = vrot.lane.b32.xlu0 %v4587, 64
    %v4589 = vpop.permute.xlu0 %4588
    %v4591 = vmul.f32 %v4578, %v4589
    %4593 = vrot.lane.b32.xlu0 %v4591, 64
    %v4594 = vpop.permute.xlu0 %4593
    %v4596 = vsel %vm3995, %v4594, 0.0
    %4597 = vadd.xlane.f32.xlu0 %v4596
    %v4598 = vpop.xlane.xlu0 %4597
    %v4600 = vlaneseq
    %v4601 = vshrl.u32 %v4600, 7
    %v4602 = vsub.s32 0, %v4601
    %v4603 = vrot.slane %v4582, %v4602
    %v4605 = vadd.f32 %v4598, %v4603
    %4607 = vrot.lane.b32.xlu0 %v4311, 1
    %v4608 = vpop.permute.xlu0 %4607
    %4611 = vrot.lane.b32.xlu0 %v4605, 2
    %v4612 = vpop.permute.xlu0 %4611
    %v4614 = vsel %vm4015, %v4093, %v4608
    %v4615 = vsel %vm4017, %v4614, %v4612
    %v4616 = vld [vmem:[%s9] sm:$0x1]
    %vm4617 = vcmask 16384
    %v4618 = vsel %vm4617, %v4616, -inf
    %4619 = vmax.xlane.f32.xlu0 %v4618
    %v4620 = vpop.xlane.xlu0 %4619
    %v4621 = vsub.f32 %v4616, %v4620
    %v4622 = vmul.f32 %v4621, 1.442695
    %v4623 = vpow.pop %v4622
    %v4624 = vsel %vm4617, %v4623, 0.0
    %4625 = vadd.xlane.f32.xlu0 %v4624
    %v4626 = vpop.xlane.xlu0 %4625
    %v4627 = vrcp.pop %v4626
    %v4628 = vmul.f32 %v4623, %v4627
    %v4630 = vlaneseq
    %v4631 = vshrl.u32 %v4630, 7
    %v4632 = vsub.s32 0, %v4631
    %v4633 = vrot.slane %v4628, %v4632
    %v4635 = vmul.f32 %v4615, %v4633
    %v4636 = vsel %vm4019, %v4635, 0.0
    %4637 = vadd.xlane.f32.xlu0 %v4636
    %v4638 = vpop.xlane.xlu0 %4637
    %4639 = vst.msk [vmem:[%s10] sm:$0xff] %vm4015, %v4638
    // Predicated region
    $region46: #{tpu_custom_call.1} parent=1 // pred_check
      _
    $region47: #{tpu_custom_call.1} parent=1 // pred_check_branch
      %4641 = sbr.rel (0) target = $region49
    $region48: #{tpu_custom_call.1} parent=1 // pred_region
      _
    $region49: #{tpu_custom_call.1} parent=1 // pred_fallthru
      _
    // Predicated region
    $region50: #{tpu_custom_call.1} parent=1 // pred_check
      _
    $region51: #{tpu_custom_call.1} parent=1 // pred_check_branch
      %4643 = sbr.rel (0) target = $region53
    $region52: #{tpu_custom_call.1} parent=1 // pred_region
      _
    $region53: #{tpu_custom_call.1} parent=1 // pred_fallthru
      _
    %4644 = vsyncpa [#allocation5], 1

</llo_original>
